<compile_context>
chip_gen: v7x
topology: tpu7x:2x2x1
jax: 0.10.0
libtpu: 0.0.40
codegen_flags: <defaults>
</compile_context>

<pallas_src>
import functools

import jax
import jax.numpy as jnp
from jax.experimental import pallas as pl
from jax.experimental.pallas import tpu as pltpu

HIDDEN = 4096  # fixed by the module definition: torch.nn.Linear(4096, 4096)


def _linear_add_add_kernel(x_ref, w_ref, b_ref, y_ref, z_ref, o_ref, acc_ref):
    # grid = (m, j, k); k is the reduction axis (last, "arbitrary").
    k = pl.program_id(2)

    @pl.when(k == 0)
    def _():
        acc_ref[...] = jnp.zeros_like(acc_ref)

    tk = w_ref.shape[0]
    start = pl.multiple_of(k * tk, tk)          # aligned lane-dim slice of resident x
    x_chunk = x_ref[:, pl.ds(start, tk)]        # (tm, tk) bf16
    acc_ref[...] += jnp.dot(
        x_chunk, w_ref[...], preferred_element_type=jnp.float32
    )

    @pl.when(k == pl.num_programs(2) - 1)
    def _():
        # Fused epilogue: + bias + y + z, all in f32, then cast to output dtype.
        out = acc_ref[...] + b_ref[...] + y_ref[...] + z_ref[...]
        o_ref[...] = out.astype(o_ref.dtype)


@functools.partial(jax.jit, static_argnames=("tn", "tk"))
def linear_add_add(x, w, b, y, z, *, tn=1024, tk=1024):
    """Fused `Linear(x) + y + z`.

    x, y, z : [..., K] / [..., N] float32
    w       : torch Linear layout (out_features, in_features) = (N, K)
    b       : (N,)
    """
    orig_shape = x.shape
    K = orig_shape[-1]
    N = w.shape[0]
    assert w.shape == (N, K)
    assert K % tk == 0 and N % tn == 0, "tile sizes must divide K and N"
    assert tk % 128 == 0 and tn % 128 == 0

    x2d = x.reshape(-1, K)
    y2d = y.reshape(-1, N)
    z2d = z.reshape(-1, N)
    M = x2d.shape[0]

    # M tiling: small M -> one resident tile; large M -> 256-row tiles
    # (keeps x block / accumulator VMEM usage bounded and fills MXU rows).
    if M <= 256:
        tm = M
    else:
        assert M % 256 == 0, "large M must be a multiple of 256"
        tm = 256

    # Stream x and the weight in bf16 (accumulation stays f32 on the MXU).
    x_bf = x2d.astype(jnp.bfloat16)
    w_t = w.T.astype(jnp.bfloat16)               # (K, N)
    b2d = b.reshape(1, N).astype(jnp.float32)

    grid = (M // tm, N // tn, K // tk)

    cost = pl.CostEstimate(
        flops=2 * M * K * N,
        transcendentals=0,
        bytes_accessed=(K * N * 2) * (M // tm)   # bf16 weight stream (per m tile)
        + M * K * 2                              # bf16 x
        + 3 * M * N * 4                          # y, z, out (f32)
        + N * 4,                                 # bias
    )

    out = pl.pallas_call(
        _linear_add_add_kernel,
        out_shape=jax.ShapeDtypeStruct((M, N), x.dtype),
        grid_spec=pltpu.PrefetchScalarGridSpec(
            num_scalar_prefetch=0,
            grid=grid,
            in_specs=[
                pl.BlockSpec((tm, K), lambda m, j, k: (m, 0)),    # x: resident across j, k
                pl.BlockSpec((tk, tn), lambda m, j, k: (k, j)),   # W^T tile (bf16 stream)
                pl.BlockSpec((1, tn), lambda m, j, k: (0, j)),    # bias (fetched once per j)
                pl.BlockSpec((tm, tn), lambda m, j, k: (m, j)),   # y (fetched once per (m, j))
                pl.BlockSpec((tm, tn), lambda m, j, k: (m, j)),   # z (fetched once per (m, j))
            ],
            out_specs=pl.BlockSpec((tm, tn), lambda m, j, k: (m, j)),
            scratch_shapes=[pltpu.VMEM((tm, tn), jnp.float32)],   # f32 accumulator
        ),
        compiler_params=pltpu.CompilerParams(
            dimension_semantics=("parallel", "parallel", "arbitrary"),
        ),
        cost_estimate=cost,
    )(x_bf, w_t, b2d, y2d, z2d)

    return out.reshape(*orig_shape[:-1], N)


if __name__ == "__main__":
    key = jax.random.PRNGKey(0)
    kx, ky, kz, kw, kb = jax.random.split(key, 5)

    # Small batch/seq; hidden is fixed at 4096 by the module.
    batch, seq = 2, 8
    x = jax.random.normal(kx, (batch, seq, HIDDEN), dtype=jnp.float32)
    y = jax.random.normal(ky, (batch, seq, HIDDEN), dtype=jnp.float32)
    z = jax.random.normal(kz, (batch, seq, HIDDEN), dtype=jnp.float32)

    # Emulate torch.nn.Linear's uniform(-1/sqrt(in), 1/sqrt(in)) init for W and b.
    bound = 1.0 / (HIDDEN ** 0.5)
    w = jax.random.uniform(kw, (HIDDEN, HIDDEN), jnp.float32, -bound, bound)
    b = jax.random.uniform(kb, (HIDDEN,), jnp.float32, -bound, bound)

    out = linear_add_add(x, w, b, y, z)
    out = jax.block_until_ready(out)

    # Reference (plain JAX, f32) — tolerance accounts for bf16 weight/x streaming.
    ref = x @ w.T + b + y + z

    assert out.shape == (batch, seq, HIDDEN)
    max_err = float(jnp.max(jnp.abs(out - ref)))
    assert jnp.allclose(out, ref, atol=3e-2, rtol=3e-2), max_err
    print("KERNEL_OK")
</pallas_src>

<mosaic_0001>
module attributes {stable_mosaic.version = 11 : i64} {
  func.func @_linear_add_add_kernel(%arg0: i32, %arg1: i32, %arg2: i32, %arg3: memref<16x4096xbf16, #tpu.memory_space<vmem>>, %arg4: memref<1024x1024xbf16, #tpu.memory_space<vmem>>, %arg5: memref<1x1024xf32, #tpu.memory_space<vmem>>, %arg6: memref<16x1024xf32, #tpu.memory_space<vmem>>, %arg7: memref<16x1024xf32, #tpu.memory_space<vmem>>, %arg8: memref<16x1024xf32, #tpu.memory_space<vmem>>, %arg9: memref<16x1024xf32, #tpu.memory_space<vmem>>) attributes {dimension_semantics = [#tpu.dimension_semantics<parallel>, #tpu.dimension_semantics<parallel>, #tpu.dimension_semantics<arbitrary>], iteration_bounds = array<i64: 1, 4, 4>, scalar_prefetch = 0 : i64, scratch_operands = 1 : i64, tpu.core_type = #tpu.core_type<tc>, window_params = [{transform_indices = @transform_0, window_bounds = array<i64: 16, 4096>}, {transform_indices = @transform_1, window_bounds = array<i64: 1024, 1024>}, {transform_indices = @transform_2, window_bounds = array<i64: 1, 1024>}, {transform_indices = @transform_3, window_bounds = array<i64: 16, 1024>}, {transform_indices = @transform_4, window_bounds = array<i64: 16, 1024>}, {transform_indices = @transform_5, window_bounds = array<i64: 16, 1024>}]} {
    %c0_i32 = arith.constant 0 : i32
    %0 = arith.cmpi eq, %arg2, %c0_i32 : i32
    %1 = arith.extui %0 : i1 to i32
    %c0_i32_0 = arith.constant 0 : i32
    %2 = arith.cmpi ne, %1, %c0_i32_0 : i32
    scf.if %2 {
      %cst_8 = arith.constant 0.000000e+00 : f32
      %15 = vector.broadcast %cst_8 : f32 to vector<16x1024xf32>
      %c0_9 = arith.constant 0 : index
      %c0_10 = arith.constant 0 : index
      %16 = vector.load %arg9[%c0_9, %c0_10] : memref<16x1024xf32, #tpu.memory_space<vmem>>, vector<16x1024xf32>
      tpu.vector_store %arg9[%c0_9, %c0_10], %15 {strides = array<i32>} : memref<16x1024xf32, #tpu.memory_space<vmem>>, vector<16x1024xf32>,
    } else {
    }
    %c1024_i32 = arith.constant 1024 : i32
    %3 = arith.muli %arg2, %c1024_i32 : i32
    %4 = tpu.assume_multiple %3, 1024 : i32
    %c0 = arith.constant 0 : index
    %5 = arith.index_cast %4 : i32 to index
    %6 = vector.load %arg3[%c0, %5] : memref<16x4096xbf16, #tpu.memory_space<vmem>>, vector<16x1024xbf16>
    %c0_1 = arith.constant 0 : index
    %c0_2 = arith.constant 0 : index
    %7 = vector.load %arg9[%c0_1, %c0_2] : memref<16x1024xf32, #tpu.memory_space<vmem>>, vector<16x1024xf32>
    %c0_3 = arith.constant 0 : index
    %c0_4 = arith.constant 0 : index
    %8 = vector.load %arg4[%c0_3, %c0_4] : memref<1024x1024xbf16, #tpu.memory_space<vmem>>, vector<1024x1024xbf16>
    %cst = arith.constant dense<0.000000e+00> : vector<16x1024xf32>
    %9 = tpu.matmul %6, %8, %cst {dimension_numbers = #tpu.dot_dimension_numbers<[1], [0], [0], [1], [0, 0, 1, 1], [], []>} : vector<16x1024xbf16>, vector<1024x1024xbf16>, vector<16x1024xf32> -> vector<16x1024xf32>
    %10 = arith.addf %7, %9 : vector<16x1024xf32>
    %c0_5 = arith.constant 0 : index
    %c0_6 = arith.constant 0 : index
    %11 = vector.load %arg9[%c0_5, %c0_6] : memref<16x1024xf32, #tpu.memory_space<vmem>>, vector<16x1024xf32>
    tpu.vector_store %arg9[%c0_5, %c0_6], %10 {strides = array<i32>} : memref<16x1024xf32, #tpu.memory_space<vmem>>, vector<16x1024xf32>,
    %c3_i32 = arith.constant 3 : i32
    %12 = arith.cmpi eq, %arg2, %c3_i32 : i32
    %13 = arith.extui %12 : i1 to i32
    %c0_i32_7 = arith.constant 0 : i32
    %14 = arith.cmpi ne, %13, %c0_i32_7 : i32
    scf.if %14 {
      %c0_8 = arith.constant 0 : index
      %c0_9 = arith.constant 0 : index
      %15 = vector.load %arg9[%c0_8, %c0_9] : memref<16x1024xf32, #tpu.memory_space<vmem>>, vector<16x1024xf32>
      %c0_10 = arith.constant 0 : index
      %c0_11 = arith.constant 0 : index
      %16 = vector.load %arg5[%c0_10, %c0_11] : memref<1x1024xf32, #tpu.memory_space<vmem>>, vector<1x1024xf32>
      %17 = vector.broadcast %16 : vector<1x1024xf32> to vector<16x1024xf32>
      %18 = arith.addf %15, %17 : vector<16x1024xf32>
      %c0_12 = arith.constant 0 : index
      %c0_13 = arith.constant 0 : index
      %19 = vector.load %arg6[%c0_12, %c0_13] : memref<16x1024xf32, #tpu.memory_space<vmem>>, vector<16x1024xf32>
      %20 = arith.addf %18, %19 : vector<16x1024xf32>
      %c0_14 = arith.constant 0 : index
      %c0_15 = arith.constant 0 : index
      %21 = vector.load %arg7[%c0_14, %c0_15] : memref<16x1024xf32, #tpu.memory_space<vmem>>, vector<16x1024xf32>
      %22 = arith.addf %20, %21 : vector<16x1024xf32>
      %c0_16 = arith.constant 0 : index
      %c0_17 = arith.constant 0 : index
      %23 = vector.load %arg8[%c0_16, %c0_17] : memref<16x1024xf32, #tpu.memory_space<vmem>>, vector<16x1024xf32>
      tpu.vector_store %arg8[%c0_16, %c0_17], %22 {strides = array<i32>} : memref<16x1024xf32, #tpu.memory_space<vmem>>, vector<16x1024xf32>,
    } else {
    }
    return
  }
  func.func @transform_0(%arg0: i32, %arg1: i32, %arg2: i32) -> (i32, i32) {
    %c0_i32 = arith.constant 0 : i32
    %c0_i32_0 = arith.constant 0 : i32
    return %arg0, %c0_i32 : i32, i32
  }
  func.func @transform_1(%arg0: i32, %arg1: i32, %arg2: i32) -> (i32, i32) {
    %c0_i32 = arith.constant 0 : i32
    return %arg2, %arg1 : i32, i32
  }
  func.func @transform_2(%arg0: i32, %arg1: i32, %arg2: i32) -> (i32, i32) {
    %c0_i32 = arith.constant 0 : i32
    %c0_i32_0 = arith.constant 0 : i32
    return %c0_i32, %arg1 : i32, i32
  }
  func.func @transform_3(%arg0: i32, %arg1: i32, %arg2: i32) -> (i32, i32) {
    %c0_i32 = arith.constant 0 : i32
    return %arg0, %arg1 : i32, i32
  }
  func.func @transform_4(%arg0: i32, %arg1: i32, %arg2: i32) -> (i32, i32) {
    %c0_i32 = arith.constant 0 : i32
    return %arg0, %arg1 : i32, i32
  }
  func.func @transform_5(%arg0: i32, %arg1: i32, %arg2: i32) -> (i32, i32) {
    %c0_i32 = arith.constant 0 : i32
    return %arg0, %arg1 : i32, i32
  }
}

</mosaic_0001>

<llo_original>
// kernel: linear_add_add.1
$region0: #{linear_add_add.1}
  #allocation0 [shape = 'u32[]', space=smem, size = 0x4, offset = 0x4, fixed_abs, tag = 'smem constant byte address 0x4 - core index']
  #allocation1 [shape = 'u32[144,128]{1,0:T(1,128)}', space=vmem, size = 0x12000, scoped, tag = 'internal scratch']
  #allocation2 [shape = 'f32[16,1024]{1,0:T(8,128)}', space=vmem, size = 0x10000, scoped, tag = 'scratch operand']
  %s0 = inlined_call_operand.hbm [shape: bf16[16,4096], index: 0, kind: input, shape index: {}]
  %s1 = inlined_call_operand.vmem [shape: bf16[4096,4096], index: 1, kind: input, shape index: {}]
  %s2 = inlined_call_operand.hbm [shape: f32[1,4096], index: 2, kind: input, shape index: {}]
  %s3 = inlined_call_operand.hbm [shape: f32[16,4096], index: 3, kind: input, shape index: {}]
  %s4 = inlined_call_operand.hbm [shape: f32[16,4096], index: 4, kind: input, shape index: {}]
  %s5 = inlined_call_operand.hbm [shape: f32[16,4096], index: 5, kind: output, shape index: {}]
  %s6 = sld [smem:[#allocation0]]
  $region100: #{linear_add_add.1} parent=0
    _
  %s8 = ssub.s32 1, %s6
  %s9 = scalar_select 0, %s8, %s6
  $region1: #{linear_add_add.1} parent=0
    #allocation3 [shape = 'u8[131072]{0}', space=vmem, size = 0x20000, scoped, tag = 'input window, operand 0, single buffered']
    #allocation4 [shape = 's32[2]{0}', space=sflag, size = 0x8, scoped, tag = 'scoped memory for linear_add_add.1']
    #allocation5 [shape = 's32[2]{0}', space=sflag, size = 0x8, scoped, tag = 'scoped memory for linear_add_add.1']
    #allocation6 [shape = 'u8[4194304]{0}', space=vmem, size = 0x400000, scoped, tag = 'input window, operand 1']
    #allocation7 [shape = 'u8[8192]{0}', space=vmem, size = 0x2000, scoped, tag = 'input window, operand 2']
    #allocation8 [shape = 's32[2]{0}', space=sflag, size = 0x8, scoped, tag = 'scoped memory for linear_add_add.1']
    #allocation9 [shape = 'u8[131072]{0}', space=vmem, size = 0x20000, scoped, tag = 'input window, operand 3']
    #allocation10 [shape = 'u8[131072]{0}', space=vmem, size = 0x20000, scoped, tag = 'input window, operand 4']
    #allocation11 [shape = 's32[2]{0}', space=sflag, size = 0x8, scoped, tag = 'scoped memory for linear_add_add.1']
    #allocation12 [shape = 'u8[131072]{0}', space=vmem, size = 0x20000, scoped, tag = 'output window, operand 0']
    %10 = vsyncpa [#allocation4], 0
    %11 = vsyncpa [#allocation8], 0
    %s12 = scalar_lea.sflag [#allocation8], 1
    %13 = vsyncpa %s12, 0
    %14 = vsyncpa [#allocation11], 0
    %s15 = scalar_lea.sflag [#allocation11], 1
    %16 = vsyncpa %s15, 0
    %17 = vsyncpa [#allocation5], 0
    %s18 = scalar_lea.sflag [#allocation5], 1
    %19 = vsyncpa %s18, 0
    loop: start=0, step=1, limit=18
    $region2: #{linear_add_add.1} parent=1 // loop_pre_header
      _
    $region3: #{linear_add_add.1} parent=1 // loop_header
      %s21 = sphi 0, %s25
      %p22 = scmp.ge.s32.totalorder %s21, 18
      %s28 = sphi 0, %s47
      %s29 = sphi 0, %s43
      %s30 = sphi 0, %s39
      %s31 = sphi 0, %s28
      %s32 = sphi 0, %s29
      %s33 = sphi 0, %s30
      %s34 = sphi 0, %s31
      %s35 = sphi 0, %s32
      %s36 = sphi 0, %s33
      %s50 = sphi 0, %s52
      %s53 = sphi 0, %s50
      %s54 = sphi 0, %s53
      %s70 = sphi 0, %s54
      %s78 = sphi 0, %s80
      %s81 = sphi 0, %s78
      %s82 = sphi 0, %s81
      %s98 = sphi 0, %s82
      %s104 = sphi 0, %s106
      %s107 = sphi 0, %s104
      %s108 = sphi 0, %s107
      %s124 = sphi 0, %s108
      %s132 = sphi 0, %s134
      %s135 = sphi 0, %s132
      %s136 = sphi 0, %s135
      %s152 = sphi 0, %s136
      %s160 = sphi 0, %s162
      %s163 = sphi 0, %s160
      %s164 = sphi 0, %s163
      %s180 = sphi 0, %s164
      %s188 = sphi 0, %s190
      %s191 = sphi 0, %s188
      %s192 = sphi 0, %s191
      %s208 = sphi 0, %s192
    $region4: #{linear_add_add.1} parent=1 // loop_header_branch
      %24 = sbr.rel (%p22) target = $region8
    $region5: #{linear_add_add.1} parent=1 // loop_body
      %s26 = ssub.s32 %s21, 1
      %s27 = ssub.s32 %s21, 2
      %s37 = sadd.s32 1, %s30
      %p38 = scmp.ge.s32.totalorder %s37, 4
      %s39 = scalar_select %p38, 0, %s37
      %s40 = sadd.s32 1, %s29
      %s41 = scalar_select %p38, %s40, %s29
      %p42 = scmp.ge.s32.totalorder %s41, 4
      %s43 = scalar_select %p42, 0, %s41
      %s44 = sadd.s32 1, %s28
      %s45 = scalar_select %p42, %s44, %s28
      %p46 = scmp.ge.s32.totalorder %s45, 1
      %s47 = scalar_select %p46, 0, %s45
      %s48 = ssub.s32 %s28, %s47
      %p49 = scmp.eq.s32.totalorder %s48, 0
      %s51 = sadd.s32 %s50, 1
      %s52 = scalar_select %p49, %s50, %s51
      %p55 = pneg %p49
      %p56 = scmp.eq.s32.totalorder %s21, 15
      %p57 = por %p55, %p56
      %p58 = scmp.ne.s32.totalorder %s50, %s53
      %p59 = scmp.eq.s32.totalorder %s21, 0
      %p60 = por %p58, %p59
      %p61 = scmp.ne.s32.totalorder %s50, %s53
      %p62 = scmp.eq.s32.totalorder %s26, 15
      %p63 = por %p61, %p62
      %p64 = scmp.ne.s32.totalorder %s53, %s54
      %p65 = scmp.eq.s32.totalorder %s26, 0
      %p66 = por %p64, %p65
      %p67 = scmp.ne.s32.totalorder %s53, %s54
      %p68 = scmp.eq.s32.totalorder %s27, 15
      %p69 = por %p67, %p68
      %p71 = scmp.ne.s32.totalorder %s54, %s70
      %p72 = scmp.eq.s32.totalorder %s27, 0
      %p73 = por %p71, %p72
      %s74 = ssub.s32 %s30, %s39
      %s75 = ssub.s32 %s29, %s43
      %s76 = sor.u32 %s74, %s75
      %p77 = scmp.eq.s32.totalorder %s76, 0
      %s79 = sadd.s32 %s78, 1
      %s80 = scalar_select %p77, %s78, %s79
      %p83 = pneg %p77
      %p84 = scmp.eq.s32.totalorder %s21, 15
      %p85 = por %p83, %p84
      %p86 = scmp.ne.s32.totalorder %s78, %s81
      %p87 = scmp.eq.s32.totalorder %s21, 0
      %p88 = por %p86, %p87
      %p89 = scmp.ne.s32.totalorder %s78, %s81
      %p90 = scmp.eq.s32.totalorder %s26, 15
      %p91 = por %p89, %p90
      %p92 = scmp.ne.s32.totalorder %s81, %s82
      %p93 = scmp.eq.s32.totalorder %s26, 0
      %p94 = por %p92, %p93
      %p95 = scmp.ne.s32.totalorder %s81, %s82
      %p96 = scmp.eq.s32.totalorder %s27, 15
      %p97 = por %p95, %p96
      %p99 = scmp.ne.s32.totalorder %s82, %s98
      %p100 = scmp.eq.s32.totalorder %s27, 0
      %p101 = por %p99, %p100
      %s102 = ssub.s32 %s29, %s43
      %p103 = scmp.eq.s32.totalorder %s102, 0
      %s105 = sadd.s32 %s104, 1
      %s106 = scalar_select %p103, %s104, %s105
      %p109 = pneg %p103
      %p110 = scmp.eq.s32.totalorder %s21, 15
      %p111 = por %p109, %p110
      %p112 = scmp.ne.s32.totalorder %s104, %s107
      %p113 = scmp.eq.s32.totalorder %s21, 0
      %p114 = por %p112, %p113
      %p115 = scmp.ne.s32.totalorder %s104, %s107
      %p116 = scmp.eq.s32.totalorder %s26, 15
      %p117 = por %p115, %p116
      %p118 = scmp.ne.s32.totalorder %s107, %s108
      %p119 = scmp.eq.s32.totalorder %s26, 0
      %p120 = por %p118, %p119
      %p121 = scmp.ne.s32.totalorder %s107, %s108
      %p122 = scmp.eq.s32.totalorder %s27, 15
      %p123 = por %p121, %p122
      %p125 = scmp.ne.s32.totalorder %s108, %s124
      %p126 = scmp.eq.s32.totalorder %s27, 0
      %p127 = por %p125, %p126
      %s128 = ssub.s32 %s28, %s47
      %s129 = ssub.s32 %s29, %s43
      %s130 = sor.u32 %s128, %s129
      %p131 = scmp.eq.s32.totalorder %s130, 0
      %s133 = sadd.s32 %s132, 1
      %s134 = scalar_select %p131, %s132, %s133
      %p137 = pneg %p131
      %p138 = scmp.eq.s32.totalorder %s21, 15
      %p139 = por %p137, %p138
      %p140 = scmp.ne.s32.totalorder %s132, %s135
      %p141 = scmp.eq.s32.totalorder %s21, 0
      %p142 = por %p140, %p141
      %p143 = scmp.ne.s32.totalorder %s132, %s135
      %p144 = scmp.eq.s32.totalorder %s26, 15
      %p145 = por %p143, %p144
      %p146 = scmp.ne.s32.totalorder %s135, %s136
      %p147 = scmp.eq.s32.totalorder %s26, 0
      %p148 = por %p146, %p147
      %p149 = scmp.ne.s32.totalorder %s135, %s136
      %p150 = scmp.eq.s32.totalorder %s27, 15
      %p151 = por %p149, %p150
      %p153 = scmp.ne.s32.totalorder %s136, %s152
      %p154 = scmp.eq.s32.totalorder %s27, 0
      %p155 = por %p153, %p154
      %s156 = ssub.s32 %s28, %s47
      %s157 = ssub.s32 %s29, %s43
      %s158 = sor.u32 %s156, %s157
      %p159 = scmp.eq.s32.totalorder %s158, 0
      %s161 = sadd.s32 %s160, 1
      %s162 = scalar_select %p159, %s160, %s161
      %p165 = pneg %p159
      %p166 = scmp.eq.s32.totalorder %s21, 15
      %p167 = por %p165, %p166
      %p168 = scmp.ne.s32.totalorder %s160, %s163
      %p169 = scmp.eq.s32.totalorder %s21, 0
      %p170 = por %p168, %p169
      %p171 = scmp.ne.s32.totalorder %s160, %s163
      %p172 = scmp.eq.s32.totalorder %s26, 15
      %p173 = por %p171, %p172
      %p174 = scmp.ne.s32.totalorder %s163, %s164
      %p175 = scmp.eq.s32.totalorder %s26, 0
      %p176 = por %p174, %p175
      %p177 = scmp.ne.s32.totalorder %s163, %s164
      %p178 = scmp.eq.s32.totalorder %s27, 15
      %p179 = por %p177, %p178
      %p181 = scmp.ne.s32.totalorder %s164, %s180
      %p182 = scmp.eq.s32.totalorder %s27, 0
      %p183 = por %p181, %p182
      %s184 = ssub.s32 %s28, %s47
      %s185 = ssub.s32 %s29, %s43
      %s186 = sor.u32 %s184, %s185
      %p187 = scmp.eq.s32.totalorder %s186, 0
      %s189 = sadd.s32 %s188, 1
      %s190 = scalar_select %p187, %s188, %s189
      %p193 = pneg %p187
      %p194 = scmp.eq.s32.totalorder %s21, 15
      %p195 = por %p193, %p194
      %p196 = scmp.ne.s32.totalorder %s188, %s191
      %p197 = scmp.eq.s32.totalorder %s21, 0
      %p198 = por %p196, %p197
      %p199 = scmp.ne.s32.totalorder %s188, %s191
      %p200 = scmp.eq.s32.totalorder %s26, 15
      %p201 = por %p199, %p200
      %p202 = scmp.ne.s32.totalorder %s191, %s192
      %p203 = scmp.eq.s32.totalorder %s26, 0
      %p204 = por %p202, %p203
      %p205 = scmp.ne.s32.totalorder %s191, %s192
      %p206 = scmp.eq.s32.totalorder %s27, 15
      %p207 = por %p205, %p206
      %p209 = scmp.ne.s32.totalorder %s192, %s208
      %p210 = scmp.eq.s32.totalorder %s27, 0
      %p211 = por %p209, %p210
      %p212 = scmp.le.s32.totalorder 1, %s21
      %p213 = scmp.lt.s32.totalorder %s21, 17
      %p214 = pnand %p212, %p213
      %p215 = pneg %p214
      // Predicated region
      $region9: #{linear_add_add.1} parent=5 // pred_check
        _
      $region10: #{linear_add_add.1} parent=5 // pred_check_branch
        %217 = sbr.rel (%p214) target = $region12
      $region11: #{linear_add_add.1} parent=5 // pred_region
        %s218 = ssub.s32 %s21, 1
        // Predicated region
        $region13: #{linear_add_add.1} parent=11 // pred_check
          %p219 = pneg %p66
        $region14: #{linear_add_add.1} parent=11 // pred_check_branch
          %221 = sbr.rel (%p219) target = $region16
        $region15: #{linear_add_add.1} parent=11 // pred_region
          %s222 = smul.u32 2, %s31
          %s224 = ssub.s32 4096, 4096
          %225 = vsyncadd [#allocation4], %s224
          %s226 = smul.addr %s222, 32
          %s227 = smul.addr %s226, 64
          %s228 = scalar_lea.hbm %s0, %s227
          %s229 = sshll.u32 [#allocation3], 4
          %s230 = int_to_ptr.vmem [resolvable:$true] %s229
          %235 = dma.hbm_to_vmem [thread:$0]  %s228, 4096, %s230, [#allocation4], 2048, 2048, 128
        $region16: #{linear_add_add.1} parent=11 // pred_fallthru
          _
      $region12: #{linear_add_add.1} parent=5 // pred_fallthru
        _
      %p236 = scmp.lt.s32.totalorder %s21, 16
      // Predicated region
      $region17: #{linear_add_add.1} parent=5 // pred_check
        %p237 = pneg %p236
      $region18: #{linear_add_add.1} parent=5 // pred_check_branch
        %239 = sbr.rel (%p237) target = $region20
      $region19: #{linear_add_add.1} parent=5 // pred_region
        // Predicated region
        $region21: #{linear_add_add.1} parent=19 // pred_check
          %p240 = pneg %p88
        $region22: #{linear_add_add.1} parent=19 // pred_check_branch
          %242 = sbr.rel (%p240) target = $region24
        $region23: #{linear_add_add.1} parent=19 // pred_region
          %s243 = sand.u32 %s78, 1
          %s244 = sand.u32 %s78, 1
          %s245 = smul.addr %s244, 4096
          %s246 = scalar_lea.vmem [#allocation6], %s245
          %s247 = smul.u32 128, %s30
          %s248 = smul.u32 8, %s29
          %s249 = smul.addr %s247, 32
          %s250 = sadd.s32 %s248, %s249
          %s251 = smul.addr %s250, 4
          %s252 = scalar_lea.vmem %s1, %s251
          // Predicated region
          $region25: #{linear_add_add.1} parent=23 // pred_check
            _
          $region26: #{linear_add_add.1} parent=23 // pred_check_branch
            %254 = sbr.rel (0) target = $region28
          $region27: #{linear_add_add.1} parent=23 // pred_region
            // Predicated region
            $region29: #{linear_add_add.1} parent=27 // pred_check
              _
            $region30: #{linear_add_add.1} parent=27 // pred_check_branch
              %256 = sbr.rel (0) target = $region32
            $region31: #{linear_add_add.1} parent=27 // pred_region
              loop: start=0, step=1, limit=1
              $region33: #{linear_add_add.1} parent=31 // loop_pre_header
                _
              $region34: #{linear_add_add.1} parent=31 // loop_header
                %s258 = sphi 0, %s262
                %p259 = scmp.ge.s32.totalorder %s258, 1
                %s263 = sphi %s252, %s252
                %s264 = sphi %s246, %s246
              $region35: #{linear_add_add.1} parent=31 // loop_header_branch
                %261 = sbr.rel (%p259) target = $region39
              $region36: #{linear_add_add.1} parent=31 // loop_body
                %v265 = vld [vmem:[%s263] sm:$0xff]
                %266 = vst [vmem:[%s264] sm:$0xff] %v265
                %v267 = vld [vmem:[%s263 + $0x8] sm:$0xff]
                %268 = vst [vmem:[%s264 + $0x8] sm:$0xff] %v267
                %v269 = vld [vmem:[%s263 + $0x10] sm:$0xff]
                %270 = vst [vmem:[%s264 + $0x10] sm:$0xff] %v269
                %v271 = vld [vmem:[%s263 + $0x18] sm:$0xff]
                %272 = vst [vmem:[%s264 + $0x18] sm:$0xff] %v271
                %v273 = vld [vmem:[%s263 + $0x80] sm:$0xff]
                %274 = vst [vmem:[%s264 + $0x20] sm:$0xff] %v273
                %v275 = vld [vmem:[%s263 + $0x88] sm:$0xff]
                %276 = vst [vmem:[%s264 + $0x28] sm:$0xff] %v275
                %v277 = vld [vmem:[%s263 + $0x90] sm:$0xff]
                %278 = vst [vmem:[%s264 + $0x30] sm:$0xff] %v277
                %v279 = vld [vmem:[%s263 + $0x98] sm:$0xff]
                %280 = vst [vmem:[%s264 + $0x38] sm:$0xff] %v279
                %v281 = vld [vmem:[%s263 + $0x100] sm:$0xff]
                %282 = vst [vmem:[%s264 + $0x40] sm:$0xff] %v281
                %v283 = vld [vmem:[%s263 + $0x108] sm:$0xff]
                %284 = vst [vmem:[%s264 + $0x48] sm:$0xff] %v283
                %v285 = vld [vmem:[%s263 + $0x110] sm:$0xff]
                %286 = vst [vmem:[%s264 + $0x50] sm:$0xff] %v285
                %v287 = vld [vmem:[%s263 + $0x118] sm:$0xff]
                %288 = vst [vmem:[%s264 + $0x58] sm:$0xff] %v287
                %v289 = vld [vmem:[%s263 + $0x180] sm:$0xff]
                %290 = vst [vmem:[%s264 + $0x60] sm:$0xff] %v289
                %v291 = vld [vmem:[%s263 + $0x188] sm:$0xff]
                %292 = vst [vmem:[%s264 + $0x68] sm:$0xff] %v291
                %v293 = vld [vmem:[%s263 + $0x190] sm:$0xff]
                %294 = vst [vmem:[%s264 + $0x70] sm:$0xff] %v293
                %v295 = vld [vmem:[%s263 + $0x198] sm:$0xff]
                %296 = vst [vmem:[%s264 + $0x78] sm:$0xff] %v295
                %v297 = vld [vmem:[%s263 + $0x200] sm:$0xff]
                %298 = vst [vmem:[%s264 + $0x80] sm:$0xff] %v297
                %v299 = vld [vmem:[%s263 + $0x208] sm:$0xff]
                %300 = vst [vmem:[%s264 + $0x88] sm:$0xff] %v299
                %v301 = vld [vmem:[%s263 + $0x210] sm:$0xff]
                %302 = vst [vmem:[%s264 + $0x90] sm:$0xff] %v301
                %v303 = vld [vmem:[%s263 + $0x218] sm:$0xff]
                %304 = vst [vmem:[%s264 + $0x98] sm:$0xff] %v303
                %v305 = vld [vmem:[%s263 + $0x280] sm:$0xff]
                %306 = vst [vmem:[%s264 + $0xa0] sm:$0xff] %v305
                %v307 = vld [vmem:[%s263 + $0x288] sm:$0xff]
                %308 = vst [vmem:[%s264 + $0xa8] sm:$0xff] %v307
                %v309 = vld [vmem:[%s263 + $0x290] sm:$0xff]
                %310 = vst [vmem:[%s264 + $0xb0] sm:$0xff] %v309
                %v311 = vld [vmem:[%s263 + $0x298] sm:$0xff]
                %312 = vst [vmem:[%s264 + $0xb8] sm:$0xff] %v311
                %v313 = vld [vmem:[%s263 + $0x300] sm:$0xff]
                %314 = vst [vmem:[%s264 + $0xc0] sm:$0xff] %v313
                %v315 = vld [vmem:[%s263 + $0x308] sm:$0xff]
                %316 = vst [vmem:[%s264 + $0xc8] sm:$0xff] %v315
                %v317 = vld [vmem:[%s263 + $0x310] sm:$0xff]
                %318 = vst [vmem:[%s264 + $0xd0] sm:$0xff] %v317
                %v319 = vld [vmem:[%s263 + $0x318] sm:$0xff]
                %320 = vst [vmem:[%s264 + $0xd8] sm:$0xff] %v319
                %v321 = vld [vmem:[%s263 + $0x380] sm:$0xff]
                %322 = vst [vmem:[%s264 + $0xe0] sm:$0xff] %v321
                %v323 = vld [vmem:[%s263 + $0x388] sm:$0xff]
                %324 = vst [vmem:[%s264 + $0xe8] sm:$0xff] %v323
                %v325 = vld [vmem:[%s263 + $0x390] sm:$0xff]
                %326 = vst [vmem:[%s264 + $0xf0] sm:$0xff] %v325
                %v327 = vld [vmem:[%s263 + $0x398] sm:$0xff]
                %328 = vst [vmem:[%s264 + $0xf8] sm:$0xff] %v327
                %v329 = vld [vmem:[%s263 + $0x400] sm:$0xff]
                %330 = vst [vmem:[%s264 + $0x100] sm:$0xff] %v329
                %v331 = vld [vmem:[%s263 + $0x408] sm:$0xff]
                %332 = vst [vmem:[%s264 + $0x108] sm:$0xff] %v331
                %v333 = vld [vmem:[%s263 + $0x410] sm:$0xff]
                %334 = vst [vmem:[%s264 + $0x110] sm:$0xff] %v333
                %v335 = vld [vmem:[%s263 + $0x418] sm:$0xff]
                %336 = vst [vmem:[%s264 + $0x118] sm:$0xff] %v335
                %v337 = vld [vmem:[%s263 + $0x480] sm:$0xff]
                %338 = vst [vmem:[%s264 + $0x120] sm:$0xff] %v337
                %v339 = vld [vmem:[%s263 + $0x488] sm:$0xff]
                %340 = vst [vmem:[%s264 + $0x128] sm:$0xff] %v339
                %v341 = vld [vmem:[%s263 + $0x490] sm:$0xff]
                %342 = vst [vmem:[%s264 + $0x130] sm:$0xff] %v341
                %v343 = vld [vmem:[%s263 + $0x498] sm:$0xff]
                %344 = vst [vmem:[%s264 + $0x138] sm:$0xff] %v343
                %v345 = vld [vmem:[%s263 + $0x500] sm:$0xff]
                %346 = vst [vmem:[%s264 + $0x140] sm:$0xff] %v345
                %v347 = vld [vmem:[%s263 + $0x508] sm:$0xff]
                %348 = vst [vmem:[%s264 + $0x148] sm:$0xff] %v347
                %v349 = vld [vmem:[%s263 + $0x510] sm:$0xff]
                %350 = vst [vmem:[%s264 + $0x150] sm:$0xff] %v349
                %v351 = vld [vmem:[%s263 + $0x518] sm:$0xff]
                %352 = vst [vmem:[%s264 + $0x158] sm:$0xff] %v351
                %v353 = vld [vmem:[%s263 + $0x580] sm:$0xff]
                %354 = vst [vmem:[%s264 + $0x160] sm:$0xff] %v353
                %v355 = vld [vmem:[%s263 + $0x588] sm:$0xff]
                %356 = vst [vmem:[%s264 + $0x168] sm:$0xff] %v355
                %v357 = vld [vmem:[%s263 + $0x590] sm:$0xff]
                %358 = vst [vmem:[%s264 + $0x170] sm:$0xff] %v357
                %v359 = vld [vmem:[%s263 + $0x598] sm:$0xff]
                %360 = vst [vmem:[%s264 + $0x178] sm:$0xff] %v359
                %v361 = vld [vmem:[%s263 + $0x600] sm:$0xff]
                %362 = vst [vmem:[%s264 + $0x180] sm:$0xff] %v361
                %v363 = vld [vmem:[%s263 + $0x608] sm:$0xff]
                %364 = vst [vmem:[%s264 + $0x188] sm:$0xff] %v363
                %v365 = vld [vmem:[%s263 + $0x610] sm:$0xff]
                %366 = vst [vmem:[%s264 + $0x190] sm:$0xff] %v365
                %v367 = vld [vmem:[%s263 + $0x618] sm:$0xff]
                %368 = vst [vmem:[%s264 + $0x198] sm:$0xff] %v367
                %v369 = vld [vmem:[%s263 + $0x680] sm:$0xff]
                %370 = vst [vmem:[%s264 + $0x1a0] sm:$0xff] %v369
                %v371 = vld [vmem:[%s263 + $0x688] sm:$0xff]
                %372 = vst [vmem:[%s264 + $0x1a8] sm:$0xff] %v371
                %v373 = vld [vmem:[%s263 + $0x690] sm:$0xff]
                %374 = vst [vmem:[%s264 + $0x1b0] sm:$0xff] %v373
                %v375 = vld [vmem:[%s263 + $0x698] sm:$0xff]
                %376 = vst [vmem:[%s264 + $0x1b8] sm:$0xff] %v375
                %v377 = vld [vmem:[%s263 + $0x700] sm:$0xff]
                %378 = vst [vmem:[%s264 + $0x1c0] sm:$0xff] %v377
                %v379 = vld [vmem:[%s263 + $0x708] sm:$0xff]
                %380 = vst [vmem:[%s264 + $0x1c8] sm:$0xff] %v379
                %v381 = vld [vmem:[%s263 + $0x710] sm:$0xff]
                %382 = vst [vmem:[%s264 + $0x1d0] sm:$0xff] %v381
                %v383 = vld [vmem:[%s263 + $0x718] sm:$0xff]
                %384 = vst [vmem:[%s264 + $0x1d8] sm:$0xff] %v383
                %v385 = vld [vmem:[%s263 + $0x780] sm:$0xff]
                %386 = vst [vmem:[%s264 + $0x1e0] sm:$0xff] %v385
                %v387 = vld [vmem:[%s263 + $0x788] sm:$0xff]
                %388 = vst [vmem:[%s264 + $0x1e8] sm:$0xff] %v387
                %v389 = vld [vmem:[%s263 + $0x790] sm:$0xff]
                %390 = vst [vmem:[%s264 + $0x1f0] sm:$0xff] %v389
                %v391 = vld [vmem:[%s263 + $0x798] sm:$0xff]
                %392 = vst [vmem:[%s264 + $0x1f8] sm:$0xff] %v391
                %v393 = vld [vmem:[%s263 + $0x800] sm:$0xff]
                %394 = vst [vmem:[%s264 + $0x200] sm:$0xff] %v393
                %v395 = vld [vmem:[%s263 + $0x808] sm:$0xff]
                %396 = vst [vmem:[%s264 + $0x208] sm:$0xff] %v395
                %v397 = vld [vmem:[%s263 + $0x810] sm:$0xff]
                %398 = vst [vmem:[%s264 + $0x210] sm:$0xff] %v397
                %v399 = vld [vmem:[%s263 + $0x818] sm:$0xff]
                %400 = vst [vmem:[%s264 + $0x218] sm:$0xff] %v399
                %v401 = vld [vmem:[%s263 + $0x880] sm:$0xff]
                %402 = vst [vmem:[%s264 + $0x220] sm:$0xff] %v401
                %v403 = vld [vmem:[%s263 + $0x888] sm:$0xff]
                %404 = vst [vmem:[%s264 + $0x228] sm:$0xff] %v403
                %v405 = vld [vmem:[%s263 + $0x890] sm:$0xff]
                %406 = vst [vmem:[%s264 + $0x230] sm:$0xff] %v405
                %v407 = vld [vmem:[%s263 + $0x898] sm:$0xff]
                %408 = vst [vmem:[%s264 + $0x238] sm:$0xff] %v407
                %v409 = vld [vmem:[%s263 + $0x900] sm:$0xff]
                %410 = vst [vmem:[%s264 + $0x240] sm:$0xff] %v409
                %v411 = vld [vmem:[%s263 + $0x908] sm:$0xff]
                %412 = vst [vmem:[%s264 + $0x248] sm:$0xff] %v411
                %v413 = vld [vmem:[%s263 + $0x910] sm:$0xff]
                %414 = vst [vmem:[%s264 + $0x250] sm:$0xff] %v413
                %v415 = vld [vmem:[%s263 + $0x918] sm:$0xff]
                %416 = vst [vmem:[%s264 + $0x258] sm:$0xff] %v415
                %v417 = vld [vmem:[%s263 + $0x980] sm:$0xff]
                %418 = vst [vmem:[%s264 + $0x260] sm:$0xff] %v417
                %v419 = vld [vmem:[%s263 + $0x988] sm:$0xff]
                %420 = vst [vmem:[%s264 + $0x268] sm:$0xff] %v419
                %v421 = vld [vmem:[%s263 + $0x990] sm:$0xff]
                %422 = vst [vmem:[%s264 + $0x270] sm:$0xff] %v421
                %v423 = vld [vmem:[%s263 + $0x998] sm:$0xff]
                %424 = vst [vmem:[%s264 + $0x278] sm:$0xff] %v423
                %v425 = vld [vmem:[%s263 + $0xa00] sm:$0xff]
                %426 = vst [vmem:[%s264 + $0x280] sm:$0xff] %v425
                %v427 = vld [vmem:[%s263 + $0xa08] sm:$0xff]
                %428 = vst [vmem:[%s264 + $0x288] sm:$0xff] %v427
                %v429 = vld [vmem:[%s263 + $0xa10] sm:$0xff]
                %430 = vst [vmem:[%s264 + $0x290] sm:$0xff] %v429
                %v431 = vld [vmem:[%s263 + $0xa18] sm:$0xff]
                %432 = vst [vmem:[%s264 + $0x298] sm:$0xff] %v431
                %v433 = vld [vmem:[%s263 + $0xa80] sm:$0xff]
                %434 = vst [vmem:[%s264 + $0x2a0] sm:$0xff] %v433
                %v435 = vld [vmem:[%s263 + $0xa88] sm:$0xff]
                %436 = vst [vmem:[%s264 + $0x2a8] sm:$0xff] %v435
                %v437 = vld [vmem:[%s263 + $0xa90] sm:$0xff]
                %438 = vst [vmem:[%s264 + $0x2b0] sm:$0xff] %v437
                %v439 = vld [vmem:[%s263 + $0xa98] sm:$0xff]
                %440 = vst [vmem:[%s264 + $0x2b8] sm:$0xff] %v439
                %v441 = vld [vmem:[%s263 + $0xb00] sm:$0xff]
                %442 = vst [vmem:[%s264 + $0x2c0] sm:$0xff] %v441
                %v443 = vld [vmem:[%s263 + $0xb08] sm:$0xff]
                %444 = vst [vmem:[%s264 + $0x2c8] sm:$0xff] %v443
                %v445 = vld [vmem:[%s263 + $0xb10] sm:$0xff]
                %446 = vst [vmem:[%s264 + $0x2d0] sm:$0xff] %v445
                %v447 = vld [vmem:[%s263 + $0xb18] sm:$0xff]
                %448 = vst [vmem:[%s264 + $0x2d8] sm:$0xff] %v447
                %v449 = vld [vmem:[%s263 + $0xb80] sm:$0xff]
                %450 = vst [vmem:[%s264 + $0x2e0] sm:$0xff] %v449
                %v451 = vld [vmem:[%s263 + $0xb88] sm:$0xff]
                %452 = vst [vmem:[%s264 + $0x2e8] sm:$0xff] %v451
                %v453 = vld [vmem:[%s263 + $0xb90] sm:$0xff]
                %454 = vst [vmem:[%s264 + $0x2f0] sm:$0xff] %v453
                %v455 = vld [vmem:[%s263 + $0xb98] sm:$0xff]
                %456 = vst [vmem:[%s264 + $0x2f8] sm:$0xff] %v455
                %v457 = vld [vmem:[%s263 + $0xc00] sm:$0xff]
                %458 = vst [vmem:[%s264 + $0x300] sm:$0xff] %v457
                %v459 = vld [vmem:[%s263 + $0xc08] sm:$0xff]
                %460 = vst [vmem:[%s264 + $0x308] sm:$0xff] %v459
                %v461 = vld [vmem:[%s263 + $0xc10] sm:$0xff]
                %462 = vst [vmem:[%s264 + $0x310] sm:$0xff] %v461
                %v463 = vld [vmem:[%s263 + $0xc18] sm:$0xff]
                %464 = vst [vmem:[%s264 + $0x318] sm:$0xff] %v463
                %v465 = vld [vmem:[%s263 + $0xc80] sm:$0xff]
                %466 = vst [vmem:[%s264 + $0x320] sm:$0xff] %v465
                %v467 = vld [vmem:[%s263 + $0xc88] sm:$0xff]
                %468 = vst [vmem:[%s264 + $0x328] sm:$0xff] %v467
                %v469 = vld [vmem:[%s263 + $0xc90] sm:$0xff]
                %470 = vst [vmem:[%s264 + $0x330] sm:$0xff] %v469
                %v471 = vld [vmem:[%s263 + $0xc98] sm:$0xff]
                %472 = vst [vmem:[%s264 + $0x338] sm:$0xff] %v471
                %v473 = vld [vmem:[%s263 + $0xd00] sm:$0xff]
                %474 = vst [vmem:[%s264 + $0x340] sm:$0xff] %v473
                %v475 = vld [vmem:[%s263 + $0xd08] sm:$0xff]
                %476 = vst [vmem:[%s264 + $0x348] sm:$0xff] %v475
                %v477 = vld [vmem:[%s263 + $0xd10] sm:$0xff]
                %478 = vst [vmem:[%s264 + $0x350] sm:$0xff] %v477
                %v479 = vld [vmem:[%s263 + $0xd18] sm:$0xff]
                %480 = vst [vmem:[%s264 + $0x358] sm:$0xff] %v479
                %v481 = vld [vmem:[%s263 + $0xd80] sm:$0xff]
                %482 = vst [vmem:[%s264 + $0x360] sm:$0xff] %v481
                %v483 = vld [vmem:[%s263 + $0xd88] sm:$0xff]
                %484 = vst [vmem:[%s264 + $0x368] sm:$0xff] %v483
                %v485 = vld [vmem:[%s263 + $0xd90] sm:$0xff]
                %486 = vst [vmem:[%s264 + $0x370] sm:$0xff] %v485
                %v487 = vld [vmem:[%s263 + $0xd98] sm:$0xff]
                %488 = vst [vmem:[%s264 + $0x378] sm:$0xff] %v487
                %v489 = vld [vmem:[%s263 + $0xe00] sm:$0xff]
                %490 = vst [vmem:[%s264 + $0x380] sm:$0xff] %v489
                %v491 = vld [vmem:[%s263 + $0xe08] sm:$0xff]
                %492 = vst [vmem:[%s264 + $0x388] sm:$0xff] %v491
                %v493 = vld [vmem:[%s263 + $0xe10] sm:$0xff]
                %494 = vst [vmem:[%s264 + $0x390] sm:$0xff] %v493
                %v495 = vld [vmem:[%s263 + $0xe18] sm:$0xff]
                %496 = vst [vmem:[%s264 + $0x398] sm:$0xff] %v495
                %v497 = vld [vmem:[%s263 + $0xe80] sm:$0xff]
                %498 = vst [vmem:[%s264 + $0x3a0] sm:$0xff] %v497
                %v499 = vld [vmem:[%s263 + $0xe88] sm:$0xff]
                %500 = vst [vmem:[%s264 + $0x3a8] sm:$0xff] %v499
                %v501 = vld [vmem:[%s263 + $0xe90] sm:$0xff]
                %502 = vst [vmem:[%s264 + $0x3b0] sm:$0xff] %v501
                %v503 = vld [vmem:[%s263 + $0xe98] sm:$0xff]
                %504 = vst [vmem:[%s264 + $0x3b8] sm:$0xff] %v503
                %v505 = vld [vmem:[%s263 + $0xf00] sm:$0xff]
                %506 = vst [vmem:[%s264 + $0x3c0] sm:$0xff] %v505
                %v507 = vld [vmem:[%s263 + $0xf08] sm:$0xff]
                %508 = vst [vmem:[%s264 + $0x3c8] sm:$0xff] %v507
                %v509 = vld [vmem:[%s263 + $0xf10] sm:$0xff]
                %510 = vst [vmem:[%s264 + $0x3d0] sm:$0xff] %v509
                %v511 = vld [vmem:[%s263 + $0xf18] sm:$0xff]
                %512 = vst [vmem:[%s264 + $0x3d8] sm:$0xff] %v511
                %v513 = vld [vmem:[%s263 + $0xf80] sm:$0xff]
                %514 = vst [vmem:[%s264 + $0x3e0] sm:$0xff] %v513
                %v515 = vld [vmem:[%s263 + $0xf88] sm:$0xff]
                %516 = vst [vmem:[%s264 + $0x3e8] sm:$0xff] %v515
                %v517 = vld [vmem:[%s263 + $0xf90] sm:$0xff]
                %518 = vst [vmem:[%s264 + $0x3f0] sm:$0xff] %v517
                %v519 = vld [vmem:[%s263 + $0xf98] sm:$0xff]
                %520 = vst [vmem:[%s264 + $0x3f8] sm:$0xff] %v519
                %v521 = vld [vmem:[%s263 + $0x1000] sm:$0xff]
                %522 = vst [vmem:[%s264 + $0x400] sm:$0xff] %v521
                %v523 = vld [vmem:[%s263 + $0x1008] sm:$0xff]
                %524 = vst [vmem:[%s264 + $0x408] sm:$0xff] %v523
                %v525 = vld [vmem:[%s263 + $0x1010] sm:$0xff]
                %526 = vst [vmem:[%s264 + $0x410] sm:$0xff] %v525
                %v527 = vld [vmem:[%s263 + $0x1018] sm:$0xff]
                %528 = vst [vmem:[%s264 + $0x418] sm:$0xff] %v527
                %v529 = vld [vmem:[%s263 + $0x1080] sm:$0xff]
                %530 = vst [vmem:[%s264 + $0x420] sm:$0xff] %v529
                %v531 = vld [vmem:[%s263 + $0x1088] sm:$0xff]
                %532 = vst [vmem:[%s264 + $0x428] sm:$0xff] %v531
                %v533 = vld [vmem:[%s263 + $0x1090] sm:$0xff]
                %534 = vst [vmem:[%s264 + $0x430] sm:$0xff] %v533
                %v535 = vld [vmem:[%s263 + $0x1098] sm:$0xff]
                %536 = vst [vmem:[%s264 + $0x438] sm:$0xff] %v535
                %v537 = vld [vmem:[%s263 + $0x1100] sm:$0xff]
                %538 = vst [vmem:[%s264 + $0x440] sm:$0xff] %v537
                %v539 = vld [vmem:[%s263 + $0x1108] sm:$0xff]
                %540 = vst [vmem:[%s264 + $0x448] sm:$0xff] %v539
                %v541 = vld [vmem:[%s263 + $0x1110] sm:$0xff]
                %542 = vst [vmem:[%s264 + $0x450] sm:$0xff] %v541
                %v543 = vld [vmem:[%s263 + $0x1118] sm:$0xff]
                %544 = vst [vmem:[%s264 + $0x458] sm:$0xff] %v543
                %v545 = vld [vmem:[%s263 + $0x1180] sm:$0xff]
                %546 = vst [vmem:[%s264 + $0x460] sm:$0xff] %v545
                %v547 = vld [vmem:[%s263 + $0x1188] sm:$0xff]
                %548 = vst [vmem:[%s264 + $0x468] sm:$0xff] %v547
                %v549 = vld [vmem:[%s263 + $0x1190] sm:$0xff]
                %550 = vst [vmem:[%s264 + $0x470] sm:$0xff] %v549
                %v551 = vld [vmem:[%s263 + $0x1198] sm:$0xff]
                %552 = vst [vmem:[%s264 + $0x478] sm:$0xff] %v551
                %v553 = vld [vmem:[%s263 + $0x1200] sm:$0xff]
                %554 = vst [vmem:[%s264 + $0x480] sm:$0xff] %v553
                %v555 = vld [vmem:[%s263 + $0x1208] sm:$0xff]
                %556 = vst [vmem:[%s264 + $0x488] sm:$0xff] %v555
                %v557 = vld [vmem:[%s263 + $0x1210] sm:$0xff]
                %558 = vst [vmem:[%s264 + $0x490] sm:$0xff] %v557
                %v559 = vld [vmem:[%s263 + $0x1218] sm:$0xff]
                %560 = vst [vmem:[%s264 + $0x498] sm:$0xff] %v559
                %v561 = vld [vmem:[%s263 + $0x1280] sm:$0xff]
                %562 = vst [vmem:[%s264 + $0x4a0] sm:$0xff] %v561
                %v563 = vld [vmem:[%s263 + $0x1288] sm:$0xff]
                %564 = vst [vmem:[%s264 + $0x4a8] sm:$0xff] %v563
                %v565 = vld [vmem:[%s263 + $0x1290] sm:$0xff]
                %566 = vst [vmem:[%s264 + $0x4b0] sm:$0xff] %v565
                %v567 = vld [vmem:[%s263 + $0x1298] sm:$0xff]
                %568 = vst [vmem:[%s264 + $0x4b8] sm:$0xff] %v567
                %v569 = vld [vmem:[%s263 + $0x1300] sm:$0xff]
                %570 = vst [vmem:[%s264 + $0x4c0] sm:$0xff] %v569
                %v571 = vld [vmem:[%s263 + $0x1308] sm:$0xff]
                %572 = vst [vmem:[%s264 + $0x4c8] sm:$0xff] %v571
                %v573 = vld [vmem:[%s263 + $0x1310] sm:$0xff]
                %574 = vst [vmem:[%s264 + $0x4d0] sm:$0xff] %v573
                %v575 = vld [vmem:[%s263 + $0x1318] sm:$0xff]
                %576 = vst [vmem:[%s264 + $0x4d8] sm:$0xff] %v575
                %v577 = vld [vmem:[%s263 + $0x1380] sm:$0xff]
                %578 = vst [vmem:[%s264 + $0x4e0] sm:$0xff] %v577
                %v579 = vld [vmem:[%s263 + $0x1388] sm:$0xff]
                %580 = vst [vmem:[%s264 + $0x4e8] sm:$0xff] %v579
                %v581 = vld [vmem:[%s263 + $0x1390] sm:$0xff]
                %582 = vst [vmem:[%s264 + $0x4f0] sm:$0xff] %v581
                %v583 = vld [vmem:[%s263 + $0x1398] sm:$0xff]
                %584 = vst [vmem:[%s264 + $0x4f8] sm:$0xff] %v583
                %v585 = vld [vmem:[%s263 + $0x1400] sm:$0xff]
                %586 = vst [vmem:[%s264 + $0x500] sm:$0xff] %v585
                %v587 = vld [vmem:[%s263 + $0x1408] sm:$0xff]
                %588 = vst [vmem:[%s264 + $0x508] sm:$0xff] %v587
                %v589 = vld [vmem:[%s263 + $0x1410] sm:$0xff]
                %590 = vst [vmem:[%s264 + $0x510] sm:$0xff] %v589
                %v591 = vld [vmem:[%s263 + $0x1418] sm:$0xff]
                %592 = vst [vmem:[%s264 + $0x518] sm:$0xff] %v591
                %v593 = vld [vmem:[%s263 + $0x1480] sm:$0xff]
                %594 = vst [vmem:[%s264 + $0x520] sm:$0xff] %v593
                %v595 = vld [vmem:[%s263 + $0x1488] sm:$0xff]
                %596 = vst [vmem:[%s264 + $0x528] sm:$0xff] %v595
                %v597 = vld [vmem:[%s263 + $0x1490] sm:$0xff]
                %598 = vst [vmem:[%s264 + $0x530] sm:$0xff] %v597
                %v599 = vld [vmem:[%s263 + $0x1498] sm:$0xff]
                %600 = vst [vmem:[%s264 + $0x538] sm:$0xff] %v599
                %v601 = vld [vmem:[%s263 + $0x1500] sm:$0xff]
                %602 = vst [vmem:[%s264 + $0x540] sm:$0xff] %v601
                %v603 = vld [vmem:[%s263 + $0x1508] sm:$0xff]
                %604 = vst [vmem:[%s264 + $0x548] sm:$0xff] %v603
                %v605 = vld [vmem:[%s263 + $0x1510] sm:$0xff]
                %606 = vst [vmem:[%s264 + $0x550] sm:$0xff] %v605
                %v607 = vld [vmem:[%s263 + $0x1518] sm:$0xff]
                %608 = vst [vmem:[%s264 + $0x558] sm:$0xff] %v607
                %v609 = vld [vmem:[%s263 + $0x1580] sm:$0xff]
                %610 = vst [vmem:[%s264 + $0x560] sm:$0xff] %v609
                %v611 = vld [vmem:[%s263 + $0x1588] sm:$0xff]
                %612 = vst [vmem:[%s264 + $0x568] sm:$0xff] %v611
                %v613 = vld [vmem:[%s263 + $0x1590] sm:$0xff]
                %614 = vst [vmem:[%s264 + $0x570] sm:$0xff] %v613
                %v615 = vld [vmem:[%s263 + $0x1598] sm:$0xff]
                %616 = vst [vmem:[%s264 + $0x578] sm:$0xff] %v615
                %v617 = vld [vmem:[%s263 + $0x1600] sm:$0xff]
                %618 = vst [vmem:[%s264 + $0x580] sm:$0xff] %v617
                %v619 = vld [vmem:[%s263 + $0x1608] sm:$0xff]
                %620 = vst [vmem:[%s264 + $0x588] sm:$0xff] %v619
                %v621 = vld [vmem:[%s263 + $0x1610] sm:$0xff]
                %622 = vst [vmem:[%s264 + $0x590] sm:$0xff] %v621
                %v623 = vld [vmem:[%s263 + $0x1618] sm:$0xff]
                %624 = vst [vmem:[%s264 + $0x598] sm:$0xff] %v623
                %v625 = vld [vmem:[%s263 + $0x1680] sm:$0xff]
                %626 = vst [vmem:[%s264 + $0x5a0] sm:$0xff] %v625
                %v627 = vld [vmem:[%s263 + $0x1688] sm:$0xff]
                %628 = vst [vmem:[%s264 + $0x5a8] sm:$0xff] %v627
                %v629 = vld [vmem:[%s263 + $0x1690] sm:$0xff]
                %630 = vst [vmem:[%s264 + $0x5b0] sm:$0xff] %v629
                %v631 = vld [vmem:[%s263 + $0x1698] sm:$0xff]
                %632 = vst [vmem:[%s264 + $0x5b8] sm:$0xff] %v631
                %v633 = vld [vmem:[%s263 + $0x1700] sm:$0xff]
                %634 = vst [vmem:[%s264 + $0x5c0] sm:$0xff] %v633
                %v635 = vld [vmem:[%s263 + $0x1708] sm:$0xff]
                %636 = vst [vmem:[%s264 + $0x5c8] sm:$0xff] %v635
                %v637 = vld [vmem:[%s263 + $0x1710] sm:$0xff]
                %638 = vst [vmem:[%s264 + $0x5d0] sm:$0xff] %v637
                %v639 = vld [vmem:[%s263 + $0x1718] sm:$0xff]
                %640 = vst [vmem:[%s264 + $0x5d8] sm:$0xff] %v639
                %v641 = vld [vmem:[%s263 + $0x1780] sm:$0xff]
                %642 = vst [vmem:[%s264 + $0x5e0] sm:$0xff] %v641
                %v643 = vld [vmem:[%s263 + $0x1788] sm:$0xff]
                %644 = vst [vmem:[%s264 + $0x5e8] sm:$0xff] %v643
                %v645 = vld [vmem:[%s263 + $0x1790] sm:$0xff]
                %646 = vst [vmem:[%s264 + $0x5f0] sm:$0xff] %v645
                %v647 = vld [vmem:[%s263 + $0x1798] sm:$0xff]
                %648 = vst [vmem:[%s264 + $0x5f8] sm:$0xff] %v647
                %v649 = vld [vmem:[%s263 + $0x1800] sm:$0xff]
                %650 = vst [vmem:[%s264 + $0x600] sm:$0xff] %v649
                %v651 = vld [vmem:[%s263 + $0x1808] sm:$0xff]
                %652 = vst [vmem:[%s264 + $0x608] sm:$0xff] %v651
                %v653 = vld [vmem:[%s263 + $0x1810] sm:$0xff]
                %654 = vst [vmem:[%s264 + $0x610] sm:$0xff] %v653
                %v655 = vld [vmem:[%s263 + $0x1818] sm:$0xff]
                %656 = vst [vmem:[%s264 + $0x618] sm:$0xff] %v655
                %v657 = vld [vmem:[%s263 + $0x1880] sm:$0xff]
                %658 = vst [vmem:[%s264 + $0x620] sm:$0xff] %v657
                %v659 = vld [vmem:[%s263 + $0x1888] sm:$0xff]
                %660 = vst [vmem:[%s264 + $0x628] sm:$0xff] %v659
                %v661 = vld [vmem:[%s263 + $0x1890] sm:$0xff]
                %662 = vst [vmem:[%s264 + $0x630] sm:$0xff] %v661
                %v663 = vld [vmem:[%s263 + $0x1898] sm:$0xff]
                %664 = vst [vmem:[%s264 + $0x638] sm:$0xff] %v663
                %v665 = vld [vmem:[%s263 + $0x1900] sm:$0xff]
                %666 = vst [vmem:[%s264 + $0x640] sm:$0xff] %v665
                %v667 = vld [vmem:[%s263 + $0x1908] sm:$0xff]
                %668 = vst [vmem:[%s264 + $0x648] sm:$0xff] %v667
                %v669 = vld [vmem:[%s263 + $0x1910] sm:$0xff]
                %670 = vst [vmem:[%s264 + $0x650] sm:$0xff] %v669
                %v671 = vld [vmem:[%s263 + $0x1918] sm:$0xff]
                %672 = vst [vmem:[%s264 + $0x658] sm:$0xff] %v671
                %v673 = vld [vmem:[%s263 + $0x1980] sm:$0xff]
                %674 = vst [vmem:[%s264 + $0x660] sm:$0xff] %v673
                %v675 = vld [vmem:[%s263 + $0x1988] sm:$0xff]
                %676 = vst [vmem:[%s264 + $0x668] sm:$0xff] %v675
                %v677 = vld [vmem:[%s263 + $0x1990] sm:$0xff]
                %678 = vst [vmem:[%s264 + $0x670] sm:$0xff] %v677
                %v679 = vld [vmem:[%s263 + $0x1998] sm:$0xff]
                %680 = vst [vmem:[%s264 + $0x678] sm:$0xff] %v679
                %v681 = vld [vmem:[%s263 + $0x1a00] sm:$0xff]
                %682 = vst [vmem:[%s264 + $0x680] sm:$0xff] %v681
                %v683 = vld [vmem:[%s263 + $0x1a08] sm:$0xff]
                %684 = vst [vmem:[%s264 + $0x688] sm:$0xff] %v683
                %v685 = vld [vmem:[%s263 + $0x1a10] sm:$0xff]
                %686 = vst [vmem:[%s264 + $0x690] sm:$0xff] %v685
                %v687 = vld [vmem:[%s263 + $0x1a18] sm:$0xff]
                %688 = vst [vmem:[%s264 + $0x698] sm:$0xff] %v687
                %v689 = vld [vmem:[%s263 + $0x1a80] sm:$0xff]
                %690 = vst [vmem:[%s264 + $0x6a0] sm:$0xff] %v689
                %v691 = vld [vmem:[%s263 + $0x1a88] sm:$0xff]
                %692 = vst [vmem:[%s264 + $0x6a8] sm:$0xff] %v691
                %v693 = vld [vmem:[%s263 + $0x1a90] sm:$0xff]
                %694 = vst [vmem:[%s264 + $0x6b0] sm:$0xff] %v693
                %v695 = vld [vmem:[%s263 + $0x1a98] sm:$0xff]
                %696 = vst [vmem:[%s264 + $0x6b8] sm:$0xff] %v695
                %v697 = vld [vmem:[%s263 + $0x1b00] sm:$0xff]
                %698 = vst [vmem:[%s264 + $0x6c0] sm:$0xff] %v697
                %v699 = vld [vmem:[%s263 + $0x1b08] sm:$0xff]
                %700 = vst [vmem:[%s264 + $0x6c8] sm:$0xff] %v699
                %v701 = vld [vmem:[%s263 + $0x1b10] sm:$0xff]
                %702 = vst [vmem:[%s264 + $0x6d0] sm:$0xff] %v701
                %v703 = vld [vmem:[%s263 + $0x1b18] sm:$0xff]
                %704 = vst [vmem:[%s264 + $0x6d8] sm:$0xff] %v703
                %v705 = vld [vmem:[%s263 + $0x1b80] sm:$0xff]
                %706 = vst [vmem:[%s264 + $0x6e0] sm:$0xff] %v705
                %v707 = vld [vmem:[%s263 + $0x1b88] sm:$0xff]
                %708 = vst [vmem:[%s264 + $0x6e8] sm:$0xff] %v707
                %v709 = vld [vmem:[%s263 + $0x1b90] sm:$0xff]
                %710 = vst [vmem:[%s264 + $0x6f0] sm:$0xff] %v709
                %v711 = vld [vmem:[%s263 + $0x1b98] sm:$0xff]
                %712 = vst [vmem:[%s264 + $0x6f8] sm:$0xff] %v711
                %v713 = vld [vmem:[%s263 + $0x1c00] sm:$0xff]
                %714 = vst [vmem:[%s264 + $0x700] sm:$0xff] %v713
                %v715 = vld [vmem:[%s263 + $0x1c08] sm:$0xff]
                %716 = vst [vmem:[%s264 + $0x708] sm:$0xff] %v715
                %v717 = vld [vmem:[%s263 + $0x1c10] sm:$0xff]
                %718 = vst [vmem:[%s264 + $0x710] sm:$0xff] %v717
                %v719 = vld [vmem:[%s263 + $0x1c18] sm:$0xff]
                %720 = vst [vmem:[%s264 + $0x718] sm:$0xff] %v719
                %v721 = vld [vmem:[%s263 + $0x1c80] sm:$0xff]
                %722 = vst [vmem:[%s264 + $0x720] sm:$0xff] %v721
                %v723 = vld [vmem:[%s263 + $0x1c88] sm:$0xff]
                %724 = vst [vmem:[%s264 + $0x728] sm:$0xff] %v723
                %v725 = vld [vmem:[%s263 + $0x1c90] sm:$0xff]
                %726 = vst [vmem:[%s264 + $0x730] sm:$0xff] %v725
                %v727 = vld [vmem:[%s263 + $0x1c98] sm:$0xff]
                %728 = vst [vmem:[%s264 + $0x738] sm:$0xff] %v727
                %v729 = vld [vmem:[%s263 + $0x1d00] sm:$0xff]
                %730 = vst [vmem:[%s264 + $0x740] sm:$0xff] %v729
                %v731 = vld [vmem:[%s263 + $0x1d08] sm:$0xff]
                %732 = vst [vmem:[%s264 + $0x748] sm:$0xff] %v731
                %v733 = vld [vmem:[%s263 + $0x1d10] sm:$0xff]
                %734 = vst [vmem:[%s264 + $0x750] sm:$0xff] %v733
                %v735 = vld [vmem:[%s263 + $0x1d18] sm:$0xff]
                %736 = vst [vmem:[%s264 + $0x758] sm:$0xff] %v735
                %v737 = vld [vmem:[%s263 + $0x1d80] sm:$0xff]
                %738 = vst [vmem:[%s264 + $0x760] sm:$0xff] %v737
                %v739 = vld [vmem:[%s263 + $0x1d88] sm:$0xff]
                %740 = vst [vmem:[%s264 + $0x768] sm:$0xff] %v739
                %v741 = vld [vmem:[%s263 + $0x1d90] sm:$0xff]
                %742 = vst [vmem:[%s264 + $0x770] sm:$0xff] %v741
                %v743 = vld [vmem:[%s263 + $0x1d98] sm:$0xff]
                %744 = vst [vmem:[%s264 + $0x778] sm:$0xff] %v743
                %v745 = vld [vmem:[%s263 + $0x1e00] sm:$0xff]
                %746 = vst [vmem:[%s264 + $0x780] sm:$0xff] %v745
                %v747 = vld [vmem:[%s263 + $0x1e08] sm:$0xff]
                %748 = vst [vmem:[%s264 + $0x788] sm:$0xff] %v747
                %v749 = vld [vmem:[%s263 + $0x1e10] sm:$0xff]
                %750 = vst [vmem:[%s264 + $0x790] sm:$0xff] %v749
                %v751 = vld [vmem:[%s263 + $0x1e18] sm:$0xff]
                %752 = vst [vmem:[%s264 + $0x798] sm:$0xff] %v751
                %v753 = vld [vmem:[%s263 + $0x1e80] sm:$0xff]
                %754 = vst [vmem:[%s264 + $0x7a0] sm:$0xff] %v753
                %v755 = vld [vmem:[%s263 + $0x1e88] sm:$0xff]
                %756 = vst [vmem:[%s264 + $0x7a8] sm:$0xff] %v755
                %v757 = vld [vmem:[%s263 + $0x1e90] sm:$0xff]
                %758 = vst [vmem:[%s264 + $0x7b0] sm:$0xff] %v757
                %v759 = vld [vmem:[%s263 + $0x1e98] sm:$0xff]
                %760 = vst [vmem:[%s264 + $0x7b8] sm:$0xff] %v759
                %v761 = vld [vmem:[%s263 + $0x1f00] sm:$0xff]
                %762 = vst [vmem:[%s264 + $0x7c0] sm:$0xff] %v761
                %v763 = vld [vmem:[%s263 + $0x1f08] sm:$0xff]
                %764 = vst [vmem:[%s264 + $0x7c8] sm:$0xff] %v763
                %v765 = vld [vmem:[%s263 + $0x1f10] sm:$0xff]
                %766 = vst [vmem:[%s264 + $0x7d0] sm:$0xff] %v765
                %v767 = vld [vmem:[%s263 + $0x1f18] sm:$0xff]
                %768 = vst [vmem:[%s264 + $0x7d8] sm:$0xff] %v767
                %v769 = vld [vmem:[%s263 + $0x1f80] sm:$0xff]
                %770 = vst [vmem:[%s264 + $0x7e0] sm:$0xff] %v769
                %v771 = vld [vmem:[%s263 + $0x1f88] sm:$0xff]
                %772 = vst [vmem:[%s264 + $0x7e8] sm:$0xff] %v771
                %v773 = vld [vmem:[%s263 + $0x1f90] sm:$0xff]
                %774 = vst [vmem:[%s264 + $0x7f0] sm:$0xff] %v773
                %v775 = vld [vmem:[%s263 + $0x1f98] sm:$0xff]
                %776 = vst [vmem:[%s264 + $0x7f8] sm:$0xff] %v775
                %v777 = vld [vmem:[%s263 + $0x2000] sm:$0xff]
                %778 = vst [vmem:[%s264 + $0x800] sm:$0xff] %v777
                %v779 = vld [vmem:[%s263 + $0x2008] sm:$0xff]
                %780 = vst [vmem:[%s264 + $0x808] sm:$0xff] %v779
                %v781 = vld [vmem:[%s263 + $0x2010] sm:$0xff]
                %782 = vst [vmem:[%s264 + $0x810] sm:$0xff] %v781
                %v783 = vld [vmem:[%s263 + $0x2018] sm:$0xff]
                %784 = vst [vmem:[%s264 + $0x818] sm:$0xff] %v783
                %v785 = vld [vmem:[%s263 + $0x2080] sm:$0xff]
                %786 = vst [vmem:[%s264 + $0x820] sm:$0xff] %v785
                %v787 = vld [vmem:[%s263 + $0x2088] sm:$0xff]
                %788 = vst [vmem:[%s264 + $0x828] sm:$0xff] %v787
                %v789 = vld [vmem:[%s263 + $0x2090] sm:$0xff]
                %790 = vst [vmem:[%s264 + $0x830] sm:$0xff] %v789
                %v791 = vld [vmem:[%s263 + $0x2098] sm:$0xff]
                %792 = vst [vmem:[%s264 + $0x838] sm:$0xff] %v791
                %v793 = vld [vmem:[%s263 + $0x2100] sm:$0xff]
                %794 = vst [vmem:[%s264 + $0x840] sm:$0xff] %v793
                %v795 = vld [vmem:[%s263 + $0x2108] sm:$0xff]
                %796 = vst [vmem:[%s264 + $0x848] sm:$0xff] %v795
                %v797 = vld [vmem:[%s263 + $0x2110] sm:$0xff]
                %798 = vst [vmem:[%s264 + $0x850] sm:$0xff] %v797
                %v799 = vld [vmem:[%s263 + $0x2118] sm:$0xff]
                %800 = vst [vmem:[%s264 + $0x858] sm:$0xff] %v799
                %v801 = vld [vmem:[%s263 + $0x2180] sm:$0xff]
                %802 = vst [vmem:[%s264 + $0x860] sm:$0xff] %v801
                %v803 = vld [vmem:[%s263 + $0x2188] sm:$0xff]
                %804 = vst [vmem:[%s264 + $0x868] sm:$0xff] %v803
                %v805 = vld [vmem:[%s263 + $0x2190] sm:$0xff]
                %806 = vst [vmem:[%s264 + $0x870] sm:$0xff] %v805
                %v807 = vld [vmem:[%s263 + $0x2198] sm:$0xff]
                %808 = vst [vmem:[%s264 + $0x878] sm:$0xff] %v807
                %v809 = vld [vmem:[%s263 + $0x2200] sm:$0xff]
                %810 = vst [vmem:[%s264 + $0x880] sm:$0xff] %v809
                %v811 = vld [vmem:[%s263 + $0x2208] sm:$0xff]
                %812 = vst [vmem:[%s264 + $0x888] sm:$0xff] %v811
                %v813 = vld [vmem:[%s263 + $0x2210] sm:$0xff]
                %814 = vst [vmem:[%s264 + $0x890] sm:$0xff] %v813
                %v815 = vld [vmem:[%s263 + $0x2218] sm:$0xff]
                %816 = vst [vmem:[%s264 + $0x898] sm:$0xff] %v815
                %v817 = vld [vmem:[%s263 + $0x2280] sm:$0xff]
                %818 = vst [vmem:[%s264 + $0x8a0] sm:$0xff] %v817
                %v819 = vld [vmem:[%s263 + $0x2288] sm:$0xff]
                %820 = vst [vmem:[%s264 + $0x8a8] sm:$0xff] %v819
                %v821 = vld [vmem:[%s263 + $0x2290] sm:$0xff]
                %822 = vst [vmem:[%s264 + $0x8b0] sm:$0xff] %v821
                %v823 = vld [vmem:[%s263 + $0x2298] sm:$0xff]
                %824 = vst [vmem:[%s264 + $0x8b8] sm:$0xff] %v823
                %v825 = vld [vmem:[%s263 + $0x2300] sm:$0xff]
                %826 = vst [vmem:[%s264 + $0x8c0] sm:$0xff] %v825
                %v827 = vld [vmem:[%s263 + $0x2308] sm:$0xff]
                %828 = vst [vmem:[%s264 + $0x8c8] sm:$0xff] %v827
                %v829 = vld [vmem:[%s263 + $0x2310] sm:$0xff]
                %830 = vst [vmem:[%s264 + $0x8d0] sm:$0xff] %v829
                %v831 = vld [vmem:[%s263 + $0x2318] sm:$0xff]
                %832 = vst [vmem:[%s264 + $0x8d8] sm:$0xff] %v831
                %v833 = vld [vmem:[%s263 + $0x2380] sm:$0xff]
                %834 = vst [vmem:[%s264 + $0x8e0] sm:$0xff] %v833
                %v835 = vld [vmem:[%s263 + $0x2388] sm:$0xff]
                %836 = vst [vmem:[%s264 + $0x8e8] sm:$0xff] %v835
                %v837 = vld [vmem:[%s263 + $0x2390] sm:$0xff]
                %838 = vst [vmem:[%s264 + $0x8f0] sm:$0xff] %v837
                %v839 = vld [vmem:[%s263 + $0x2398] sm:$0xff]
                %840 = vst [vmem:[%s264 + $0x8f8] sm:$0xff] %v839
                %v841 = vld [vmem:[%s263 + $0x2400] sm:$0xff]
                %842 = vst [vmem:[%s264 + $0x900] sm:$0xff] %v841
                %v843 = vld [vmem:[%s263 + $0x2408] sm:$0xff]
                %844 = vst [vmem:[%s264 + $0x908] sm:$0xff] %v843
                %v845 = vld [vmem:[%s263 + $0x2410] sm:$0xff]
                %846 = vst [vmem:[%s264 + $0x910] sm:$0xff] %v845
                %v847 = vld [vmem:[%s263 + $0x2418] sm:$0xff]
                %848 = vst [vmem:[%s264 + $0x918] sm:$0xff] %v847
                %v849 = vld [vmem:[%s263 + $0x2480] sm:$0xff]
                %850 = vst [vmem:[%s264 + $0x920] sm:$0xff] %v849
                %v851 = vld [vmem:[%s263 + $0x2488] sm:$0xff]
                %852 = vst [vmem:[%s264 + $0x928] sm:$0xff] %v851
                %v853 = vld [vmem:[%s263 + $0x2490] sm:$0xff]
                %854 = vst [vmem:[%s264 + $0x930] sm:$0xff] %v853
                %v855 = vld [vmem:[%s263 + $0x2498] sm:$0xff]
                %856 = vst [vmem:[%s264 + $0x938] sm:$0xff] %v855
                %v857 = vld [vmem:[%s263 + $0x2500] sm:$0xff]
                %858 = vst [vmem:[%s264 + $0x940] sm:$0xff] %v857
                %v859 = vld [vmem:[%s263 + $0x2508] sm:$0xff]
                %860 = vst [vmem:[%s264 + $0x948] sm:$0xff] %v859
                %v861 = vld [vmem:[%s263 + $0x2510] sm:$0xff]
                %862 = vst [vmem:[%s264 + $0x950] sm:$0xff] %v861
                %v863 = vld [vmem:[%s263 + $0x2518] sm:$0xff]
                %864 = vst [vmem:[%s264 + $0x958] sm:$0xff] %v863
                %v865 = vld [vmem:[%s263 + $0x2580] sm:$0xff]
                %866 = vst [vmem:[%s264 + $0x960] sm:$0xff] %v865
                %v867 = vld [vmem:[%s263 + $0x2588] sm:$0xff]
                %868 = vst [vmem:[%s264 + $0x968] sm:$0xff] %v867
                %v869 = vld [vmem:[%s263 + $0x2590] sm:$0xff]
                %870 = vst [vmem:[%s264 + $0x970] sm:$0xff] %v869
                %v871 = vld [vmem:[%s263 + $0x2598] sm:$0xff]
                %872 = vst [vmem:[%s264 + $0x978] sm:$0xff] %v871
                %v873 = vld [vmem:[%s263 + $0x2600] sm:$0xff]
                %874 = vst [vmem:[%s264 + $0x980] sm:$0xff] %v873
                %v875 = vld [vmem:[%s263 + $0x2608] sm:$0xff]
                %876 = vst [vmem:[%s264 + $0x988] sm:$0xff] %v875
                %v877 = vld [vmem:[%s263 + $0x2610] sm:$0xff]
                %878 = vst [vmem:[%s264 + $0x990] sm:$0xff] %v877
                %v879 = vld [vmem:[%s263 + $0x2618] sm:$0xff]
                %880 = vst [vmem:[%s264 + $0x998] sm:$0xff] %v879
                %v881 = vld [vmem:[%s263 + $0x2680] sm:$0xff]
                %882 = vst [vmem:[%s264 + $0x9a0] sm:$0xff] %v881
                %v883 = vld [vmem:[%s263 + $0x2688] sm:$0xff]
                %884 = vst [vmem:[%s264 + $0x9a8] sm:$0xff] %v883
                %v885 = vld [vmem:[%s263 + $0x2690] sm:$0xff]
                %886 = vst [vmem:[%s264 + $0x9b0] sm:$0xff] %v885
                %v887 = vld [vmem:[%s263 + $0x2698] sm:$0xff]
                %888 = vst [vmem:[%s264 + $0x9b8] sm:$0xff] %v887
                %v889 = vld [vmem:[%s263 + $0x2700] sm:$0xff]
                %890 = vst [vmem:[%s264 + $0x9c0] sm:$0xff] %v889
                %v891 = vld [vmem:[%s263 + $0x2708] sm:$0xff]
                %892 = vst [vmem:[%s264 + $0x9c8] sm:$0xff] %v891
                %v893 = vld [vmem:[%s263 + $0x2710] sm:$0xff]
                %894 = vst [vmem:[%s264 + $0x9d0] sm:$0xff] %v893
                %v895 = vld [vmem:[%s263 + $0x2718] sm:$0xff]
                %896 = vst [vmem:[%s264 + $0x9d8] sm:$0xff] %v895
                %v897 = vld [vmem:[%s263 + $0x2780] sm:$0xff]
                %898 = vst [vmem:[%s264 + $0x9e0] sm:$0xff] %v897
                %v899 = vld [vmem:[%s263 + $0x2788] sm:$0xff]
                %900 = vst [vmem:[%s264 + $0x9e8] sm:$0xff] %v899
                %v901 = vld [vmem:[%s263 + $0x2790] sm:$0xff]
                %902 = vst [vmem:[%s264 + $0x9f0] sm:$0xff] %v901
                %v903 = vld [vmem:[%s263 + $0x2798] sm:$0xff]
                %904 = vst [vmem:[%s264 + $0x9f8] sm:$0xff] %v903
                %v905 = vld [vmem:[%s263 + $0x2800] sm:$0xff]
                %906 = vst [vmem:[%s264 + $0xa00] sm:$0xff] %v905
                %v907 = vld [vmem:[%s263 + $0x2808] sm:$0xff]
                %908 = vst [vmem:[%s264 + $0xa08] sm:$0xff] %v907
                %v909 = vld [vmem:[%s263 + $0x2810] sm:$0xff]
                %910 = vst [vmem:[%s264 + $0xa10] sm:$0xff] %v909
                %v911 = vld [vmem:[%s263 + $0x2818] sm:$0xff]
                %912 = vst [vmem:[%s264 + $0xa18] sm:$0xff] %v911
                %v913 = vld [vmem:[%s263 + $0x2880] sm:$0xff]
                %914 = vst [vmem:[%s264 + $0xa20] sm:$0xff] %v913
                %v915 = vld [vmem:[%s263 + $0x2888] sm:$0xff]
                %916 = vst [vmem:[%s264 + $0xa28] sm:$0xff] %v915
                %v917 = vld [vmem:[%s263 + $0x2890] sm:$0xff]
                %918 = vst [vmem:[%s264 + $0xa30] sm:$0xff] %v917
                %v919 = vld [vmem:[%s263 + $0x2898] sm:$0xff]
                %920 = vst [vmem:[%s264 + $0xa38] sm:$0xff] %v919
                %v921 = vld [vmem:[%s263 + $0x2900] sm:$0xff]
                %922 = vst [vmem:[%s264 + $0xa40] sm:$0xff] %v921
                %v923 = vld [vmem:[%s263 + $0x2908] sm:$0xff]
                %924 = vst [vmem:[%s264 + $0xa48] sm:$0xff] %v923
                %v925 = vld [vmem:[%s263 + $0x2910] sm:$0xff]
                %926 = vst [vmem:[%s264 + $0xa50] sm:$0xff] %v925
                %v927 = vld [vmem:[%s263 + $0x2918] sm:$0xff]
                %928 = vst [vmem:[%s264 + $0xa58] sm:$0xff] %v927
                %v929 = vld [vmem:[%s263 + $0x2980] sm:$0xff]
                %930 = vst [vmem:[%s264 + $0xa60] sm:$0xff] %v929
                %v931 = vld [vmem:[%s263 + $0x2988] sm:$0xff]
                %932 = vst [vmem:[%s264 + $0xa68] sm:$0xff] %v931
                %v933 = vld [vmem:[%s263 + $0x2990] sm:$0xff]
                %934 = vst [vmem:[%s264 + $0xa70] sm:$0xff] %v933
                %v935 = vld [vmem:[%s263 + $0x2998] sm:$0xff]
                %936 = vst [vmem:[%s264 + $0xa78] sm:$0xff] %v935
                %v937 = vld [vmem:[%s263 + $0x2a00] sm:$0xff]
                %938 = vst [vmem:[%s264 + $0xa80] sm:$0xff] %v937
                %v939 = vld [vmem:[%s263 + $0x2a08] sm:$0xff]
                %940 = vst [vmem:[%s264 + $0xa88] sm:$0xff] %v939
                %v941 = vld [vmem:[%s263 + $0x2a10] sm:$0xff]
                %942 = vst [vmem:[%s264 + $0xa90] sm:$0xff] %v941
                %v943 = vld [vmem:[%s263 + $0x2a18] sm:$0xff]
                %944 = vst [vmem:[%s264 + $0xa98] sm:$0xff] %v943
                %v945 = vld [vmem:[%s263 + $0x2a80] sm:$0xff]
                %946 = vst [vmem:[%s264 + $0xaa0] sm:$0xff] %v945
                %v947 = vld [vmem:[%s263 + $0x2a88] sm:$0xff]
                %948 = vst [vmem:[%s264 + $0xaa8] sm:$0xff] %v947
                %v949 = vld [vmem:[%s263 + $0x2a90] sm:$0xff]
                %950 = vst [vmem:[%s264 + $0xab0] sm:$0xff] %v949
                %v951 = vld [vmem:[%s263 + $0x2a98] sm:$0xff]
                %952 = vst [vmem:[%s264 + $0xab8] sm:$0xff] %v951
                %v953 = vld [vmem:[%s263 + $0x2b00] sm:$0xff]
                %954 = vst [vmem:[%s264 + $0xac0] sm:$0xff] %v953
                %v955 = vld [vmem:[%s263 + $0x2b08] sm:$0xff]
                %956 = vst [vmem:[%s264 + $0xac8] sm:$0xff] %v955
                %v957 = vld [vmem:[%s263 + $0x2b10] sm:$0xff]
                %958 = vst [vmem:[%s264 + $0xad0] sm:$0xff] %v957
                %v959 = vld [vmem:[%s263 + $0x2b18] sm:$0xff]
                %960 = vst [vmem:[%s264 + $0xad8] sm:$0xff] %v959
                %v961 = vld [vmem:[%s263 + $0x2b80] sm:$0xff]
                %962 = vst [vmem:[%s264 + $0xae0] sm:$0xff] %v961
                %v963 = vld [vmem:[%s263 + $0x2b88] sm:$0xff]
                %964 = vst [vmem:[%s264 + $0xae8] sm:$0xff] %v963
                %v965 = vld [vmem:[%s263 + $0x2b90] sm:$0xff]
                %966 = vst [vmem:[%s264 + $0xaf0] sm:$0xff] %v965
                %v967 = vld [vmem:[%s263 + $0x2b98] sm:$0xff]
                %968 = vst [vmem:[%s264 + $0xaf8] sm:$0xff] %v967
                %v969 = vld [vmem:[%s263 + $0x2c00] sm:$0xff]
                %970 = vst [vmem:[%s264 + $0xb00] sm:$0xff] %v969
                %v971 = vld [vmem:[%s263 + $0x2c08] sm:$0xff]
                %972 = vst [vmem:[%s264 + $0xb08] sm:$0xff] %v971
                %v973 = vld [vmem:[%s263 + $0x2c10] sm:$0xff]
                %974 = vst [vmem:[%s264 + $0xb10] sm:$0xff] %v973
                %v975 = vld [vmem:[%s263 + $0x2c18] sm:$0xff]
                %976 = vst [vmem:[%s264 + $0xb18] sm:$0xff] %v975
                %v977 = vld [vmem:[%s263 + $0x2c80] sm:$0xff]
                %978 = vst [vmem:[%s264 + $0xb20] sm:$0xff] %v977
                %v979 = vld [vmem:[%s263 + $0x2c88] sm:$0xff]
                %980 = vst [vmem:[%s264 + $0xb28] sm:$0xff] %v979
                %v981 = vld [vmem:[%s263 + $0x2c90] sm:$0xff]
                %982 = vst [vmem:[%s264 + $0xb30] sm:$0xff] %v981
                %v983 = vld [vmem:[%s263 + $0x2c98] sm:$0xff]
                %984 = vst [vmem:[%s264 + $0xb38] sm:$0xff] %v983
                %v985 = vld [vmem:[%s263 + $0x2d00] sm:$0xff]
                %986 = vst [vmem:[%s264 + $0xb40] sm:$0xff] %v985
                %v987 = vld [vmem:[%s263 + $0x2d08] sm:$0xff]
                %988 = vst [vmem:[%s264 + $0xb48] sm:$0xff] %v987
                %v989 = vld [vmem:[%s263 + $0x2d10] sm:$0xff]
                %990 = vst [vmem:[%s264 + $0xb50] sm:$0xff] %v989
                %v991 = vld [vmem:[%s263 + $0x2d18] sm:$0xff]
                %992 = vst [vmem:[%s264 + $0xb58] sm:$0xff] %v991
                %v993 = vld [vmem:[%s263 + $0x2d80] sm:$0xff]
                %994 = vst [vmem:[%s264 + $0xb60] sm:$0xff] %v993
                %v995 = vld [vmem:[%s263 + $0x2d88] sm:$0xff]
                %996 = vst [vmem:[%s264 + $0xb68] sm:$0xff] %v995
                %v997 = vld [vmem:[%s263 + $0x2d90] sm:$0xff]
                %998 = vst [vmem:[%s264 + $0xb70] sm:$0xff] %v997
                %v999 = vld [vmem:[%s263 + $0x2d98] sm:$0xff]
                %1000 = vst [vmem:[%s264 + $0xb78] sm:$0xff] %v999
                %v1001 = vld [vmem:[%s263 + $0x2e00] sm:$0xff]
                %1002 = vst [vmem:[%s264 + $0xb80] sm:$0xff] %v1001
                %v1003 = vld [vmem:[%s263 + $0x2e08] sm:$0xff]
                %1004 = vst [vmem:[%s264 + $0xb88] sm:$0xff] %v1003
                %v1005 = vld [vmem:[%s263 + $0x2e10] sm:$0xff]
                %1006 = vst [vmem:[%s264 + $0xb90] sm:$0xff] %v1005
                %v1007 = vld [vmem:[%s263 + $0x2e18] sm:$0xff]
                %1008 = vst [vmem:[%s264 + $0xb98] sm:$0xff] %v1007
                %v1009 = vld [vmem:[%s263 + $0x2e80] sm:$0xff]
                %1010 = vst [vmem:[%s264 + $0xba0] sm:$0xff] %v1009
                %v1011 = vld [vmem:[%s263 + $0x2e88] sm:$0xff]
                %1012 = vst [vmem:[%s264 + $0xba8] sm:$0xff] %v1011
                %v1013 = vld [vmem:[%s263 + $0x2e90] sm:$0xff]
                %1014 = vst [vmem:[%s264 + $0xbb0] sm:$0xff] %v1013
                %v1015 = vld [vmem:[%s263 + $0x2e98] sm:$0xff]
                %1016 = vst [vmem:[%s264 + $0xbb8] sm:$0xff] %v1015
                %v1017 = vld [vmem:[%s263 + $0x2f00] sm:$0xff]
                %1018 = vst [vmem:[%s264 + $0xbc0] sm:$0xff] %v1017
                %v1019 = vld [vmem:[%s263 + $0x2f08] sm:$0xff]
                %1020 = vst [vmem:[%s264 + $0xbc8] sm:$0xff] %v1019
                %v1021 = vld [vmem:[%s263 + $0x2f10] sm:$0xff]
                %1022 = vst [vmem:[%s264 + $0xbd0] sm:$0xff] %v1021
                %v1023 = vld [vmem:[%s263 + $0x2f18] sm:$0xff]
                %1024 = vst [vmem:[%s264 + $0xbd8] sm:$0xff] %v1023
                %v1025 = vld [vmem:[%s263 + $0x2f80] sm:$0xff]
                %1026 = vst [vmem:[%s264 + $0xbe0] sm:$0xff] %v1025
                %v1027 = vld [vmem:[%s263 + $0x2f88] sm:$0xff]
                %1028 = vst [vmem:[%s264 + $0xbe8] sm:$0xff] %v1027
                %v1029 = vld [vmem:[%s263 + $0x2f90] sm:$0xff]
                %1030 = vst [vmem:[%s264 + $0xbf0] sm:$0xff] %v1029
                %v1031 = vld [vmem:[%s263 + $0x2f98] sm:$0xff]
                %1032 = vst [vmem:[%s264 + $0xbf8] sm:$0xff] %v1031
                %v1033 = vld [vmem:[%s263 + $0x3000] sm:$0xff]
                %1034 = vst [vmem:[%s264 + $0xc00] sm:$0xff] %v1033
                %v1035 = vld [vmem:[%s263 + $0x3008] sm:$0xff]
                %1036 = vst [vmem:[%s264 + $0xc08] sm:$0xff] %v1035
                %v1037 = vld [vmem:[%s263 + $0x3010] sm:$0xff]
                %1038 = vst [vmem:[%s264 + $0xc10] sm:$0xff] %v1037
                %v1039 = vld [vmem:[%s263 + $0x3018] sm:$0xff]
                %1040 = vst [vmem:[%s264 + $0xc18] sm:$0xff] %v1039
                %v1041 = vld [vmem:[%s263 + $0x3080] sm:$0xff]
                %1042 = vst [vmem:[%s264 + $0xc20] sm:$0xff] %v1041
                %v1043 = vld [vmem:[%s263 + $0x3088] sm:$0xff]
                %1044 = vst [vmem:[%s264 + $0xc28] sm:$0xff] %v1043
                %v1045 = vld [vmem:[%s263 + $0x3090] sm:$0xff]
                %1046 = vst [vmem:[%s264 + $0xc30] sm:$0xff] %v1045
                %v1047 = vld [vmem:[%s263 + $0x3098] sm:$0xff]
                %1048 = vst [vmem:[%s264 + $0xc38] sm:$0xff] %v1047
                %v1049 = vld [vmem:[%s263 + $0x3100] sm:$0xff]
                %1050 = vst [vmem:[%s264 + $0xc40] sm:$0xff] %v1049
                %v1051 = vld [vmem:[%s263 + $0x3108] sm:$0xff]
                %1052 = vst [vmem:[%s264 + $0xc48] sm:$0xff] %v1051
                %v1053 = vld [vmem:[%s263 + $0x3110] sm:$0xff]
                %1054 = vst [vmem:[%s264 + $0xc50] sm:$0xff] %v1053
                %v1055 = vld [vmem:[%s263 + $0x3118] sm:$0xff]
                %1056 = vst [vmem:[%s264 + $0xc58] sm:$0xff] %v1055
                %v1057 = vld [vmem:[%s263 + $0x3180] sm:$0xff]
                %1058 = vst [vmem:[%s264 + $0xc60] sm:$0xff] %v1057
                %v1059 = vld [vmem:[%s263 + $0x3188] sm:$0xff]
                %1060 = vst [vmem:[%s264 + $0xc68] sm:$0xff] %v1059
                %v1061 = vld [vmem:[%s263 + $0x3190] sm:$0xff]
                %1062 = vst [vmem:[%s264 + $0xc70] sm:$0xff] %v1061
                %v1063 = vld [vmem:[%s263 + $0x3198] sm:$0xff]
                %1064 = vst [vmem:[%s264 + $0xc78] sm:$0xff] %v1063
                %v1065 = vld [vmem:[%s263 + $0x3200] sm:$0xff]
                %1066 = vst [vmem:[%s264 + $0xc80] sm:$0xff] %v1065
                %v1067 = vld [vmem:[%s263 + $0x3208] sm:$0xff]
                %1068 = vst [vmem:[%s264 + $0xc88] sm:$0xff] %v1067
                %v1069 = vld [vmem:[%s263 + $0x3210] sm:$0xff]
                %1070 = vst [vmem:[%s264 + $0xc90] sm:$0xff] %v1069
                %v1071 = vld [vmem:[%s263 + $0x3218] sm:$0xff]
                %1072 = vst [vmem:[%s264 + $0xc98] sm:$0xff] %v1071
                %v1073 = vld [vmem:[%s263 + $0x3280] sm:$0xff]
                %1074 = vst [vmem:[%s264 + $0xca0] sm:$0xff] %v1073
                %v1075 = vld [vmem:[%s263 + $0x3288] sm:$0xff]
                %1076 = vst [vmem:[%s264 + $0xca8] sm:$0xff] %v1075
                %v1077 = vld [vmem:[%s263 + $0x3290] sm:$0xff]
                %1078 = vst [vmem:[%s264 + $0xcb0] sm:$0xff] %v1077
                %v1079 = vld [vmem:[%s263 + $0x3298] sm:$0xff]
                %1080 = vst [vmem:[%s264 + $0xcb8] sm:$0xff] %v1079
                %v1081 = vld [vmem:[%s263 + $0x3300] sm:$0xff]
                %1082 = vst [vmem:[%s264 + $0xcc0] sm:$0xff] %v1081
                %v1083 = vld [vmem:[%s263 + $0x3308] sm:$0xff]
                %1084 = vst [vmem:[%s264 + $0xcc8] sm:$0xff] %v1083
                %v1085 = vld [vmem:[%s263 + $0x3310] sm:$0xff]
                %1086 = vst [vmem:[%s264 + $0xcd0] sm:$0xff] %v1085
                %v1087 = vld [vmem:[%s263 + $0x3318] sm:$0xff]
                %1088 = vst [vmem:[%s264 + $0xcd8] sm:$0xff] %v1087
                %v1089 = vld [vmem:[%s263 + $0x3380] sm:$0xff]
                %1090 = vst [vmem:[%s264 + $0xce0] sm:$0xff] %v1089
                %v1091 = vld [vmem:[%s263 + $0x3388] sm:$0xff]
                %1092 = vst [vmem:[%s264 + $0xce8] sm:$0xff] %v1091
                %v1093 = vld [vmem:[%s263 + $0x3390] sm:$0xff]
                %1094 = vst [vmem:[%s264 + $0xcf0] sm:$0xff] %v1093
                %v1095 = vld [vmem:[%s263 + $0x3398] sm:$0xff]
                %1096 = vst [vmem:[%s264 + $0xcf8] sm:$0xff] %v1095
                %v1097 = vld [vmem:[%s263 + $0x3400] sm:$0xff]
                %1098 = vst [vmem:[%s264 + $0xd00] sm:$0xff] %v1097
                %v1099 = vld [vmem:[%s263 + $0x3408] sm:$0xff]
                %1100 = vst [vmem:[%s264 + $0xd08] sm:$0xff] %v1099
                %v1101 = vld [vmem:[%s263 + $0x3410] sm:$0xff]
                %1102 = vst [vmem:[%s264 + $0xd10] sm:$0xff] %v1101
                %v1103 = vld [vmem:[%s263 + $0x3418] sm:$0xff]
                %1104 = vst [vmem:[%s264 + $0xd18] sm:$0xff] %v1103
                %v1105 = vld [vmem:[%s263 + $0x3480] sm:$0xff]
                %1106 = vst [vmem:[%s264 + $0xd20] sm:$0xff] %v1105
                %v1107 = vld [vmem:[%s263 + $0x3488] sm:$0xff]
                %1108 = vst [vmem:[%s264 + $0xd28] sm:$0xff] %v1107
                %v1109 = vld [vmem:[%s263 + $0x3490] sm:$0xff]
                %1110 = vst [vmem:[%s264 + $0xd30] sm:$0xff] %v1109
                %v1111 = vld [vmem:[%s263 + $0x3498] sm:$0xff]
                %1112 = vst [vmem:[%s264 + $0xd38] sm:$0xff] %v1111
                %v1113 = vld [vmem:[%s263 + $0x3500] sm:$0xff]
                %1114 = vst [vmem:[%s264 + $0xd40] sm:$0xff] %v1113
                %v1115 = vld [vmem:[%s263 + $0x3508] sm:$0xff]
                %1116 = vst [vmem:[%s264 + $0xd48] sm:$0xff] %v1115
                %v1117 = vld [vmem:[%s263 + $0x3510] sm:$0xff]
                %1118 = vst [vmem:[%s264 + $0xd50] sm:$0xff] %v1117
                %v1119 = vld [vmem:[%s263 + $0x3518] sm:$0xff]
                %1120 = vst [vmem:[%s264 + $0xd58] sm:$0xff] %v1119
                %v1121 = vld [vmem:[%s263 + $0x3580] sm:$0xff]
                %1122 = vst [vmem:[%s264 + $0xd60] sm:$0xff] %v1121
                %v1123 = vld [vmem:[%s263 + $0x3588] sm:$0xff]
                %1124 = vst [vmem:[%s264 + $0xd68] sm:$0xff] %v1123
                %v1125 = vld [vmem:[%s263 + $0x3590] sm:$0xff]
                %1126 = vst [vmem:[%s264 + $0xd70] sm:$0xff] %v1125
                %v1127 = vld [vmem:[%s263 + $0x3598] sm:$0xff]
                %1128 = vst [vmem:[%s264 + $0xd78] sm:$0xff] %v1127
                %v1129 = vld [vmem:[%s263 + $0x3600] sm:$0xff]
                %1130 = vst [vmem:[%s264 + $0xd80] sm:$0xff] %v1129
                %v1131 = vld [vmem:[%s263 + $0x3608] sm:$0xff]
                %1132 = vst [vmem:[%s264 + $0xd88] sm:$0xff] %v1131
                %v1133 = vld [vmem:[%s263 + $0x3610] sm:$0xff]
                %1134 = vst [vmem:[%s264 + $0xd90] sm:$0xff] %v1133
                %v1135 = vld [vmem:[%s263 + $0x3618] sm:$0xff]
                %1136 = vst [vmem:[%s264 + $0xd98] sm:$0xff] %v1135
                %v1137 = vld [vmem:[%s263 + $0x3680] sm:$0xff]
                %1138 = vst [vmem:[%s264 + $0xda0] sm:$0xff] %v1137
                %v1139 = vld [vmem:[%s263 + $0x3688] sm:$0xff]
                %1140 = vst [vmem:[%s264 + $0xda8] sm:$0xff] %v1139
                %v1141 = vld [vmem:[%s263 + $0x3690] sm:$0xff]
                %1142 = vst [vmem:[%s264 + $0xdb0] sm:$0xff] %v1141
                %v1143 = vld [vmem:[%s263 + $0x3698] sm:$0xff]
                %1144 = vst [vmem:[%s264 + $0xdb8] sm:$0xff] %v1143
                %v1145 = vld [vmem:[%s263 + $0x3700] sm:$0xff]
                %1146 = vst [vmem:[%s264 + $0xdc0] sm:$0xff] %v1145
                %v1147 = vld [vmem:[%s263 + $0x3708] sm:$0xff]
                %1148 = vst [vmem:[%s264 + $0xdc8] sm:$0xff] %v1147
                %v1149 = vld [vmem:[%s263 + $0x3710] sm:$0xff]
                %1150 = vst [vmem:[%s264 + $0xdd0] sm:$0xff] %v1149
                %v1151 = vld [vmem:[%s263 + $0x3718] sm:$0xff]
                %1152 = vst [vmem:[%s264 + $0xdd8] sm:$0xff] %v1151
                %v1153 = vld [vmem:[%s263 + $0x3780] sm:$0xff]
                %1154 = vst [vmem:[%s264 + $0xde0] sm:$0xff] %v1153
                %v1155 = vld [vmem:[%s263 + $0x3788] sm:$0xff]
                %1156 = vst [vmem:[%s264 + $0xde8] sm:$0xff] %v1155
                %v1157 = vld [vmem:[%s263 + $0x3790] sm:$0xff]
                %1158 = vst [vmem:[%s264 + $0xdf0] sm:$0xff] %v1157
                %v1159 = vld [vmem:[%s263 + $0x3798] sm:$0xff]
                %1160 = vst [vmem:[%s264 + $0xdf8] sm:$0xff] %v1159
                %v1161 = vld [vmem:[%s263 + $0x3800] sm:$0xff]
                %1162 = vst [vmem:[%s264 + $0xe00] sm:$0xff] %v1161
                %v1163 = vld [vmem:[%s263 + $0x3808] sm:$0xff]
                %1164 = vst [vmem:[%s264 + $0xe08] sm:$0xff] %v1163
                %v1165 = vld [vmem:[%s263 + $0x3810] sm:$0xff]
                %1166 = vst [vmem:[%s264 + $0xe10] sm:$0xff] %v1165
                %v1167 = vld [vmem:[%s263 + $0x3818] sm:$0xff]
                %1168 = vst [vmem:[%s264 + $0xe18] sm:$0xff] %v1167
                %v1169 = vld [vmem:[%s263 + $0x3880] sm:$0xff]
                %1170 = vst [vmem:[%s264 + $0xe20] sm:$0xff] %v1169
                %v1171 = vld [vmem:[%s263 + $0x3888] sm:$0xff]
                %1172 = vst [vmem:[%s264 + $0xe28] sm:$0xff] %v1171
                %v1173 = vld [vmem:[%s263 + $0x3890] sm:$0xff]
                %1174 = vst [vmem:[%s264 + $0xe30] sm:$0xff] %v1173
                %v1175 = vld [vmem:[%s263 + $0x3898] sm:$0xff]
                %1176 = vst [vmem:[%s264 + $0xe38] sm:$0xff] %v1175
                %v1177 = vld [vmem:[%s263 + $0x3900] sm:$0xff]
                %1178 = vst [vmem:[%s264 + $0xe40] sm:$0xff] %v1177
                %v1179 = vld [vmem:[%s263 + $0x3908] sm:$0xff]
                %1180 = vst [vmem:[%s264 + $0xe48] sm:$0xff] %v1179
                %v1181 = vld [vmem:[%s263 + $0x3910] sm:$0xff]
                %1182 = vst [vmem:[%s264 + $0xe50] sm:$0xff] %v1181
                %v1183 = vld [vmem:[%s263 + $0x3918] sm:$0xff]
                %1184 = vst [vmem:[%s264 + $0xe58] sm:$0xff] %v1183
                %v1185 = vld [vmem:[%s263 + $0x3980] sm:$0xff]
                %1186 = vst [vmem:[%s264 + $0xe60] sm:$0xff] %v1185
                %v1187 = vld [vmem:[%s263 + $0x3988] sm:$0xff]
                %1188 = vst [vmem:[%s264 + $0xe68] sm:$0xff] %v1187
                %v1189 = vld [vmem:[%s263 + $0x3990] sm:$0xff]
                %1190 = vst [vmem:[%s264 + $0xe70] sm:$0xff] %v1189
                %v1191 = vld [vmem:[%s263 + $0x3998] sm:$0xff]
                %1192 = vst [vmem:[%s264 + $0xe78] sm:$0xff] %v1191
                %v1193 = vld [vmem:[%s263 + $0x3a00] sm:$0xff]
                %1194 = vst [vmem:[%s264 + $0xe80] sm:$0xff] %v1193
                %v1195 = vld [vmem:[%s263 + $0x3a08] sm:$0xff]
                %1196 = vst [vmem:[%s264 + $0xe88] sm:$0xff] %v1195
                %v1197 = vld [vmem:[%s263 + $0x3a10] sm:$0xff]
                %1198 = vst [vmem:[%s264 + $0xe90] sm:$0xff] %v1197
                %v1199 = vld [vmem:[%s263 + $0x3a18] sm:$0xff]
                %1200 = vst [vmem:[%s264 + $0xe98] sm:$0xff] %v1199
                %v1201 = vld [vmem:[%s263 + $0x3a80] sm:$0xff]
                %1202 = vst [vmem:[%s264 + $0xea0] sm:$0xff] %v1201
                %v1203 = vld [vmem:[%s263 + $0x3a88] sm:$0xff]
                %1204 = vst [vmem:[%s264 + $0xea8] sm:$0xff] %v1203
                %v1205 = vld [vmem:[%s263 + $0x3a90] sm:$0xff]
                %1206 = vst [vmem:[%s264 + $0xeb0] sm:$0xff] %v1205
                %v1207 = vld [vmem:[%s263 + $0x3a98] sm:$0xff]
                %1208 = vst [vmem:[%s264 + $0xeb8] sm:$0xff] %v1207
                %v1209 = vld [vmem:[%s263 + $0x3b00] sm:$0xff]
                %1210 = vst [vmem:[%s264 + $0xec0] sm:$0xff] %v1209
                %v1211 = vld [vmem:[%s263 + $0x3b08] sm:$0xff]
                %1212 = vst [vmem:[%s264 + $0xec8] sm:$0xff] %v1211
                %v1213 = vld [vmem:[%s263 + $0x3b10] sm:$0xff]
                %1214 = vst [vmem:[%s264 + $0xed0] sm:$0xff] %v1213
                %v1215 = vld [vmem:[%s263 + $0x3b18] sm:$0xff]
                %1216 = vst [vmem:[%s264 + $0xed8] sm:$0xff] %v1215
                %v1217 = vld [vmem:[%s263 + $0x3b80] sm:$0xff]
                %1218 = vst [vmem:[%s264 + $0xee0] sm:$0xff] %v1217
                %v1219 = vld [vmem:[%s263 + $0x3b88] sm:$0xff]
                %1220 = vst [vmem:[%s264 + $0xee8] sm:$0xff] %v1219
                %v1221 = vld [vmem:[%s263 + $0x3b90] sm:$0xff]
                %1222 = vst [vmem:[%s264 + $0xef0] sm:$0xff] %v1221
                %v1223 = vld [vmem:[%s263 + $0x3b98] sm:$0xff]
                %1224 = vst [vmem:[%s264 + $0xef8] sm:$0xff] %v1223
                %v1225 = vld [vmem:[%s263 + $0x3c00] sm:$0xff]
                %1226 = vst [vmem:[%s264 + $0xf00] sm:$0xff] %v1225
                %v1227 = vld [vmem:[%s263 + $0x3c08] sm:$0xff]
                %1228 = vst [vmem:[%s264 + $0xf08] sm:$0xff] %v1227
                %v1229 = vld [vmem:[%s263 + $0x3c10] sm:$0xff]
                %1230 = vst [vmem:[%s264 + $0xf10] sm:$0xff] %v1229
                %v1231 = vld [vmem:[%s263 + $0x3c18] sm:$0xff]
                %1232 = vst [vmem:[%s264 + $0xf18] sm:$0xff] %v1231
                %v1233 = vld [vmem:[%s263 + $0x3c80] sm:$0xff]
                %1234 = vst [vmem:[%s264 + $0xf20] sm:$0xff] %v1233
                %v1235 = vld [vmem:[%s263 + $0x3c88] sm:$0xff]
                %1236 = vst [vmem:[%s264 + $0xf28] sm:$0xff] %v1235
                %v1237 = vld [vmem:[%s263 + $0x3c90] sm:$0xff]
                %1238 = vst [vmem:[%s264 + $0xf30] sm:$0xff] %v1237
                %v1239 = vld [vmem:[%s263 + $0x3c98] sm:$0xff]
                %1240 = vst [vmem:[%s264 + $0xf38] sm:$0xff] %v1239
                %v1241 = vld [vmem:[%s263 + $0x3d00] sm:$0xff]
                %1242 = vst [vmem:[%s264 + $0xf40] sm:$0xff] %v1241
                %v1243 = vld [vmem:[%s263 + $0x3d08] sm:$0xff]
                %1244 = vst [vmem:[%s264 + $0xf48] sm:$0xff] %v1243
                %v1245 = vld [vmem:[%s263 + $0x3d10] sm:$0xff]
                %1246 = vst [vmem:[%s264 + $0xf50] sm:$0xff] %v1245
                %v1247 = vld [vmem:[%s263 + $0x3d18] sm:$0xff]
                %1248 = vst [vmem:[%s264 + $0xf58] sm:$0xff] %v1247
                %v1249 = vld [vmem:[%s263 + $0x3d80] sm:$0xff]
                %1250 = vst [vmem:[%s264 + $0xf60] sm:$0xff] %v1249
                %v1251 = vld [vmem:[%s263 + $0x3d88] sm:$0xff]
                %1252 = vst [vmem:[%s264 + $0xf68] sm:$0xff] %v1251
                %v1253 = vld [vmem:[%s263 + $0x3d90] sm:$0xff]
                %1254 = vst [vmem:[%s264 + $0xf70] sm:$0xff] %v1253
                %v1255 = vld [vmem:[%s263 + $0x3d98] sm:$0xff]
                %1256 = vst [vmem:[%s264 + $0xf78] sm:$0xff] %v1255
                %v1257 = vld [vmem:[%s263 + $0x3e00] sm:$0xff]
                %1258 = vst [vmem:[%s264 + $0xf80] sm:$0xff] %v1257
                %v1259 = vld [vmem:[%s263 + $0x3e08] sm:$0xff]
                %1260 = vst [vmem:[%s264 + $0xf88] sm:$0xff] %v1259
                %v1261 = vld [vmem:[%s263 + $0x3e10] sm:$0xff]
                %1262 = vst [vmem:[%s264 + $0xf90] sm:$0xff] %v1261
                %v1263 = vld [vmem:[%s263 + $0x3e18] sm:$0xff]
                %1264 = vst [vmem:[%s264 + $0xf98] sm:$0xff] %v1263
                %v1265 = vld [vmem:[%s263 + $0x3e80] sm:$0xff]
                %1266 = vst [vmem:[%s264 + $0xfa0] sm:$0xff] %v1265
                %v1267 = vld [vmem:[%s263 + $0x3e88] sm:$0xff]
                %1268 = vst [vmem:[%s264 + $0xfa8] sm:$0xff] %v1267
                %v1269 = vld [vmem:[%s263 + $0x3e90] sm:$0xff]
                %1270 = vst [vmem:[%s264 + $0xfb0] sm:$0xff] %v1269
                %v1271 = vld [vmem:[%s263 + $0x3e98] sm:$0xff]
                %1272 = vst [vmem:[%s264 + $0xfb8] sm:$0xff] %v1271
                %v1273 = vld [vmem:[%s263 + $0x3f00] sm:$0xff]
                %1274 = vst [vmem:[%s264 + $0xfc0] sm:$0xff] %v1273
                %v1275 = vld [vmem:[%s263 + $0x3f08] sm:$0xff]
                %1276 = vst [vmem:[%s264 + $0xfc8] sm:$0xff] %v1275
                %v1277 = vld [vmem:[%s263 + $0x3f10] sm:$0xff]
                %1278 = vst [vmem:[%s264 + $0xfd0] sm:$0xff] %v1277
                %v1279 = vld [vmem:[%s263 + $0x3f18] sm:$0xff]
                %1280 = vst [vmem:[%s264 + $0xfd8] sm:$0xff] %v1279
                %v1281 = vld [vmem:[%s263 + $0x3f80] sm:$0xff]
                %1282 = vst [vmem:[%s264 + $0xfe0] sm:$0xff] %v1281
                %v1283 = vld [vmem:[%s263 + $0x3f88] sm:$0xff]
                %1284 = vst [vmem:[%s264 + $0xfe8] sm:$0xff] %v1283
                %v1285 = vld [vmem:[%s263 + $0x3f90] sm:$0xff]
                %1286 = vst [vmem:[%s264 + $0xff0] sm:$0xff] %v1285
                %v1287 = vld [vmem:[%s263 + $0x3f98] sm:$0xff]
                %1288 = vst [vmem:[%s264 + $0xff8] sm:$0xff] %v1287
              $region37: #{linear_add_add.1} parent=31 // loop_footer
                %s262 = sadd.s32 1, %s258
              $region38: #{linear_add_add.1} parent=31 // loop_footer_branch
                %257 = sbr.rel target = $region34
              $region39: #{linear_add_add.1} parent=31 // loop_exit
                _
            $region32: #{linear_add_add.1} parent=27 // pred_fallthru
              _
            // Predicated region
            $region40: #{linear_add_add.1} parent=27 // pred_check
              _
            $region41: #{linear_add_add.1} parent=27 // pred_check_branch
              %1290 = sbr.rel target = $region43
            $region42: #{linear_add_add.1} parent=27 // pred_region
              _
            $region43: #{linear_add_add.1} parent=27 // pred_fallthru
              _
          $region28: #{linear_add_add.1} parent=23 // pred_fallthru
            _
          %1291 = vnop
        $region24: #{linear_add_add.1} parent=19 // pred_fallthru
          _
        // Predicated region
        $region44: #{linear_add_add.1} parent=19 // pred_check
          %p1292 = pneg %p114
        $region45: #{linear_add_add.1} parent=19 // pred_check_branch
          %1294 = sbr.rel (%p1292) target = $region47
        $region46: #{linear_add_add.1} parent=19 // pred_region
          %s1295 = sand.u32 %s21, 1
          %s1296 = scalar_lea.sflag [#allocation8], %s1295
          %s1297 = sand.u32 %s104, 1
          %s1298 = smul.addr %s1297, 8
          %s1299 = scalar_lea.vmem [#allocation7], %s1298
          %s1300 = smul.u32 8, %s29
          %s1302 = ssub.s32 128, 128
          %1303 = vsyncadd %s1296, %s1302
          %s1304 = smul.addr %s1300, 16
          %s1305 = scalar_lea.hbm %s2, %s1304
          %s1307 = sshll.u32 %s1299, 4
          %s1308 = int_to_ptr.vmem [resolvable:$true] %s1307
          %1310 = dma.hbm_to_vmem [thread:$0]  %s1305, 128, %s1308, %s1296
        $region47: #{linear_add_add.1} parent=19 // pred_fallthru
          _
        // Predicated region
        $region48: #{linear_add_add.1} parent=19 // pred_check
          %p1311 = pneg %p142
        $region49: #{linear_add_add.1} parent=19 // pred_check_branch
          %1313 = sbr.rel (%p1311) target = $region51
        $region50: #{linear_add_add.1} parent=19 // pred_region
          %s1314 = sand.u32 %s21, 1
          %s1315 = scalar_lea.sflag [#allocation8], %s1314
          %s1316 = sand.u32 %s132, 1
          %s1317 = smul.addr %s1316, 128
          %s1318 = scalar_lea.vmem [#allocation9], %s1317
          %s1319 = smul.u32 2, %s28
          %s1320 = smul.u32 8, %s29
          %s1322 = ssub.s32 2048, 2048
          %1323 = vsyncadd %s1315, %s1322
          %s1324 = smul.addr %s1319, 32
          %s1325 = sadd.s32 %s1320, %s1324
          %s1326 = smul.addr %s1325, 128
          %s1327 = scalar_lea.hbm %s3, %s1326
          %s1328 = sshll.u32 %s1318, 4
          %s1329 = int_to_ptr.vmem [resolvable:$true] %s1328
          %1334 = dma.hbm_to_vmem [thread:$0]  %s1327, 2048, %s1329, %s1315, 4096, 1024, 64
        $region51: #{linear_add_add.1} parent=19 // pred_fallthru
          _
        // Predicated region
        $region52: #{linear_add_add.1} parent=19 // pred_check
          %p1335 = pneg %p170
        $region53: #{linear_add_add.1} parent=19 // pred_check_branch
          %1337 = sbr.rel (%p1335) target = $region55
        $region54: #{linear_add_add.1} parent=19 // pred_region
          %s1338 = sand.u32 %s160, 1
          %s1339 = scalar_lea.sflag [#allocation11], %s1338
          %s1340 = sand.u32 %s160, 1
          %s1341 = smul.addr %s1340, 128
          %s1342 = scalar_lea.vmem [#allocation10], %s1341
          %s1343 = smul.u32 2, %s28
          %s1344 = smul.u32 8, %s29
          %s1346 = ssub.s32 2048, 2048
          %1347 = vsyncadd %s1339, %s1346
          %s1348 = smul.addr %s1343, 32
          %s1349 = sadd.s32 %s1344, %s1348
          %s1350 = smul.addr %s1349, 128
          %s1351 = scalar_lea.hbm %s4, %s1350
          %s1352 = sshll.u32 %s1342, 4
          %s1353 = int_to_ptr.vmem [resolvable:$true] %s1352
          %1358 = dma.hbm_to_vmem [thread:$0]  %s1351, 2048, %s1353, %s1339, 4096, 1024, 64
        $region55: #{linear_add_add.1} parent=19 // pred_fallthru
          _
      $region20: #{linear_add_add.1} parent=5 // pred_fallthru
        _
      %p1359 = scmp.le.s32.totalorder 1, %s21
      %p1360 = scmp.lt.s32.totalorder %s21, 17
      %p1361 = pnand %p1359, %p1360
      %p1362 = pneg %p1361
      // Predicated region
      $region56: #{linear_add_add.1} parent=5 // pred_check
        _
      $region57: #{linear_add_add.1} parent=5 // pred_check_branch
        %1364 = sbr.rel (%p1361) target = $region59
      $region58: #{linear_add_add.1} parent=5 // pred_region
        %s1365 = ssub.s32 %s21, 1
        // Predicated region
        $region60: #{linear_add_add.1} parent=58 // pred_check
          %p1366 = pneg %p66
        $region61: #{linear_add_add.1} parent=58 // pred_check_branch
          %1368 = sbr.rel (%p1366) target = $region63
        $region62: #{linear_add_add.1} parent=58 // pred_region
          %1369 = dma.done [#allocation4], 4096
        $region63: #{linear_add_add.1} parent=58 // pred_fallthru
          _
        %s1370 = sand.u32 %s81, 1
        %s1371 = sand.u32 %s81, 1
        %s1372 = smul.addr %s1371, 4096
        %s1373 = scalar_lea.vmem [#allocation6], %s1372
        // Predicated region
        $region64: #{linear_add_add.1} parent=58 // pred_check
          %p1374 = pneg %p94
        $region65: #{linear_add_add.1} parent=58 // pred_check_branch
          %1376 = sbr.rel (%p1374) target = $region67
        $region66: #{linear_add_add.1} parent=58 // pred_region
          _
        $region67: #{linear_add_add.1} parent=58 // pred_fallthru
          _
        %s1377 = sand.u32 %s26, 1
        %s1378 = scalar_lea.sflag [#allocation8], %s1377
        %s1379 = sand.u32 %s107, 1
        %s1380 = smul.addr %s1379, 8
        %s1381 = scalar_lea.vmem [#allocation7], %s1380
        // Predicated region
        $region68: #{linear_add_add.1} parent=58 // pred_check
          %p1382 = pneg %p120
        $region69: #{linear_add_add.1} parent=58 // pred_check_branch
          %1384 = sbr.rel (%p1382) target = $region71
        $region70: #{linear_add_add.1} parent=58 // pred_region
          %1385 = dma.done %s1378, 128
        $region71: #{linear_add_add.1} parent=58 // pred_fallthru
          _
        %s1386 = sand.u32 %s26, 1
        %s1387 = scalar_lea.sflag [#allocation8], %s1386
        %s1388 = sand.u32 %s135, 1
        %s1389 = smul.addr %s1388, 128
        %s1390 = scalar_lea.vmem [#allocation9], %s1389
        // Predicated region
        $region72: #{linear_add_add.1} parent=58 // pred_check
          %p1391 = pneg %p148
        $region73: #{linear_add_add.1} parent=58 // pred_check_branch
          %1393 = sbr.rel (%p1391) target = $region75
        $region74: #{linear_add_add.1} parent=58 // pred_region
          %1394 = dma.done %s1387, 2048
        $region75: #{linear_add_add.1} parent=58 // pred_fallthru
          _
        %s1395 = sand.u32 %s163, 1
        %s1396 = scalar_lea.sflag [#allocation11], %s1395
        %s1397 = sand.u32 %s163, 1
        %s1398 = smul.addr %s1397, 128
        %s1399 = scalar_lea.vmem [#allocation10], %s1398
        // Predicated region
        $region76: #{linear_add_add.1} parent=58 // pred_check
          %p1400 = pneg %p176
        $region77: #{linear_add_add.1} parent=58 // pred_check_branch
          %1402 = sbr.rel (%p1400) target = $region79
        $region78: #{linear_add_add.1} parent=58 // pred_region
          %1403 = dma.done %s1396, 2048
        $region79: #{linear_add_add.1} parent=58 // pred_fallthru
          _
        %p1404 = pneg %p66
        %p1405 = pneg %p63
        %s1406 = sand.u32 %s81, 1
        %s1407 = sand.u32 %s81, 1
        %s1408 = smul.addr %s1407, 4096
        %s1409 = scalar_lea.vmem [#allocation6], %s1408
        %p1410 = pneg %p94
        %p1411 = pneg %p91
        %s1412 = sand.u32 %s26, 1
        %s1413 = scalar_lea.sflag [#allocation8], %s1412
        %s1414 = sand.u32 %s107, 1
        %s1415 = smul.addr %s1414, 8
        %s1416 = scalar_lea.vmem [#allocation7], %s1415
        %p1417 = pneg %p120
        %p1418 = pneg %p117
        %s1419 = sand.u32 %s26, 1
        %s1420 = scalar_lea.sflag [#allocation8], %s1419
        %s1421 = sand.u32 %s135, 1
        %s1422 = smul.addr %s1421, 128
        %s1423 = scalar_lea.vmem [#allocation9], %s1422
        %p1424 = pneg %p148
        %p1425 = pneg %p145
        %s1426 = sand.u32 %s163, 1
        %s1427 = scalar_lea.sflag [#allocation11], %s1426
        %s1428 = sand.u32 %s163, 1
        %s1429 = smul.addr %s1428, 128
        %s1430 = scalar_lea.vmem [#allocation10], %s1429
        %p1431 = pneg %p176
        %p1432 = pneg %p173
        %p1433 = pneg %p204
        %p1434 = pneg %p201
        %s1435 = sand.u32 %s191, 1
        %s1436 = scalar_lea.sflag [#allocation5], %s1435
        %s1437 = sand.u32 %s191, 1
        %s1438 = smul.addr %s1437, 128
        %s1439 = scalar_lea.vmem [#allocation12], %s1438
        %s1440 = smul.u32 2, %s31
        %s1441 = smul.u32 128, %s33
        %s1442 = smul.u32 8, %s32
        %s1443 = smul.u32 8, %s32
        %s1444 = smul.u32 2, %s31
        %s1445 = smul.u32 8, %s32
        %s1446 = smul.u32 2, %s31
        %s1447 = smul.u32 8, %s32
        %s1448 = smul.u32 2, %s31
        %s1449 = smul.u32 8, %s32
        %p1450 = scmp.eq.s32.totalorder %s33, 0
        // Predicated region
        $region80: #{linear_add_add.1} parent=58 // pred_check
          %p1451 = pneg %p1450
        $region81: #{linear_add_add.1} parent=58 // pred_check_branch
          %1453 = sbr.rel (%p1451) target = $region83
        $region82: #{linear_add_add.1} parent=58 // pred_region
          %1454 = vst [vmem:[#allocation2] sm:$0xff] 0.0
          %1455 = vst [vmem:[#allocation2 + $0x8] sm:$0xff] 0.0
          %1456 = vst [vmem:[#allocation2 + $0x10] sm:$0xff] 0.0
          %1457 = vst [vmem:[#allocation2 + $0x18] sm:$0xff] 0.0
          %1458 = vst [vmem:[#allocation2 + $0x20] sm:$0xff] 0.0
          %1459 = vst [vmem:[#allocation2 + $0x28] sm:$0xff] 0.0
          %1460 = vst [vmem:[#allocation2 + $0x30] sm:$0xff] 0.0
          %1461 = vst [vmem:[#allocation2 + $0x38] sm:$0xff] 0.0
          %1462 = vst [vmem:[#allocation2 + $0x40] sm:$0xff] 0.0
          %1463 = vst [vmem:[#allocation2 + $0x48] sm:$0xff] 0.0
          %1464 = vst [vmem:[#allocation2 + $0x50] sm:$0xff] 0.0
          %1465 = vst [vmem:[#allocation2 + $0x58] sm:$0xff] 0.0
          %1466 = vst [vmem:[#allocation2 + $0x60] sm:$0xff] 0.0
          %1467 = vst [vmem:[#allocation2 + $0x68] sm:$0xff] 0.0
          %1468 = vst [vmem:[#allocation2 + $0x70] sm:$0xff] 0.0
          %1469 = vst [vmem:[#allocation2 + $0x78] sm:$0xff] 0.0
        $region83: #{linear_add_add.1} parent=58 // pred_fallthru
          _
        %s1470 = smul.u32 %s33, 1024
        %s1471 = sshra.s32 %s1470, 7
        %s1472 = sand.u32 %s1470, 127
        %s1473 = smul.addr %s1471, 4
        %s1474 = scalar_lea.vmem [#allocation3], %s1473
        %v1475 = vld [vmem:[%s1474] sm:$0xff]
        %v1476 = vld [vmem:[%s1474 + $0x8] sm:$0xff]
        %v1477 = vld [vmem:[%s1474 + $0x10] sm:$0xff]
        %v1478 = vld [vmem:[%s1474 + $0x18] sm:$0xff]
        %v1479 = vld [vmem:[%s1474 + $0x80] sm:$0xff]
        %v1480 = vld [vmem:[%s1474 + $0x88] sm:$0xff]
        %v1481 = vld [vmem:[%s1474 + $0x90] sm:$0xff]
        %v1482 = vld [vmem:[%s1474 + $0x98] sm:$0xff]
        %v1483 = vld [vmem:[#allocation2] sm:$0xff]
        %v1484 = vld [vmem:[#allocation2 + $0x8] sm:$0xff]
        %v1485 = vld [vmem:[#allocation2 + $0x10] sm:$0xff]
        %v1486 = vld [vmem:[#allocation2 + $0x18] sm:$0xff]
        %v1487 = vld [vmem:[#allocation2 + $0x20] sm:$0xff]
        %v1488 = vld [vmem:[#allocation2 + $0x28] sm:$0xff]
        %v1489 = vld [vmem:[#allocation2 + $0x30] sm:$0xff]
        %v1490 = vld [vmem:[#allocation2 + $0x38] sm:$0xff]
        %v1491 = vld [vmem:[#allocation2 + $0x40] sm:$0xff]
        %v1492 = vld [vmem:[#allocation2 + $0x48] sm:$0xff]
        %v1493 = vld [vmem:[#allocation2 + $0x50] sm:$0xff]
        %v1494 = vld [vmem:[#allocation2 + $0x58] sm:$0xff]
        %v1495 = vld [vmem:[#allocation2 + $0x60] sm:$0xff]
        %v1496 = vld [vmem:[#allocation2 + $0x68] sm:$0xff]
        %v1497 = vld [vmem:[#allocation2 + $0x70] sm:$0xff]
        %v1498 = vld [vmem:[#allocation2 + $0x78] sm:$0xff]
        %v1499 = vld [vmem:[%s1373] sm:$0xff]
        %v1500 = vld [vmem:[%s1373 + $0x8] sm:$0xff]
        %v1501 = vld [vmem:[%s1373 + $0x10] sm:$0xff]
        %v1502 = vld [vmem:[%s1373 + $0x18] sm:$0xff]
        %v1503 = vld [vmem:[%s1373 + $0x20] sm:$0xff]
        %v1504 = vld [vmem:[%s1373 + $0x28] sm:$0xff]
        %v1505 = vld [vmem:[%s1373 + $0x30] sm:$0xff]
        %v1506 = vld [vmem:[%s1373 + $0x38] sm:$0xff]
        %v1507 = vld [vmem:[%s1373 + $0x40] sm:$0xff]
        %v1508 = vld [vmem:[%s1373 + $0x48] sm:$0xff]
        %v1509 = vld [vmem:[%s1373 + $0x50] sm:$0xff]
        %v1510 = vld [vmem:[%s1373 + $0x58] sm:$0xff]
        %v1511 = vld [vmem:[%s1373 + $0x60] sm:$0xff]
        %v1512 = vld [vmem:[%s1373 + $0x68] sm:$0xff]
        %v1513 = vld [vmem:[%s1373 + $0x70] sm:$0xff]
        %v1514 = vld [vmem:[%s1373 + $0x78] sm:$0xff]
        %v1515 = vld [vmem:[%s1373 + $0x80] sm:$0xff]
        %v1516 = vld [vmem:[%s1373 + $0x88] sm:$0xff]
        %v1517 = vld [vmem:[%s1373 + $0x90] sm:$0xff]
        %v1518 = vld [vmem:[%s1373 + $0x98] sm:$0xff]
        %v1519 = vld [vmem:[%s1373 + $0xa0] sm:$0xff]
        %v1520 = vld [vmem:[%s1373 + $0xa8] sm:$0xff]
        %v1521 = vld [vmem:[%s1373 + $0xb0] sm:$0xff]
        %v1522 = vld [vmem:[%s1373 + $0xb8] sm:$0xff]
        %v1523 = vld [vmem:[%s1373 + $0xc0] sm:$0xff]
        %v1524 = vld [vmem:[%s1373 + $0xc8] sm:$0xff]
        %v1525 = vld [vmem:[%s1373 + $0xd0] sm:$0xff]
        %v1526 = vld [vmem:[%s1373 + $0xd8] sm:$0xff]
        %v1527 = vld [vmem:[%s1373 + $0xe0] sm:$0xff]
        %v1528 = vld [vmem:[%s1373 + $0xe8] sm:$0xff]
        %v1529 = vld [vmem:[%s1373 + $0xf0] sm:$0xff]
        %v1530 = vld [vmem:[%s1373 + $0xf8] sm:$0xff]
        %v1531 = vld [vmem:[%s1373 + $0x100] sm:$0xff]
        %v1532 = vld [vmem:[%s1373 + $0x108] sm:$0xff]
        %v1533 = vld [vmem:[%s1373 + $0x110] sm:$0xff]
        %v1534 = vld [vmem:[%s1373 + $0x118] sm:$0xff]
        %v1535 = vld [vmem:[%s1373 + $0x120] sm:$0xff]
        %v1536 = vld [vmem:[%s1373 + $0x128] sm:$0xff]
        %v1537 = vld [vmem:[%s1373 + $0x130] sm:$0xff]
        %v1538 = vld [vmem:[%s1373 + $0x138] sm:$0xff]
        %v1539 = vld [vmem:[%s1373 + $0x140] sm:$0xff]
        %v1540 = vld [vmem:[%s1373 + $0x148] sm:$0xff]
        %v1541 = vld [vmem:[%s1373 + $0x150] sm:$0xff]
        %v1542 = vld [vmem:[%s1373 + $0x158] sm:$0xff]
        %v1543 = vld [vmem:[%s1373 + $0x160] sm:$0xff]
        %v1544 = vld [vmem:[%s1373 + $0x168] sm:$0xff]
        %v1545 = vld [vmem:[%s1373 + $0x170] sm:$0xff]
        %v1546 = vld [vmem:[%s1373 + $0x178] sm:$0xff]
        %v1547 = vld [vmem:[%s1373 + $0x180] sm:$0xff]
        %v1548 = vld [vmem:[%s1373 + $0x188] sm:$0xff]
        %v1549 = vld [vmem:[%s1373 + $0x190] sm:$0xff]
        %v1550 = vld [vmem:[%s1373 + $0x198] sm:$0xff]
        %v1551 = vld [vmem:[%s1373 + $0x1a0] sm:$0xff]
        %v1552 = vld [vmem:[%s1373 + $0x1a8] sm:$0xff]
        %v1553 = vld [vmem:[%s1373 + $0x1b0] sm:$0xff]
        %v1554 = vld [vmem:[%s1373 + $0x1b8] sm:$0xff]
        %v1555 = vld [vmem:[%s1373 + $0x1c0] sm:$0xff]
        %v1556 = vld [vmem:[%s1373 + $0x1c8] sm:$0xff]
        %v1557 = vld [vmem:[%s1373 + $0x1d0] sm:$0xff]
        %v1558 = vld [vmem:[%s1373 + $0x1d8] sm:$0xff]
        %v1559 = vld [vmem:[%s1373 + $0x1e0] sm:$0xff]
        %v1560 = vld [vmem:[%s1373 + $0x1e8] sm:$0xff]
        %v1561 = vld [vmem:[%s1373 + $0x1f0] sm:$0xff]
        %v1562 = vld [vmem:[%s1373 + $0x1f8] sm:$0xff]
        %v1563 = vld [vmem:[%s1373 + $0x200] sm:$0xff]
        %v1564 = vld [vmem:[%s1373 + $0x208] sm:$0xff]
        %v1565 = vld [vmem:[%s1373 + $0x210] sm:$0xff]
        %v1566 = vld [vmem:[%s1373 + $0x218] sm:$0xff]
        %v1567 = vld [vmem:[%s1373 + $0x220] sm:$0xff]
        %v1568 = vld [vmem:[%s1373 + $0x228] sm:$0xff]
        %v1569 = vld [vmem:[%s1373 + $0x230] sm:$0xff]
        %v1570 = vld [vmem:[%s1373 + $0x238] sm:$0xff]
        %v1571 = vld [vmem:[%s1373 + $0x240] sm:$0xff]
        %v1572 = vld [vmem:[%s1373 + $0x248] sm:$0xff]
        %v1573 = vld [vmem:[%s1373 + $0x250] sm:$0xff]
        %v1574 = vld [vmem:[%s1373 + $0x258] sm:$0xff]
        %v1575 = vld [vmem:[%s1373 + $0x260] sm:$0xff]
        %v1576 = vld [vmem:[%s1373 + $0x268] sm:$0xff]
        %v1577 = vld [vmem:[%s1373 + $0x270] sm:$0xff]
        %v1578 = vld [vmem:[%s1373 + $0x278] sm:$0xff]
        %v1579 = vld [vmem:[%s1373 + $0x280] sm:$0xff]
        %v1580 = vld [vmem:[%s1373 + $0x288] sm:$0xff]
        %v1581 = vld [vmem:[%s1373 + $0x290] sm:$0xff]
        %v1582 = vld [vmem:[%s1373 + $0x298] sm:$0xff]
        %v1583 = vld [vmem:[%s1373 + $0x2a0] sm:$0xff]
        %v1584 = vld [vmem:[%s1373 + $0x2a8] sm:$0xff]
        %v1585 = vld [vmem:[%s1373 + $0x2b0] sm:$0xff]
        %v1586 = vld [vmem:[%s1373 + $0x2b8] sm:$0xff]
        %v1587 = vld [vmem:[%s1373 + $0x2c0] sm:$0xff]
        %v1588 = vld [vmem:[%s1373 + $0x2c8] sm:$0xff]
        %v1589 = vld [vmem:[%s1373 + $0x2d0] sm:$0xff]
        %v1590 = vld [vmem:[%s1373 + $0x2d8] sm:$0xff]
        %v1591 = vld [vmem:[%s1373 + $0x2e0] sm:$0xff]
        %v1592 = vld [vmem:[%s1373 + $0x2e8] sm:$0xff]
        %v1593 = vld [vmem:[%s1373 + $0x2f0] sm:$0xff]
        %v1594 = vld [vmem:[%s1373 + $0x2f8] sm:$0xff]
        %v1595 = vld [vmem:[%s1373 + $0x300] sm:$0xff]
        %v1596 = vld [vmem:[%s1373 + $0x308] sm:$0xff]
        %v1597 = vld [vmem:[%s1373 + $0x310] sm:$0xff]
        %v1598 = vld [vmem:[%s1373 + $0x318] sm:$0xff]
        %v1599 = vld [vmem:[%s1373 + $0x320] sm:$0xff]
        %v1600 = vld [vmem:[%s1373 + $0x328] sm:$0xff]
        %v1601 = vld [vmem:[%s1373 + $0x330] sm:$0xff]
        %v1602 = vld [vmem:[%s1373 + $0x338] sm:$0xff]
        %v1603 = vld [vmem:[%s1373 + $0x340] sm:$0xff]
        %v1604 = vld [vmem:[%s1373 + $0x348] sm:$0xff]
        %v1605 = vld [vmem:[%s1373 + $0x350] sm:$0xff]
        %v1606 = vld [vmem:[%s1373 + $0x358] sm:$0xff]
        %v1607 = vld [vmem:[%s1373 + $0x360] sm:$0xff]
        %v1608 = vld [vmem:[%s1373 + $0x368] sm:$0xff]
        %v1609 = vld [vmem:[%s1373 + $0x370] sm:$0xff]
        %v1610 = vld [vmem:[%s1373 + $0x378] sm:$0xff]
        %v1611 = vld [vmem:[%s1373 + $0x380] sm:$0xff]
        %v1612 = vld [vmem:[%s1373 + $0x388] sm:$0xff]
        %v1613 = vld [vmem:[%s1373 + $0x390] sm:$0xff]
        %v1614 = vld [vmem:[%s1373 + $0x398] sm:$0xff]
        %v1615 = vld [vmem:[%s1373 + $0x3a0] sm:$0xff]
        %v1616 = vld [vmem:[%s1373 + $0x3a8] sm:$0xff]
        %v1617 = vld [vmem:[%s1373 + $0x3b0] sm:$0xff]
        %v1618 = vld [vmem:[%s1373 + $0x3b8] sm:$0xff]
        %v1619 = vld [vmem:[%s1373 + $0x3c0] sm:$0xff]
        %v1620 = vld [vmem:[%s1373 + $0x3c8] sm:$0xff]
        %v1621 = vld [vmem:[%s1373 + $0x3d0] sm:$0xff]
        %v1622 = vld [vmem:[%s1373 + $0x3d8] sm:$0xff]
        %v1623 = vld [vmem:[%s1373 + $0x3e0] sm:$0xff]
        %v1624 = vld [vmem:[%s1373 + $0x3e8] sm:$0xff]
        %v1625 = vld [vmem:[%s1373 + $0x3f0] sm:$0xff]
        %v1626 = vld [vmem:[%s1373 + $0x3f8] sm:$0xff]
        %v1627 = vld [vmem:[%s1373 + $0x400] sm:$0xff]
        %v1628 = vld [vmem:[%s1373 + $0x408] sm:$0xff]
        %v1629 = vld [vmem:[%s1373 + $0x410] sm:$0xff]
        %v1630 = vld [vmem:[%s1373 + $0x418] sm:$0xff]
        %v1631 = vld [vmem:[%s1373 + $0x420] sm:$0xff]
        %v1632 = vld [vmem:[%s1373 + $0x428] sm:$0xff]
        %v1633 = vld [vmem:[%s1373 + $0x430] sm:$0xff]
        %v1634 = vld [vmem:[%s1373 + $0x438] sm:$0xff]
        %v1635 = vld [vmem:[%s1373 + $0x440] sm:$0xff]
        %v1636 = vld [vmem:[%s1373 + $0x448] sm:$0xff]
        %v1637 = vld [vmem:[%s1373 + $0x450] sm:$0xff]
        %v1638 = vld [vmem:[%s1373 + $0x458] sm:$0xff]
        %v1639 = vld [vmem:[%s1373 + $0x460] sm:$0xff]
        %v1640 = vld [vmem:[%s1373 + $0x468] sm:$0xff]
        %v1641 = vld [vmem:[%s1373 + $0x470] sm:$0xff]
        %v1642 = vld [vmem:[%s1373 + $0x478] sm:$0xff]
        %v1643 = vld [vmem:[%s1373 + $0x480] sm:$0xff]
        %v1644 = vld [vmem:[%s1373 + $0x488] sm:$0xff]
        %v1645 = vld [vmem:[%s1373 + $0x490] sm:$0xff]
        %v1646 = vld [vmem:[%s1373 + $0x498] sm:$0xff]
        %v1647 = vld [vmem:[%s1373 + $0x4a0] sm:$0xff]
        %v1648 = vld [vmem:[%s1373 + $0x4a8] sm:$0xff]
        %v1649 = vld [vmem:[%s1373 + $0x4b0] sm:$0xff]
        %v1650 = vld [vmem:[%s1373 + $0x4b8] sm:$0xff]
        %v1651 = vld [vmem:[%s1373 + $0x4c0] sm:$0xff]
        %v1652 = vld [vmem:[%s1373 + $0x4c8] sm:$0xff]
        %v1653 = vld [vmem:[%s1373 + $0x4d0] sm:$0xff]
        %v1654 = vld [vmem:[%s1373 + $0x4d8] sm:$0xff]
        %v1655 = vld [vmem:[%s1373 + $0x4e0] sm:$0xff]
        %v1656 = vld [vmem:[%s1373 + $0x4e8] sm:$0xff]
        %v1657 = vld [vmem:[%s1373 + $0x4f0] sm:$0xff]
        %v1658 = vld [vmem:[%s1373 + $0x4f8] sm:$0xff]
        %v1659 = vld [vmem:[%s1373 + $0x500] sm:$0xff]
        %v1660 = vld [vmem:[%s1373 + $0x508] sm:$0xff]
        %v1661 = vld [vmem:[%s1373 + $0x510] sm:$0xff]
        %v1662 = vld [vmem:[%s1373 + $0x518] sm:$0xff]
        %v1663 = vld [vmem:[%s1373 + $0x520] sm:$0xff]
        %v1664 = vld [vmem:[%s1373 + $0x528] sm:$0xff]
        %v1665 = vld [vmem:[%s1373 + $0x530] sm:$0xff]
        %v1666 = vld [vmem:[%s1373 + $0x538] sm:$0xff]
        %v1667 = vld [vmem:[%s1373 + $0x540] sm:$0xff]
        %v1668 = vld [vmem:[%s1373 + $0x548] sm:$0xff]
        %v1669 = vld [vmem:[%s1373 + $0x550] sm:$0xff]
        %v1670 = vld [vmem:[%s1373 + $0x558] sm:$0xff]
        %v1671 = vld [vmem:[%s1373 + $0x560] sm:$0xff]
        %v1672 = vld [vmem:[%s1373 + $0x568] sm:$0xff]
        %v1673 = vld [vmem:[%s1373 + $0x570] sm:$0xff]
        %v1674 = vld [vmem:[%s1373 + $0x578] sm:$0xff]
        %v1675 = vld [vmem:[%s1373 + $0x580] sm:$0xff]
        %v1676 = vld [vmem:[%s1373 + $0x588] sm:$0xff]
        %v1677 = vld [vmem:[%s1373 + $0x590] sm:$0xff]
        %v1678 = vld [vmem:[%s1373 + $0x598] sm:$0xff]
        %v1679 = vld [vmem:[%s1373 + $0x5a0] sm:$0xff]
        %v1680 = vld [vmem:[%s1373 + $0x5a8] sm:$0xff]
        %v1681 = vld [vmem:[%s1373 + $0x5b0] sm:$0xff]
        %v1682 = vld [vmem:[%s1373 + $0x5b8] sm:$0xff]
        %v1683 = vld [vmem:[%s1373 + $0x5c0] sm:$0xff]
        %v1684 = vld [vmem:[%s1373 + $0x5c8] sm:$0xff]
        %v1685 = vld [vmem:[%s1373 + $0x5d0] sm:$0xff]
        %v1686 = vld [vmem:[%s1373 + $0x5d8] sm:$0xff]
        %v1687 = vld [vmem:[%s1373 + $0x5e0] sm:$0xff]
        %v1688 = vld [vmem:[%s1373 + $0x5e8] sm:$0xff]
        %v1689 = vld [vmem:[%s1373 + $0x5f0] sm:$0xff]
        %v1690 = vld [vmem:[%s1373 + $0x5f8] sm:$0xff]
        %v1691 = vld [vmem:[%s1373 + $0x600] sm:$0xff]
        %v1692 = vld [vmem:[%s1373 + $0x608] sm:$0xff]
        %v1693 = vld [vmem:[%s1373 + $0x610] sm:$0xff]
        %v1694 = vld [vmem:[%s1373 + $0x618] sm:$0xff]
        %v1695 = vld [vmem:[%s1373 + $0x620] sm:$0xff]
        %v1696 = vld [vmem:[%s1373 + $0x628] sm:$0xff]
        %v1697 = vld [vmem:[%s1373 + $0x630] sm:$0xff]
        %v1698 = vld [vmem:[%s1373 + $0x638] sm:$0xff]
        %v1699 = vld [vmem:[%s1373 + $0x640] sm:$0xff]
        %v1700 = vld [vmem:[%s1373 + $0x648] sm:$0xff]
        %v1701 = vld [vmem:[%s1373 + $0x650] sm:$0xff]
        %v1702 = vld [vmem:[%s1373 + $0x658] sm:$0xff]
        %v1703 = vld [vmem:[%s1373 + $0x660] sm:$0xff]
        %v1704 = vld [vmem:[%s1373 + $0x668] sm:$0xff]
        %v1705 = vld [vmem:[%s1373 + $0x670] sm:$0xff]
        %v1706 = vld [vmem:[%s1373 + $0x678] sm:$0xff]
        %v1707 = vld [vmem:[%s1373 + $0x680] sm:$0xff]
        %v1708 = vld [vmem:[%s1373 + $0x688] sm:$0xff]
        %v1709 = vld [vmem:[%s1373 + $0x690] sm:$0xff]
        %v1710 = vld [vmem:[%s1373 + $0x698] sm:$0xff]
        %v1711 = vld [vmem:[%s1373 + $0x6a0] sm:$0xff]
        %v1712 = vld [vmem:[%s1373 + $0x6a8] sm:$0xff]
        %v1713 = vld [vmem:[%s1373 + $0x6b0] sm:$0xff]
        %v1714 = vld [vmem:[%s1373 + $0x6b8] sm:$0xff]
        %v1715 = vld [vmem:[%s1373 + $0x6c0] sm:$0xff]
        %v1716 = vld [vmem:[%s1373 + $0x6c8] sm:$0xff]
        %v1717 = vld [vmem:[%s1373 + $0x6d0] sm:$0xff]
        %v1718 = vld [vmem:[%s1373 + $0x6d8] sm:$0xff]
        %v1719 = vld [vmem:[%s1373 + $0x6e0] sm:$0xff]
        %v1720 = vld [vmem:[%s1373 + $0x6e8] sm:$0xff]
        %v1721 = vld [vmem:[%s1373 + $0x6f0] sm:$0xff]
        %v1722 = vld [vmem:[%s1373 + $0x6f8] sm:$0xff]
        %v1723 = vld [vmem:[%s1373 + $0x700] sm:$0xff]
        %v1724 = vld [vmem:[%s1373 + $0x708] sm:$0xff]
        %v1725 = vld [vmem:[%s1373 + $0x710] sm:$0xff]
        %v1726 = vld [vmem:[%s1373 + $0x718] sm:$0xff]
        %v1727 = vld [vmem:[%s1373 + $0x720] sm:$0xff]
        %v1728 = vld [vmem:[%s1373 + $0x728] sm:$0xff]
        %v1729 = vld [vmem:[%s1373 + $0x730] sm:$0xff]
        %v1730 = vld [vmem:[%s1373 + $0x738] sm:$0xff]
        %v1731 = vld [vmem:[%s1373 + $0x740] sm:$0xff]
        %v1732 = vld [vmem:[%s1373 + $0x748] sm:$0xff]
        %v1733 = vld [vmem:[%s1373 + $0x750] sm:$0xff]
        %v1734 = vld [vmem:[%s1373 + $0x758] sm:$0xff]
        %v1735 = vld [vmem:[%s1373 + $0x760] sm:$0xff]
        %v1736 = vld [vmem:[%s1373 + $0x768] sm:$0xff]
        %v1737 = vld [vmem:[%s1373 + $0x770] sm:$0xff]
        %v1738 = vld [vmem:[%s1373 + $0x778] sm:$0xff]
        %v1739 = vld [vmem:[%s1373 + $0x780] sm:$0xff]
        %v1740 = vld [vmem:[%s1373 + $0x788] sm:$0xff]
        %v1741 = vld [vmem:[%s1373 + $0x790] sm:$0xff]
        %v1742 = vld [vmem:[%s1373 + $0x798] sm:$0xff]
        %v1743 = vld [vmem:[%s1373 + $0x7a0] sm:$0xff]
        %v1744 = vld [vmem:[%s1373 + $0x7a8] sm:$0xff]
        %v1745 = vld [vmem:[%s1373 + $0x7b0] sm:$0xff]
        %v1746 = vld [vmem:[%s1373 + $0x7b8] sm:$0xff]
        %v1747 = vld [vmem:[%s1373 + $0x7c0] sm:$0xff]
        %v1748 = vld [vmem:[%s1373 + $0x7c8] sm:$0xff]
        %v1749 = vld [vmem:[%s1373 + $0x7d0] sm:$0xff]
        %v1750 = vld [vmem:[%s1373 + $0x7d8] sm:$0xff]
        %v1751 = vld [vmem:[%s1373 + $0x7e0] sm:$0xff]
        %v1752 = vld [vmem:[%s1373 + $0x7e8] sm:$0xff]
        %v1753 = vld [vmem:[%s1373 + $0x7f0] sm:$0xff]
        %v1754 = vld [vmem:[%s1373 + $0x7f8] sm:$0xff]
        %v1755 = vld [vmem:[%s1373 + $0x800] sm:$0xff]
        %v1756 = vld [vmem:[%s1373 + $0x808] sm:$0xff]
        %v1757 = vld [vmem:[%s1373 + $0x810] sm:$0xff]
        %v1758 = vld [vmem:[%s1373 + $0x818] sm:$0xff]
        %v1759 = vld [vmem:[%s1373 + $0x820] sm:$0xff]
        %v1760 = vld [vmem:[%s1373 + $0x828] sm:$0xff]
        %v1761 = vld [vmem:[%s1373 + $0x830] sm:$0xff]
        %v1762 = vld [vmem:[%s1373 + $0x838] sm:$0xff]
        %v1763 = vld [vmem:[%s1373 + $0x840] sm:$0xff]
        %v1764 = vld [vmem:[%s1373 + $0x848] sm:$0xff]
        %v1765 = vld [vmem:[%s1373 + $0x850] sm:$0xff]
        %v1766 = vld [vmem:[%s1373 + $0x858] sm:$0xff]
        %v1767 = vld [vmem:[%s1373 + $0x860] sm:$0xff]
        %v1768 = vld [vmem:[%s1373 + $0x868] sm:$0xff]
        %v1769 = vld [vmem:[%s1373 + $0x870] sm:$0xff]
        %v1770 = vld [vmem:[%s1373 + $0x878] sm:$0xff]
        %v1771 = vld [vmem:[%s1373 + $0x880] sm:$0xff]
        %v1772 = vld [vmem:[%s1373 + $0x888] sm:$0xff]
        %v1773 = vld [vmem:[%s1373 + $0x890] sm:$0xff]
        %v1774 = vld [vmem:[%s1373 + $0x898] sm:$0xff]
        %v1775 = vld [vmem:[%s1373 + $0x8a0] sm:$0xff]
        %v1776 = vld [vmem:[%s1373 + $0x8a8] sm:$0xff]
        %v1777 = vld [vmem:[%s1373 + $0x8b0] sm:$0xff]
        %v1778 = vld [vmem:[%s1373 + $0x8b8] sm:$0xff]
        %v1779 = vld [vmem:[%s1373 + $0x8c0] sm:$0xff]
        %v1780 = vld [vmem:[%s1373 + $0x8c8] sm:$0xff]
        %v1781 = vld [vmem:[%s1373 + $0x8d0] sm:$0xff]
        %v1782 = vld [vmem:[%s1373 + $0x8d8] sm:$0xff]
        %v1783 = vld [vmem:[%s1373 + $0x8e0] sm:$0xff]
        %v1784 = vld [vmem:[%s1373 + $0x8e8] sm:$0xff]
        %v1785 = vld [vmem:[%s1373 + $0x8f0] sm:$0xff]
        %v1786 = vld [vmem:[%s1373 + $0x8f8] sm:$0xff]
        %v1787 = vld [vmem:[%s1373 + $0x900] sm:$0xff]
        %v1788 = vld [vmem:[%s1373 + $0x908] sm:$0xff]
        %v1789 = vld [vmem:[%s1373 + $0x910] sm:$0xff]
        %v1790 = vld [vmem:[%s1373 + $0x918] sm:$0xff]
        %v1791 = vld [vmem:[%s1373 + $0x920] sm:$0xff]
        %v1792 = vld [vmem:[%s1373 + $0x928] sm:$0xff]
        %v1793 = vld [vmem:[%s1373 + $0x930] sm:$0xff]
        %v1794 = vld [vmem:[%s1373 + $0x938] sm:$0xff]
        %v1795 = vld [vmem:[%s1373 + $0x940] sm:$0xff]
        %v1796 = vld [vmem:[%s1373 + $0x948] sm:$0xff]
        %v1797 = vld [vmem:[%s1373 + $0x950] sm:$0xff]
        %v1798 = vld [vmem:[%s1373 + $0x958] sm:$0xff]
        %v1799 = vld [vmem:[%s1373 + $0x960] sm:$0xff]
        %v1800 = vld [vmem:[%s1373 + $0x968] sm:$0xff]
        %v1801 = vld [vmem:[%s1373 + $0x970] sm:$0xff]
        %v1802 = vld [vmem:[%s1373 + $0x978] sm:$0xff]
        %v1803 = vld [vmem:[%s1373 + $0x980] sm:$0xff]
        %v1804 = vld [vmem:[%s1373 + $0x988] sm:$0xff]
        %v1805 = vld [vmem:[%s1373 + $0x990] sm:$0xff]
        %v1806 = vld [vmem:[%s1373 + $0x998] sm:$0xff]
        %v1807 = vld [vmem:[%s1373 + $0x9a0] sm:$0xff]
        %v1808 = vld [vmem:[%s1373 + $0x9a8] sm:$0xff]
        %v1809 = vld [vmem:[%s1373 + $0x9b0] sm:$0xff]
        %v1810 = vld [vmem:[%s1373 + $0x9b8] sm:$0xff]
        %v1811 = vld [vmem:[%s1373 + $0x9c0] sm:$0xff]
        %v1812 = vld [vmem:[%s1373 + $0x9c8] sm:$0xff]
        %v1813 = vld [vmem:[%s1373 + $0x9d0] sm:$0xff]
        %v1814 = vld [vmem:[%s1373 + $0x9d8] sm:$0xff]
        %v1815 = vld [vmem:[%s1373 + $0x9e0] sm:$0xff]
        %v1816 = vld [vmem:[%s1373 + $0x9e8] sm:$0xff]
        %v1817 = vld [vmem:[%s1373 + $0x9f0] sm:$0xff]
        %v1818 = vld [vmem:[%s1373 + $0x9f8] sm:$0xff]
        %v1819 = vld [vmem:[%s1373 + $0xa00] sm:$0xff]
        %v1820 = vld [vmem:[%s1373 + $0xa08] sm:$0xff]
        %v1821 = vld [vmem:[%s1373 + $0xa10] sm:$0xff]
        %v1822 = vld [vmem:[%s1373 + $0xa18] sm:$0xff]
        %v1823 = vld [vmem:[%s1373 + $0xa20] sm:$0xff]
        %v1824 = vld [vmem:[%s1373 + $0xa28] sm:$0xff]
        %v1825 = vld [vmem:[%s1373 + $0xa30] sm:$0xff]
        %v1826 = vld [vmem:[%s1373 + $0xa38] sm:$0xff]
        %v1827 = vld [vmem:[%s1373 + $0xa40] sm:$0xff]
        %v1828 = vld [vmem:[%s1373 + $0xa48] sm:$0xff]
        %v1829 = vld [vmem:[%s1373 + $0xa50] sm:$0xff]
        %v1830 = vld [vmem:[%s1373 + $0xa58] sm:$0xff]
        %v1831 = vld [vmem:[%s1373 + $0xa60] sm:$0xff]
        %v1832 = vld [vmem:[%s1373 + $0xa68] sm:$0xff]
        %v1833 = vld [vmem:[%s1373 + $0xa70] sm:$0xff]
        %v1834 = vld [vmem:[%s1373 + $0xa78] sm:$0xff]
        %v1835 = vld [vmem:[%s1373 + $0xa80] sm:$0xff]
        %v1836 = vld [vmem:[%s1373 + $0xa88] sm:$0xff]
        %v1837 = vld [vmem:[%s1373 + $0xa90] sm:$0xff]
        %v1838 = vld [vmem:[%s1373 + $0xa98] sm:$0xff]
        %v1839 = vld [vmem:[%s1373 + $0xaa0] sm:$0xff]
        %v1840 = vld [vmem:[%s1373 + $0xaa8] sm:$0xff]
        %v1841 = vld [vmem:[%s1373 + $0xab0] sm:$0xff]
        %v1842 = vld [vmem:[%s1373 + $0xab8] sm:$0xff]
        %v1843 = vld [vmem:[%s1373 + $0xac0] sm:$0xff]
        %v1844 = vld [vmem:[%s1373 + $0xac8] sm:$0xff]
        %v1845 = vld [vmem:[%s1373 + $0xad0] sm:$0xff]
        %v1846 = vld [vmem:[%s1373 + $0xad8] sm:$0xff]
        %v1847 = vld [vmem:[%s1373 + $0xae0] sm:$0xff]
        %v1848 = vld [vmem:[%s1373 + $0xae8] sm:$0xff]
        %v1849 = vld [vmem:[%s1373 + $0xaf0] sm:$0xff]
        %v1850 = vld [vmem:[%s1373 + $0xaf8] sm:$0xff]
        %v1851 = vld [vmem:[%s1373 + $0xb00] sm:$0xff]
        %v1852 = vld [vmem:[%s1373 + $0xb08] sm:$0xff]
        %v1853 = vld [vmem:[%s1373 + $0xb10] sm:$0xff]
        %v1854 = vld [vmem:[%s1373 + $0xb18] sm:$0xff]
        %v1855 = vld [vmem:[%s1373 + $0xb20] sm:$0xff]
        %v1856 = vld [vmem:[%s1373 + $0xb28] sm:$0xff]
        %v1857 = vld [vmem:[%s1373 + $0xb30] sm:$0xff]
        %v1858 = vld [vmem:[%s1373 + $0xb38] sm:$0xff]
        %v1859 = vld [vmem:[%s1373 + $0xb40] sm:$0xff]
        %v1860 = vld [vmem:[%s1373 + $0xb48] sm:$0xff]
        %v1861 = vld [vmem:[%s1373 + $0xb50] sm:$0xff]
        %v1862 = vld [vmem:[%s1373 + $0xb58] sm:$0xff]
        %v1863 = vld [vmem:[%s1373 + $0xb60] sm:$0xff]
        %v1864 = vld [vmem:[%s1373 + $0xb68] sm:$0xff]
        %v1865 = vld [vmem:[%s1373 + $0xb70] sm:$0xff]
        %v1866 = vld [vmem:[%s1373 + $0xb78] sm:$0xff]
        %v1867 = vld [vmem:[%s1373 + $0xb80] sm:$0xff]
        %v1868 = vld [vmem:[%s1373 + $0xb88] sm:$0xff]
        %v1869 = vld [vmem:[%s1373 + $0xb90] sm:$0xff]
        %v1870 = vld [vmem:[%s1373 + $0xb98] sm:$0xff]
        %v1871 = vld [vmem:[%s1373 + $0xba0] sm:$0xff]
        %v1872 = vld [vmem:[%s1373 + $0xba8] sm:$0xff]
        %v1873 = vld [vmem:[%s1373 + $0xbb0] sm:$0xff]
        %v1874 = vld [vmem:[%s1373 + $0xbb8] sm:$0xff]
        %v1875 = vld [vmem:[%s1373 + $0xbc0] sm:$0xff]
        %v1876 = vld [vmem:[%s1373 + $0xbc8] sm:$0xff]
        %v1877 = vld [vmem:[%s1373 + $0xbd0] sm:$0xff]
        %v1878 = vld [vmem:[%s1373 + $0xbd8] sm:$0xff]
        %v1879 = vld [vmem:[%s1373 + $0xbe0] sm:$0xff]
        %v1880 = vld [vmem:[%s1373 + $0xbe8] sm:$0xff]
        %v1881 = vld [vmem:[%s1373 + $0xbf0] sm:$0xff]
        %v1882 = vld [vmem:[%s1373 + $0xbf8] sm:$0xff]
        %v1883 = vld [vmem:[%s1373 + $0xc00] sm:$0xff]
        %v1884 = vld [vmem:[%s1373 + $0xc08] sm:$0xff]
        %v1885 = vld [vmem:[%s1373 + $0xc10] sm:$0xff]
        %v1886 = vld [vmem:[%s1373 + $0xc18] sm:$0xff]
        %v1887 = vld [vmem:[%s1373 + $0xc20] sm:$0xff]
        %v1888 = vld [vmem:[%s1373 + $0xc28] sm:$0xff]
        %v1889 = vld [vmem:[%s1373 + $0xc30] sm:$0xff]
        %v1890 = vld [vmem:[%s1373 + $0xc38] sm:$0xff]
        %v1891 = vld [vmem:[%s1373 + $0xc40] sm:$0xff]
        %v1892 = vld [vmem:[%s1373 + $0xc48] sm:$0xff]
        %v1893 = vld [vmem:[%s1373 + $0xc50] sm:$0xff]
        %v1894 = vld [vmem:[%s1373 + $0xc58] sm:$0xff]
        %v1895 = vld [vmem:[%s1373 + $0xc60] sm:$0xff]
        %v1896 = vld [vmem:[%s1373 + $0xc68] sm:$0xff]
        %v1897 = vld [vmem:[%s1373 + $0xc70] sm:$0xff]
        %v1898 = vld [vmem:[%s1373 + $0xc78] sm:$0xff]
        %v1899 = vld [vmem:[%s1373 + $0xc80] sm:$0xff]
        %v1900 = vld [vmem:[%s1373 + $0xc88] sm:$0xff]
        %v1901 = vld [vmem:[%s1373 + $0xc90] sm:$0xff]
        %v1902 = vld [vmem:[%s1373 + $0xc98] sm:$0xff]
        %v1903 = vld [vmem:[%s1373 + $0xca0] sm:$0xff]
        %v1904 = vld [vmem:[%s1373 + $0xca8] sm:$0xff]
        %v1905 = vld [vmem:[%s1373 + $0xcb0] sm:$0xff]
        %v1906 = vld [vmem:[%s1373 + $0xcb8] sm:$0xff]
        %v1907 = vld [vmem:[%s1373 + $0xcc0] sm:$0xff]
        %v1908 = vld [vmem:[%s1373 + $0xcc8] sm:$0xff]
        %v1909 = vld [vmem:[%s1373 + $0xcd0] sm:$0xff]
        %v1910 = vld [vmem:[%s1373 + $0xcd8] sm:$0xff]
        %v1911 = vld [vmem:[%s1373 + $0xce0] sm:$0xff]
        %v1912 = vld [vmem:[%s1373 + $0xce8] sm:$0xff]
        %v1913 = vld [vmem:[%s1373 + $0xcf0] sm:$0xff]
        %v1914 = vld [vmem:[%s1373 + $0xcf8] sm:$0xff]
        %v1915 = vld [vmem:[%s1373 + $0xd00] sm:$0xff]
        %v1916 = vld [vmem:[%s1373 + $0xd08] sm:$0xff]
        %v1917 = vld [vmem:[%s1373 + $0xd10] sm:$0xff]
        %v1918 = vld [vmem:[%s1373 + $0xd18] sm:$0xff]
        %v1919 = vld [vmem:[%s1373 + $0xd20] sm:$0xff]
        %v1920 = vld [vmem:[%s1373 + $0xd28] sm:$0xff]
        %v1921 = vld [vmem:[%s1373 + $0xd30] sm:$0xff]
        %v1922 = vld [vmem:[%s1373 + $0xd38] sm:$0xff]
        %v1923 = vld [vmem:[%s1373 + $0xd40] sm:$0xff]
        %v1924 = vld [vmem:[%s1373 + $0xd48] sm:$0xff]
        %v1925 = vld [vmem:[%s1373 + $0xd50] sm:$0xff]
        %v1926 = vld [vmem:[%s1373 + $0xd58] sm:$0xff]
        %v1927 = vld [vmem:[%s1373 + $0xd60] sm:$0xff]
        %v1928 = vld [vmem:[%s1373 + $0xd68] sm:$0xff]
        %v1929 = vld [vmem:[%s1373 + $0xd70] sm:$0xff]
        %v1930 = vld [vmem:[%s1373 + $0xd78] sm:$0xff]
        %v1931 = vld [vmem:[%s1373 + $0xd80] sm:$0xff]
        %v1932 = vld [vmem:[%s1373 + $0xd88] sm:$0xff]
        %v1933 = vld [vmem:[%s1373 + $0xd90] sm:$0xff]
        %v1934 = vld [vmem:[%s1373 + $0xd98] sm:$0xff]
        %v1935 = vld [vmem:[%s1373 + $0xda0] sm:$0xff]
        %v1936 = vld [vmem:[%s1373 + $0xda8] sm:$0xff]
        %v1937 = vld [vmem:[%s1373 + $0xdb0] sm:$0xff]
        %v1938 = vld [vmem:[%s1373 + $0xdb8] sm:$0xff]
        %v1939 = vld [vmem:[%s1373 + $0xdc0] sm:$0xff]
        %v1940 = vld [vmem:[%s1373 + $0xdc8] sm:$0xff]
        %v1941 = vld [vmem:[%s1373 + $0xdd0] sm:$0xff]
        %v1942 = vld [vmem:[%s1373 + $0xdd8] sm:$0xff]
        %v1943 = vld [vmem:[%s1373 + $0xde0] sm:$0xff]
        %v1944 = vld [vmem:[%s1373 + $0xde8] sm:$0xff]
        %v1945 = vld [vmem:[%s1373 + $0xdf0] sm:$0xff]
        %v1946 = vld [vmem:[%s1373 + $0xdf8] sm:$0xff]
        %v1947 = vld [vmem:[%s1373 + $0xe00] sm:$0xff]
        %v1948 = vld [vmem:[%s1373 + $0xe08] sm:$0xff]
        %v1949 = vld [vmem:[%s1373 + $0xe10] sm:$0xff]
        %v1950 = vld [vmem:[%s1373 + $0xe18] sm:$0xff]
        %v1951 = vld [vmem:[%s1373 + $0xe20] sm:$0xff]
        %v1952 = vld [vmem:[%s1373 + $0xe28] sm:$0xff]
        %v1953 = vld [vmem:[%s1373 + $0xe30] sm:$0xff]
        %v1954 = vld [vmem:[%s1373 + $0xe38] sm:$0xff]
        %v1955 = vld [vmem:[%s1373 + $0xe40] sm:$0xff]
        %v1956 = vld [vmem:[%s1373 + $0xe48] sm:$0xff]
        %v1957 = vld [vmem:[%s1373 + $0xe50] sm:$0xff]
        %v1958 = vld [vmem:[%s1373 + $0xe58] sm:$0xff]
        %v1959 = vld [vmem:[%s1373 + $0xe60] sm:$0xff]
        %v1960 = vld [vmem:[%s1373 + $0xe68] sm:$0xff]
        %v1961 = vld [vmem:[%s1373 + $0xe70] sm:$0xff]
        %v1962 = vld [vmem:[%s1373 + $0xe78] sm:$0xff]
        %v1963 = vld [vmem:[%s1373 + $0xe80] sm:$0xff]
        %v1964 = vld [vmem:[%s1373 + $0xe88] sm:$0xff]
        %v1965 = vld [vmem:[%s1373 + $0xe90] sm:$0xff]
        %v1966 = vld [vmem:[%s1373 + $0xe98] sm:$0xff]
        %v1967 = vld [vmem:[%s1373 + $0xea0] sm:$0xff]
        %v1968 = vld [vmem:[%s1373 + $0xea8] sm:$0xff]
        %v1969 = vld [vmem:[%s1373 + $0xeb0] sm:$0xff]
        %v1970 = vld [vmem:[%s1373 + $0xeb8] sm:$0xff]
        %v1971 = vld [vmem:[%s1373 + $0xec0] sm:$0xff]
        %v1972 = vld [vmem:[%s1373 + $0xec8] sm:$0xff]
        %v1973 = vld [vmem:[%s1373 + $0xed0] sm:$0xff]
        %v1974 = vld [vmem:[%s1373 + $0xed8] sm:$0xff]
        %v1975 = vld [vmem:[%s1373 + $0xee0] sm:$0xff]
        %v1976 = vld [vmem:[%s1373 + $0xee8] sm:$0xff]
        %v1977 = vld [vmem:[%s1373 + $0xef0] sm:$0xff]
        %v1978 = vld [vmem:[%s1373 + $0xef8] sm:$0xff]
        %v1979 = vld [vmem:[%s1373 + $0xf00] sm:$0xff]
        %v1980 = vld [vmem:[%s1373 + $0xf08] sm:$0xff]
        %v1981 = vld [vmem:[%s1373 + $0xf10] sm:$0xff]
        %v1982 = vld [vmem:[%s1373 + $0xf18] sm:$0xff]
        %v1983 = vld [vmem:[%s1373 + $0xf20] sm:$0xff]
        %v1984 = vld [vmem:[%s1373 + $0xf28] sm:$0xff]
        %v1985 = vld [vmem:[%s1373 + $0xf30] sm:$0xff]
        %v1986 = vld [vmem:[%s1373 + $0xf38] sm:$0xff]
        %v1987 = vld [vmem:[%s1373 + $0xf40] sm:$0xff]
        %v1988 = vld [vmem:[%s1373 + $0xf48] sm:$0xff]
        %v1989 = vld [vmem:[%s1373 + $0xf50] sm:$0xff]
        %v1990 = vld [vmem:[%s1373 + $0xf58] sm:$0xff]
        %v1991 = vld [vmem:[%s1373 + $0xf60] sm:$0xff]
        %v1992 = vld [vmem:[%s1373 + $0xf68] sm:$0xff]
        %v1993 = vld [vmem:[%s1373 + $0xf70] sm:$0xff]
        %v1994 = vld [vmem:[%s1373 + $0xf78] sm:$0xff]
        %v1995 = vld [vmem:[%s1373 + $0xf80] sm:$0xff]
        %v1996 = vld [vmem:[%s1373 + $0xf88] sm:$0xff]
        %v1997 = vld [vmem:[%s1373 + $0xf90] sm:$0xff]
        %v1998 = vld [vmem:[%s1373 + $0xf98] sm:$0xff]
        %v1999 = vld [vmem:[%s1373 + $0xfa0] sm:$0xff]
        %v2000 = vld [vmem:[%s1373 + $0xfa8] sm:$0xff]
        %v2001 = vld [vmem:[%s1373 + $0xfb0] sm:$0xff]
        %v2002 = vld [vmem:[%s1373 + $0xfb8] sm:$0xff]
        %v2003 = vld [vmem:[%s1373 + $0xfc0] sm:$0xff]
        %v2004 = vld [vmem:[%s1373 + $0xfc8] sm:$0xff]
        %v2005 = vld [vmem:[%s1373 + $0xfd0] sm:$0xff]
        %v2006 = vld [vmem:[%s1373 + $0xfd8] sm:$0xff]
        %v2007 = vld [vmem:[%s1373 + $0xfe0] sm:$0xff]
        %v2008 = vld [vmem:[%s1373 + $0xfe8] sm:$0xff]
        %v2009 = vld [vmem:[%s1373 + $0xff0] sm:$0xff]
        %v2010 = vld [vmem:[%s1373 + $0xff8] sm:$0xff]
        %v2019 = vunpack.c.l.b16 %v1475
        %v2020 = vunpack.c.h.b16 %v1475
        %v2021 = vunpack.c.l.b16 %v1476
        %v2022 = vunpack.c.h.b16 %v1476
        %v2023 = vunpack.c.l.b16 %v1477
        %v2024 = vunpack.c.h.b16 %v1477
        %v2025 = vunpack.c.l.b16 %v1478
        %v2026 = vunpack.c.h.b16 %v1478
        %v2027 = vunpack.c.l.b16 %v1479
        %v2028 = vunpack.c.h.b16 %v1479
        %v2029 = vunpack.c.l.b16 %v1480
        %v2030 = vunpack.c.h.b16 %v1480
        %v2031 = vunpack.c.l.b16 %v1481
        %v2032 = vunpack.c.h.b16 %v1481
        %v2033 = vunpack.c.l.b16 %v1482
        %v2034 = vunpack.c.h.b16 %v1482
        %v2035 = vpack.c.b16 %v2027, %v2019
        %v2036 = vpack.c.b16 %v2028, %v2020
        %v2037 = vpack.c.b16 %v2029, %v2021
        %v2038 = vpack.c.b16 %v2030, %v2022
        %v2039 = vpack.c.b16 %v2031, %v2023
        %v2040 = vpack.c.b16 %v2032, %v2024
        %v2041 = vpack.c.b16 %v2033, %v2025
        %v2042 = vpack.c.b16 %v2034, %v2026
        %v2563 = vunpack.c.l.b16 %v1499
        %v2564 = vunpack.c.h.b16 %v1499
        %v2565 = vunpack.c.l.b16 %v1500
        %v2566 = vunpack.c.h.b16 %v1500
        %v2567 = vunpack.c.l.b16 %v1501
        %v2568 = vunpack.c.h.b16 %v1501
        %v2569 = vunpack.c.l.b16 %v1502
        %v2570 = vunpack.c.h.b16 %v1502
        %v2571 = vunpack.c.l.b16 %v1503
        %v2572 = vunpack.c.h.b16 %v1503
        %v2573 = vunpack.c.l.b16 %v1504
        %v2574 = vunpack.c.h.b16 %v1504
        %v2575 = vunpack.c.l.b16 %v1505
        %v2576 = vunpack.c.h.b16 %v1505
        %v2577 = vunpack.c.l.b16 %v1506
        %v2578 = vunpack.c.h.b16 %v1506
        %v2579 = vunpack.c.l.b16 %v1507
        %v2580 = vunpack.c.h.b16 %v1507
        %v2581 = vunpack.c.l.b16 %v1508
        %v2582 = vunpack.c.h.b16 %v1508
        %v2583 = vunpack.c.l.b16 %v1509
        %v2584 = vunpack.c.h.b16 %v1509
        %v2585 = vunpack.c.l.b16 %v1510
        %v2586 = vunpack.c.h.b16 %v1510
        %v2587 = vunpack.c.l.b16 %v1511
        %v2588 = vunpack.c.h.b16 %v1511
        %v2589 = vunpack.c.l.b16 %v1512
        %v2590 = vunpack.c.h.b16 %v1512
        %v2591 = vunpack.c.l.b16 %v1513
        %v2592 = vunpack.c.h.b16 %v1513
        %v2593 = vunpack.c.l.b16 %v1514
        %v2594 = vunpack.c.h.b16 %v1514
        %v2595 = vunpack.c.l.b16 %v1515
        %v2596 = vunpack.c.h.b16 %v1515
        %v2597 = vunpack.c.l.b16 %v1516
        %v2598 = vunpack.c.h.b16 %v1516
        %v2599 = vunpack.c.l.b16 %v1517
        %v2600 = vunpack.c.h.b16 %v1517
        %v2601 = vunpack.c.l.b16 %v1518
        %v2602 = vunpack.c.h.b16 %v1518
        %v2603 = vunpack.c.l.b16 %v1519
        %v2604 = vunpack.c.h.b16 %v1519
        %v2605 = vunpack.c.l.b16 %v1520
        %v2606 = vunpack.c.h.b16 %v1520
        %v2607 = vunpack.c.l.b16 %v1521
        %v2608 = vunpack.c.h.b16 %v1521
        %v2609 = vunpack.c.l.b16 %v1522
        %v2610 = vunpack.c.h.b16 %v1522
        %v2611 = vunpack.c.l.b16 %v1523
        %v2612 = vunpack.c.h.b16 %v1523
        %v2613 = vunpack.c.l.b16 %v1524
        %v2614 = vunpack.c.h.b16 %v1524
        %v2615 = vunpack.c.l.b16 %v1525
        %v2616 = vunpack.c.h.b16 %v1525
        %v2617 = vunpack.c.l.b16 %v1526
        %v2618 = vunpack.c.h.b16 %v1526
        %v2619 = vunpack.c.l.b16 %v1527
        %v2620 = vunpack.c.h.b16 %v1527
        %v2621 = vunpack.c.l.b16 %v1528
        %v2622 = vunpack.c.h.b16 %v1528
        %v2623 = vunpack.c.l.b16 %v1529
        %v2624 = vunpack.c.h.b16 %v1529
        %v2625 = vunpack.c.l.b16 %v1530
        %v2626 = vunpack.c.h.b16 %v1530
        %v2627 = vunpack.c.l.b16 %v1531
        %v2628 = vunpack.c.h.b16 %v1531
        %v2629 = vunpack.c.l.b16 %v1532
        %v2630 = vunpack.c.h.b16 %v1532
        %v2631 = vunpack.c.l.b16 %v1533
        %v2632 = vunpack.c.h.b16 %v1533
        %v2633 = vunpack.c.l.b16 %v1534
        %v2634 = vunpack.c.h.b16 %v1534
        %v2635 = vunpack.c.l.b16 %v1535
        %v2636 = vunpack.c.h.b16 %v1535
        %v2637 = vunpack.c.l.b16 %v1536
        %v2638 = vunpack.c.h.b16 %v1536
        %v2639 = vunpack.c.l.b16 %v1537
        %v2640 = vunpack.c.h.b16 %v1537
        %v2641 = vunpack.c.l.b16 %v1538
        %v2642 = vunpack.c.h.b16 %v1538
        %v2643 = vunpack.c.l.b16 %v1539
        %v2644 = vunpack.c.h.b16 %v1539
        %v2645 = vunpack.c.l.b16 %v1540
        %v2646 = vunpack.c.h.b16 %v1540
        %v2647 = vunpack.c.l.b16 %v1541
        %v2648 = vunpack.c.h.b16 %v1541
        %v2649 = vunpack.c.l.b16 %v1542
        %v2650 = vunpack.c.h.b16 %v1542
        %v2651 = vunpack.c.l.b16 %v1543
        %v2652 = vunpack.c.h.b16 %v1543
        %v2653 = vunpack.c.l.b16 %v1544
        %v2654 = vunpack.c.h.b16 %v1544
        %v2655 = vunpack.c.l.b16 %v1545
        %v2656 = vunpack.c.h.b16 %v1545
        %v2657 = vunpack.c.l.b16 %v1546
        %v2658 = vunpack.c.h.b16 %v1546
        %v2659 = vunpack.c.l.b16 %v1547
        %v2660 = vunpack.c.h.b16 %v1547
        %v2661 = vunpack.c.l.b16 %v1548
        %v2662 = vunpack.c.h.b16 %v1548
        %v2663 = vunpack.c.l.b16 %v1549
        %v2664 = vunpack.c.h.b16 %v1549
        %v2665 = vunpack.c.l.b16 %v1550
        %v2666 = vunpack.c.h.b16 %v1550
        %v2667 = vunpack.c.l.b16 %v1551
        %v2668 = vunpack.c.h.b16 %v1551
        %v2669 = vunpack.c.l.b16 %v1552
        %v2670 = vunpack.c.h.b16 %v1552
        %v2671 = vunpack.c.l.b16 %v1553
        %v2672 = vunpack.c.h.b16 %v1553
        %v2673 = vunpack.c.l.b16 %v1554
        %v2674 = vunpack.c.h.b16 %v1554
        %v2675 = vunpack.c.l.b16 %v1555
        %v2676 = vunpack.c.h.b16 %v1555
        %v2677 = vunpack.c.l.b16 %v1556
        %v2678 = vunpack.c.h.b16 %v1556
        %v2679 = vunpack.c.l.b16 %v1557
        %v2680 = vunpack.c.h.b16 %v1557
        %v2681 = vunpack.c.l.b16 %v1558
        %v2682 = vunpack.c.h.b16 %v1558
        %v2683 = vunpack.c.l.b16 %v1559
        %v2684 = vunpack.c.h.b16 %v1559
        %v2685 = vunpack.c.l.b16 %v1560
        %v2686 = vunpack.c.h.b16 %v1560
        %v2687 = vunpack.c.l.b16 %v1561
        %v2688 = vunpack.c.h.b16 %v1561
        %v2689 = vunpack.c.l.b16 %v1562
        %v2690 = vunpack.c.h.b16 %v1562
        %v2691 = vunpack.c.l.b16 %v1563
        %v2692 = vunpack.c.h.b16 %v1563
        %v2693 = vunpack.c.l.b16 %v1564
        %v2694 = vunpack.c.h.b16 %v1564
        %v2695 = vunpack.c.l.b16 %v1565
        %v2696 = vunpack.c.h.b16 %v1565
        %v2697 = vunpack.c.l.b16 %v1566
        %v2698 = vunpack.c.h.b16 %v1566
        %v2699 = vunpack.c.l.b16 %v1567
        %v2700 = vunpack.c.h.b16 %v1567
        %v2701 = vunpack.c.l.b16 %v1568
        %v2702 = vunpack.c.h.b16 %v1568
        %v2703 = vunpack.c.l.b16 %v1569
        %v2704 = vunpack.c.h.b16 %v1569
        %v2705 = vunpack.c.l.b16 %v1570
        %v2706 = vunpack.c.h.b16 %v1570
        %v2707 = vunpack.c.l.b16 %v1571
        %v2708 = vunpack.c.h.b16 %v1571
        %v2709 = vunpack.c.l.b16 %v1572
        %v2710 = vunpack.c.h.b16 %v1572
        %v2711 = vunpack.c.l.b16 %v1573
        %v2712 = vunpack.c.h.b16 %v1573
        %v2713 = vunpack.c.l.b16 %v1574
        %v2714 = vunpack.c.h.b16 %v1574
        %v2715 = vunpack.c.l.b16 %v1575
        %v2716 = vunpack.c.h.b16 %v1575
        %v2717 = vunpack.c.l.b16 %v1576
        %v2718 = vunpack.c.h.b16 %v1576
        %v2719 = vunpack.c.l.b16 %v1577
        %v2720 = vunpack.c.h.b16 %v1577
        %v2721 = vunpack.c.l.b16 %v1578
        %v2722 = vunpack.c.h.b16 %v1578
        %v2723 = vunpack.c.l.b16 %v1579
        %v2724 = vunpack.c.h.b16 %v1579
        %v2725 = vunpack.c.l.b16 %v1580
        %v2726 = vunpack.c.h.b16 %v1580
        %v2727 = vunpack.c.l.b16 %v1581
        %v2728 = vunpack.c.h.b16 %v1581
        %v2729 = vunpack.c.l.b16 %v1582
        %v2730 = vunpack.c.h.b16 %v1582
        %v2731 = vunpack.c.l.b16 %v1583
        %v2732 = vunpack.c.h.b16 %v1583
        %v2733 = vunpack.c.l.b16 %v1584
        %v2734 = vunpack.c.h.b16 %v1584
        %v2735 = vunpack.c.l.b16 %v1585
        %v2736 = vunpack.c.h.b16 %v1585
        %v2737 = vunpack.c.l.b16 %v1586
        %v2738 = vunpack.c.h.b16 %v1586
        %v2739 = vunpack.c.l.b16 %v1587
        %v2740 = vunpack.c.h.b16 %v1587
        %v2741 = vunpack.c.l.b16 %v1588
        %v2742 = vunpack.c.h.b16 %v1588
        %v2743 = vunpack.c.l.b16 %v1589
        %v2744 = vunpack.c.h.b16 %v1589
        %v2745 = vunpack.c.l.b16 %v1590
        %v2746 = vunpack.c.h.b16 %v1590
        %v2747 = vunpack.c.l.b16 %v1591
        %v2748 = vunpack.c.h.b16 %v1591
        %v2749 = vunpack.c.l.b16 %v1592
        %v2750 = vunpack.c.h.b16 %v1592
        %v2751 = vunpack.c.l.b16 %v1593
        %v2752 = vunpack.c.h.b16 %v1593
        %v2753 = vunpack.c.l.b16 %v1594
        %v2754 = vunpack.c.h.b16 %v1594
        %v2755 = vunpack.c.l.b16 %v1595
        %v2756 = vunpack.c.h.b16 %v1595
        %v2757 = vunpack.c.l.b16 %v1596
        %v2758 = vunpack.c.h.b16 %v1596
        %v2759 = vunpack.c.l.b16 %v1597
        %v2760 = vunpack.c.h.b16 %v1597
        %v2761 = vunpack.c.l.b16 %v1598
        %v2762 = vunpack.c.h.b16 %v1598
        %v2763 = vunpack.c.l.b16 %v1599
        %v2764 = vunpack.c.h.b16 %v1599
        %v2765 = vunpack.c.l.b16 %v1600
        %v2766 = vunpack.c.h.b16 %v1600
        %v2767 = vunpack.c.l.b16 %v1601
        %v2768 = vunpack.c.h.b16 %v1601
        %v2769 = vunpack.c.l.b16 %v1602
        %v2770 = vunpack.c.h.b16 %v1602
        %v2771 = vunpack.c.l.b16 %v1603
        %v2772 = vunpack.c.h.b16 %v1603
        %v2773 = vunpack.c.l.b16 %v1604
        %v2774 = vunpack.c.h.b16 %v1604
        %v2775 = vunpack.c.l.b16 %v1605
        %v2776 = vunpack.c.h.b16 %v1605
        %v2777 = vunpack.c.l.b16 %v1606
        %v2778 = vunpack.c.h.b16 %v1606
        %v2779 = vunpack.c.l.b16 %v1607
        %v2780 = vunpack.c.h.b16 %v1607
        %v2781 = vunpack.c.l.b16 %v1608
        %v2782 = vunpack.c.h.b16 %v1608
        %v2783 = vunpack.c.l.b16 %v1609
        %v2784 = vunpack.c.h.b16 %v1609
        %v2785 = vunpack.c.l.b16 %v1610
        %v2786 = vunpack.c.h.b16 %v1610
        %v2787 = vunpack.c.l.b16 %v1611
        %v2788 = vunpack.c.h.b16 %v1611
        %v2789 = vunpack.c.l.b16 %v1612
        %v2790 = vunpack.c.h.b16 %v1612
        %v2791 = vunpack.c.l.b16 %v1613
        %v2792 = vunpack.c.h.b16 %v1613
        %v2793 = vunpack.c.l.b16 %v1614
        %v2794 = vunpack.c.h.b16 %v1614
        %v2795 = vunpack.c.l.b16 %v1615
        %v2796 = vunpack.c.h.b16 %v1615
        %v2797 = vunpack.c.l.b16 %v1616
        %v2798 = vunpack.c.h.b16 %v1616
        %v2799 = vunpack.c.l.b16 %v1617
        %v2800 = vunpack.c.h.b16 %v1617
        %v2801 = vunpack.c.l.b16 %v1618
        %v2802 = vunpack.c.h.b16 %v1618
        %v2803 = vunpack.c.l.b16 %v1619
        %v2804 = vunpack.c.h.b16 %v1619
        %v2805 = vunpack.c.l.b16 %v1620
        %v2806 = vunpack.c.h.b16 %v1620
        %v2807 = vunpack.c.l.b16 %v1621
        %v2808 = vunpack.c.h.b16 %v1621
        %v2809 = vunpack.c.l.b16 %v1622
        %v2810 = vunpack.c.h.b16 %v1622
        %v2811 = vunpack.c.l.b16 %v1623
        %v2812 = vunpack.c.h.b16 %v1623
        %v2813 = vunpack.c.l.b16 %v1624
        %v2814 = vunpack.c.h.b16 %v1624
        %v2815 = vunpack.c.l.b16 %v1625
        %v2816 = vunpack.c.h.b16 %v1625
        %v2817 = vunpack.c.l.b16 %v1626
        %v2818 = vunpack.c.h.b16 %v1626
        %v2819 = vunpack.c.l.b16 %v1627
        %v2820 = vunpack.c.h.b16 %v1627
        %v2821 = vunpack.c.l.b16 %v1628
        %v2822 = vunpack.c.h.b16 %v1628
        %v2823 = vunpack.c.l.b16 %v1629
        %v2824 = vunpack.c.h.b16 %v1629
        %v2825 = vunpack.c.l.b16 %v1630
        %v2826 = vunpack.c.h.b16 %v1630
        %v2827 = vunpack.c.l.b16 %v1631
        %v2828 = vunpack.c.h.b16 %v1631
        %v2829 = vunpack.c.l.b16 %v1632
        %v2830 = vunpack.c.h.b16 %v1632
        %v2831 = vunpack.c.l.b16 %v1633
        %v2832 = vunpack.c.h.b16 %v1633
        %v2833 = vunpack.c.l.b16 %v1634
        %v2834 = vunpack.c.h.b16 %v1634
        %v2835 = vunpack.c.l.b16 %v1635
        %v2836 = vunpack.c.h.b16 %v1635
        %v2837 = vunpack.c.l.b16 %v1636
        %v2838 = vunpack.c.h.b16 %v1636
        %v2839 = vunpack.c.l.b16 %v1637
        %v2840 = vunpack.c.h.b16 %v1637
        %v2841 = vunpack.c.l.b16 %v1638
        %v2842 = vunpack.c.h.b16 %v1638
        %v2843 = vunpack.c.l.b16 %v1639
        %v2844 = vunpack.c.h.b16 %v1639
        %v2845 = vunpack.c.l.b16 %v1640
        %v2846 = vunpack.c.h.b16 %v1640
        %v2847 = vunpack.c.l.b16 %v1641
        %v2848 = vunpack.c.h.b16 %v1641
        %v2849 = vunpack.c.l.b16 %v1642
        %v2850 = vunpack.c.h.b16 %v1642
        %v2851 = vunpack.c.l.b16 %v1643
        %v2852 = vunpack.c.h.b16 %v1643
        %v2853 = vunpack.c.l.b16 %v1644
        %v2854 = vunpack.c.h.b16 %v1644
        %v2855 = vunpack.c.l.b16 %v1645
        %v2856 = vunpack.c.h.b16 %v1645
        %v2857 = vunpack.c.l.b16 %v1646
        %v2858 = vunpack.c.h.b16 %v1646
        %v2859 = vunpack.c.l.b16 %v1647
        %v2860 = vunpack.c.h.b16 %v1647
        %v2861 = vunpack.c.l.b16 %v1648
        %v2862 = vunpack.c.h.b16 %v1648
        %v2863 = vunpack.c.l.b16 %v1649
        %v2864 = vunpack.c.h.b16 %v1649
        %v2865 = vunpack.c.l.b16 %v1650
        %v2866 = vunpack.c.h.b16 %v1650
        %v2867 = vunpack.c.l.b16 %v1651
        %v2868 = vunpack.c.h.b16 %v1651
        %v2869 = vunpack.c.l.b16 %v1652
        %v2870 = vunpack.c.h.b16 %v1652
        %v2871 = vunpack.c.l.b16 %v1653
        %v2872 = vunpack.c.h.b16 %v1653
        %v2873 = vunpack.c.l.b16 %v1654
        %v2874 = vunpack.c.h.b16 %v1654
        %v2875 = vunpack.c.l.b16 %v1655
        %v2876 = vunpack.c.h.b16 %v1655
        %v2877 = vunpack.c.l.b16 %v1656
        %v2878 = vunpack.c.h.b16 %v1656
        %v2879 = vunpack.c.l.b16 %v1657
        %v2880 = vunpack.c.h.b16 %v1657
        %v2881 = vunpack.c.l.b16 %v1658
        %v2882 = vunpack.c.h.b16 %v1658
        %v2883 = vunpack.c.l.b16 %v1659
        %v2884 = vunpack.c.h.b16 %v1659
        %v2885 = vunpack.c.l.b16 %v1660
        %v2886 = vunpack.c.h.b16 %v1660
        %v2887 = vunpack.c.l.b16 %v1661
        %v2888 = vunpack.c.h.b16 %v1661
        %v2889 = vunpack.c.l.b16 %v1662
        %v2890 = vunpack.c.h.b16 %v1662
        %v2891 = vunpack.c.l.b16 %v1663
        %v2892 = vunpack.c.h.b16 %v1663
        %v2893 = vunpack.c.l.b16 %v1664
        %v2894 = vunpack.c.h.b16 %v1664
        %v2895 = vunpack.c.l.b16 %v1665
        %v2896 = vunpack.c.h.b16 %v1665
        %v2897 = vunpack.c.l.b16 %v1666
        %v2898 = vunpack.c.h.b16 %v1666
        %v2899 = vunpack.c.l.b16 %v1667
        %v2900 = vunpack.c.h.b16 %v1667
        %v2901 = vunpack.c.l.b16 %v1668
        %v2902 = vunpack.c.h.b16 %v1668
        %v2903 = vunpack.c.l.b16 %v1669
        %v2904 = vunpack.c.h.b16 %v1669
        %v2905 = vunpack.c.l.b16 %v1670
        %v2906 = vunpack.c.h.b16 %v1670
        %v2907 = vunpack.c.l.b16 %v1671
        %v2908 = vunpack.c.h.b16 %v1671
        %v2909 = vunpack.c.l.b16 %v1672
        %v2910 = vunpack.c.h.b16 %v1672
        %v2911 = vunpack.c.l.b16 %v1673
        %v2912 = vunpack.c.h.b16 %v1673
        %v2913 = vunpack.c.l.b16 %v1674
        %v2914 = vunpack.c.h.b16 %v1674
        %v2915 = vunpack.c.l.b16 %v1675
        %v2916 = vunpack.c.h.b16 %v1675
        %v2917 = vunpack.c.l.b16 %v1676
        %v2918 = vunpack.c.h.b16 %v1676
        %v2919 = vunpack.c.l.b16 %v1677
        %v2920 = vunpack.c.h.b16 %v1677
        %v2921 = vunpack.c.l.b16 %v1678
        %v2922 = vunpack.c.h.b16 %v1678
        %v2923 = vunpack.c.l.b16 %v1679
        %v2924 = vunpack.c.h.b16 %v1679
        %v2925 = vunpack.c.l.b16 %v1680
        %v2926 = vunpack.c.h.b16 %v1680
        %v2927 = vunpack.c.l.b16 %v1681
        %v2928 = vunpack.c.h.b16 %v1681
        %v2929 = vunpack.c.l.b16 %v1682
        %v2930 = vunpack.c.h.b16 %v1682
        %v2931 = vunpack.c.l.b16 %v1683
        %v2932 = vunpack.c.h.b16 %v1683
        %v2933 = vunpack.c.l.b16 %v1684
        %v2934 = vunpack.c.h.b16 %v1684
        %v2935 = vunpack.c.l.b16 %v1685
        %v2936 = vunpack.c.h.b16 %v1685
        %v2937 = vunpack.c.l.b16 %v1686
        %v2938 = vunpack.c.h.b16 %v1686
        %v2939 = vunpack.c.l.b16 %v1687
        %v2940 = vunpack.c.h.b16 %v1687
        %v2941 = vunpack.c.l.b16 %v1688
        %v2942 = vunpack.c.h.b16 %v1688
        %v2943 = vunpack.c.l.b16 %v1689
        %v2944 = vunpack.c.h.b16 %v1689
        %v2945 = vunpack.c.l.b16 %v1690
        %v2946 = vunpack.c.h.b16 %v1690
        %v2947 = vunpack.c.l.b16 %v1691
        %v2948 = vunpack.c.h.b16 %v1691
        %v2949 = vunpack.c.l.b16 %v1692
        %v2950 = vunpack.c.h.b16 %v1692
        %v2951 = vunpack.c.l.b16 %v1693
        %v2952 = vunpack.c.h.b16 %v1693
        %v2953 = vunpack.c.l.b16 %v1694
        %v2954 = vunpack.c.h.b16 %v1694
        %v2955 = vunpack.c.l.b16 %v1695
        %v2956 = vunpack.c.h.b16 %v1695
        %v2957 = vunpack.c.l.b16 %v1696
        %v2958 = vunpack.c.h.b16 %v1696
        %v2959 = vunpack.c.l.b16 %v1697
        %v2960 = vunpack.c.h.b16 %v1697
        %v2961 = vunpack.c.l.b16 %v1698
        %v2962 = vunpack.c.h.b16 %v1698
        %v2963 = vunpack.c.l.b16 %v1699
        %v2964 = vunpack.c.h.b16 %v1699
        %v2965 = vunpack.c.l.b16 %v1700
        %v2966 = vunpack.c.h.b16 %v1700
        %v2967 = vunpack.c.l.b16 %v1701
        %v2968 = vunpack.c.h.b16 %v1701
        %v2969 = vunpack.c.l.b16 %v1702
        %v2970 = vunpack.c.h.b16 %v1702
        %v2971 = vunpack.c.l.b16 %v1703
        %v2972 = vunpack.c.h.b16 %v1703
        %v2973 = vunpack.c.l.b16 %v1704
        %v2974 = vunpack.c.h.b16 %v1704
        %v2975 = vunpack.c.l.b16 %v1705
        %v2976 = vunpack.c.h.b16 %v1705
        %v2977 = vunpack.c.l.b16 %v1706
        %v2978 = vunpack.c.h.b16 %v1706
        %v2979 = vunpack.c.l.b16 %v1707
        %v2980 = vunpack.c.h.b16 %v1707
        %v2981 = vunpack.c.l.b16 %v1708
        %v2982 = vunpack.c.h.b16 %v1708
        %v2983 = vunpack.c.l.b16 %v1709
        %v2984 = vunpack.c.h.b16 %v1709
        %v2985 = vunpack.c.l.b16 %v1710
        %v2986 = vunpack.c.h.b16 %v1710
        %v2987 = vunpack.c.l.b16 %v1711
        %v2988 = vunpack.c.h.b16 %v1711
        %v2989 = vunpack.c.l.b16 %v1712
        %v2990 = vunpack.c.h.b16 %v1712
        %v2991 = vunpack.c.l.b16 %v1713
        %v2992 = vunpack.c.h.b16 %v1713
        %v2993 = vunpack.c.l.b16 %v1714
        %v2994 = vunpack.c.h.b16 %v1714
        %v2995 = vunpack.c.l.b16 %v1715
        %v2996 = vunpack.c.h.b16 %v1715
        %v2997 = vunpack.c.l.b16 %v1716
        %v2998 = vunpack.c.h.b16 %v1716
        %v2999 = vunpack.c.l.b16 %v1717
        %v3000 = vunpack.c.h.b16 %v1717
        %v3001 = vunpack.c.l.b16 %v1718
        %v3002 = vunpack.c.h.b16 %v1718
        %v3003 = vunpack.c.l.b16 %v1719
        %v3004 = vunpack.c.h.b16 %v1719
        %v3005 = vunpack.c.l.b16 %v1720
        %v3006 = vunpack.c.h.b16 %v1720
        %v3007 = vunpack.c.l.b16 %v1721
        %v3008 = vunpack.c.h.b16 %v1721
        %v3009 = vunpack.c.l.b16 %v1722
        %v3010 = vunpack.c.h.b16 %v1722
        %v3011 = vunpack.c.l.b16 %v1723
        %v3012 = vunpack.c.h.b16 %v1723
        %v3013 = vunpack.c.l.b16 %v1724
        %v3014 = vunpack.c.h.b16 %v1724
        %v3015 = vunpack.c.l.b16 %v1725
        %v3016 = vunpack.c.h.b16 %v1725
        %v3017 = vunpack.c.l.b16 %v1726
        %v3018 = vunpack.c.h.b16 %v1726
        %v3019 = vunpack.c.l.b16 %v1727
        %v3020 = vunpack.c.h.b16 %v1727
        %v3021 = vunpack.c.l.b16 %v1728
        %v3022 = vunpack.c.h.b16 %v1728
        %v3023 = vunpack.c.l.b16 %v1729
        %v3024 = vunpack.c.h.b16 %v1729
        %v3025 = vunpack.c.l.b16 %v1730
        %v3026 = vunpack.c.h.b16 %v1730
        %v3027 = vunpack.c.l.b16 %v1731
        %v3028 = vunpack.c.h.b16 %v1731
        %v3029 = vunpack.c.l.b16 %v1732
        %v3030 = vunpack.c.h.b16 %v1732
        %v3031 = vunpack.c.l.b16 %v1733
        %v3032 = vunpack.c.h.b16 %v1733
        %v3033 = vunpack.c.l.b16 %v1734
        %v3034 = vunpack.c.h.b16 %v1734
        %v3035 = vunpack.c.l.b16 %v1735
        %v3036 = vunpack.c.h.b16 %v1735
        %v3037 = vunpack.c.l.b16 %v1736
        %v3038 = vunpack.c.h.b16 %v1736
        %v3039 = vunpack.c.l.b16 %v1737
        %v3040 = vunpack.c.h.b16 %v1737
        %v3041 = vunpack.c.l.b16 %v1738
        %v3042 = vunpack.c.h.b16 %v1738
        %v3043 = vunpack.c.l.b16 %v1739
        %v3044 = vunpack.c.h.b16 %v1739
        %v3045 = vunpack.c.l.b16 %v1740
        %v3046 = vunpack.c.h.b16 %v1740
        %v3047 = vunpack.c.l.b16 %v1741
        %v3048 = vunpack.c.h.b16 %v1741
        %v3049 = vunpack.c.l.b16 %v1742
        %v3050 = vunpack.c.h.b16 %v1742
        %v3051 = vunpack.c.l.b16 %v1743
        %v3052 = vunpack.c.h.b16 %v1743
        %v3053 = vunpack.c.l.b16 %v1744
        %v3054 = vunpack.c.h.b16 %v1744
        %v3055 = vunpack.c.l.b16 %v1745
        %v3056 = vunpack.c.h.b16 %v1745
        %v3057 = vunpack.c.l.b16 %v1746
        %v3058 = vunpack.c.h.b16 %v1746
        %v3059 = vunpack.c.l.b16 %v1747
        %v3060 = vunpack.c.h.b16 %v1747
        %v3061 = vunpack.c.l.b16 %v1748
        %v3062 = vunpack.c.h.b16 %v1748
        %v3063 = vunpack.c.l.b16 %v1749
        %v3064 = vunpack.c.h.b16 %v1749
        %v3065 = vunpack.c.l.b16 %v1750
        %v3066 = vunpack.c.h.b16 %v1750
        %v3067 = vunpack.c.l.b16 %v1751
        %v3068 = vunpack.c.h.b16 %v1751
        %v3069 = vunpack.c.l.b16 %v1752
        %v3070 = vunpack.c.h.b16 %v1752
        %v3071 = vunpack.c.l.b16 %v1753
        %v3072 = vunpack.c.h.b16 %v1753
        %v3073 = vunpack.c.l.b16 %v1754
        %v3074 = vunpack.c.h.b16 %v1754
        %v3075 = vunpack.c.l.b16 %v1755
        %v3076 = vunpack.c.h.b16 %v1755
        %v3077 = vunpack.c.l.b16 %v1756
        %v3078 = vunpack.c.h.b16 %v1756
        %v3079 = vunpack.c.l.b16 %v1757
        %v3080 = vunpack.c.h.b16 %v1757
        %v3081 = vunpack.c.l.b16 %v1758
        %v3082 = vunpack.c.h.b16 %v1758
        %v3083 = vunpack.c.l.b16 %v1759
        %v3084 = vunpack.c.h.b16 %v1759
        %v3085 = vunpack.c.l.b16 %v1760
        %v3086 = vunpack.c.h.b16 %v1760
        %v3087 = vunpack.c.l.b16 %v1761
        %v3088 = vunpack.c.h.b16 %v1761
        %v3089 = vunpack.c.l.b16 %v1762
        %v3090 = vunpack.c.h.b16 %v1762
        %v3091 = vunpack.c.l.b16 %v1763
        %v3092 = vunpack.c.h.b16 %v1763
        %v3093 = vunpack.c.l.b16 %v1764
        %v3094 = vunpack.c.h.b16 %v1764
        %v3095 = vunpack.c.l.b16 %v1765
        %v3096 = vunpack.c.h.b16 %v1765
        %v3097 = vunpack.c.l.b16 %v1766
        %v3098 = vunpack.c.h.b16 %v1766
        %v3099 = vunpack.c.l.b16 %v1767
        %v3100 = vunpack.c.h.b16 %v1767
        %v3101 = vunpack.c.l.b16 %v1768
        %v3102 = vunpack.c.h.b16 %v1768
        %v3103 = vunpack.c.l.b16 %v1769
        %v3104 = vunpack.c.h.b16 %v1769
        %v3105 = vunpack.c.l.b16 %v1770
        %v3106 = vunpack.c.h.b16 %v1770
        %v3107 = vunpack.c.l.b16 %v1771
        %v3108 = vunpack.c.h.b16 %v1771
        %v3109 = vunpack.c.l.b16 %v1772
        %v3110 = vunpack.c.h.b16 %v1772
        %v3111 = vunpack.c.l.b16 %v1773
        %v3112 = vunpack.c.h.b16 %v1773
        %v3113 = vunpack.c.l.b16 %v1774
        %v3114 = vunpack.c.h.b16 %v1774
        %v3115 = vunpack.c.l.b16 %v1775
        %v3116 = vunpack.c.h.b16 %v1775
        %v3117 = vunpack.c.l.b16 %v1776
        %v3118 = vunpack.c.h.b16 %v1776
        %v3119 = vunpack.c.l.b16 %v1777
        %v3120 = vunpack.c.h.b16 %v1777
        %v3121 = vunpack.c.l.b16 %v1778
        %v3122 = vunpack.c.h.b16 %v1778
        %v3123 = vunpack.c.l.b16 %v1779
        %v3124 = vunpack.c.h.b16 %v1779
        %v3125 = vunpack.c.l.b16 %v1780
        %v3126 = vunpack.c.h.b16 %v1780
        %v3127 = vunpack.c.l.b16 %v1781
        %v3128 = vunpack.c.h.b16 %v1781
        %v3129 = vunpack.c.l.b16 %v1782
        %v3130 = vunpack.c.h.b16 %v1782
        %v3131 = vunpack.c.l.b16 %v1783
        %v3132 = vunpack.c.h.b16 %v1783
        %v3133 = vunpack.c.l.b16 %v1784
        %v3134 = vunpack.c.h.b16 %v1784
        %v3135 = vunpack.c.l.b16 %v1785
        %v3136 = vunpack.c.h.b16 %v1785
        %v3137 = vunpack.c.l.b16 %v1786
        %v3138 = vunpack.c.h.b16 %v1786
        %v3139 = vunpack.c.l.b16 %v1787
        %v3140 = vunpack.c.h.b16 %v1787
        %v3141 = vunpack.c.l.b16 %v1788
        %v3142 = vunpack.c.h.b16 %v1788
        %v3143 = vunpack.c.l.b16 %v1789
        %v3144 = vunpack.c.h.b16 %v1789
        %v3145 = vunpack.c.l.b16 %v1790
        %v3146 = vunpack.c.h.b16 %v1790
        %v3147 = vunpack.c.l.b16 %v1791
        %v3148 = vunpack.c.h.b16 %v1791
        %v3149 = vunpack.c.l.b16 %v1792
        %v3150 = vunpack.c.h.b16 %v1792
        %v3151 = vunpack.c.l.b16 %v1793
        %v3152 = vunpack.c.h.b16 %v1793
        %v3153 = vunpack.c.l.b16 %v1794
        %v3154 = vunpack.c.h.b16 %v1794
        %v3155 = vunpack.c.l.b16 %v1795
        %v3156 = vunpack.c.h.b16 %v1795
        %v3157 = vunpack.c.l.b16 %v1796
        %v3158 = vunpack.c.h.b16 %v1796
        %v3159 = vunpack.c.l.b16 %v1797
        %v3160 = vunpack.c.h.b16 %v1797
        %v3161 = vunpack.c.l.b16 %v1798
        %v3162 = vunpack.c.h.b16 %v1798
        %v3163 = vunpack.c.l.b16 %v1799
        %v3164 = vunpack.c.h.b16 %v1799
        %v3165 = vunpack.c.l.b16 %v1800
        %v3166 = vunpack.c.h.b16 %v1800
        %v3167 = vunpack.c.l.b16 %v1801
        %v3168 = vunpack.c.h.b16 %v1801
        %v3169 = vunpack.c.l.b16 %v1802
        %v3170 = vunpack.c.h.b16 %v1802
        %v3171 = vunpack.c.l.b16 %v1803
        %v3172 = vunpack.c.h.b16 %v1803
        %v3173 = vunpack.c.l.b16 %v1804
        %v3174 = vunpack.c.h.b16 %v1804
        %v3175 = vunpack.c.l.b16 %v1805
        %v3176 = vunpack.c.h.b16 %v1805
        %v3177 = vunpack.c.l.b16 %v1806
        %v3178 = vunpack.c.h.b16 %v1806
        %v3179 = vunpack.c.l.b16 %v1807
        %v3180 = vunpack.c.h.b16 %v1807
        %v3181 = vunpack.c.l.b16 %v1808
        %v3182 = vunpack.c.h.b16 %v1808
        %v3183 = vunpack.c.l.b16 %v1809
        %v3184 = vunpack.c.h.b16 %v1809
        %v3185 = vunpack.c.l.b16 %v1810
        %v3186 = vunpack.c.h.b16 %v1810
        %v3187 = vunpack.c.l.b16 %v1811
        %v3188 = vunpack.c.h.b16 %v1811
        %v3189 = vunpack.c.l.b16 %v1812
        %v3190 = vunpack.c.h.b16 %v1812
        %v3191 = vunpack.c.l.b16 %v1813
        %v3192 = vunpack.c.h.b16 %v1813
        %v3193 = vunpack.c.l.b16 %v1814
        %v3194 = vunpack.c.h.b16 %v1814
        %v3195 = vunpack.c.l.b16 %v1815
        %v3196 = vunpack.c.h.b16 %v1815
        %v3197 = vunpack.c.l.b16 %v1816
        %v3198 = vunpack.c.h.b16 %v1816
        %v3199 = vunpack.c.l.b16 %v1817
        %v3200 = vunpack.c.h.b16 %v1817
        %v3201 = vunpack.c.l.b16 %v1818
        %v3202 = vunpack.c.h.b16 %v1818
        %v3203 = vunpack.c.l.b16 %v1819
        %v3204 = vunpack.c.h.b16 %v1819
        %v3205 = vunpack.c.l.b16 %v1820
        %v3206 = vunpack.c.h.b16 %v1820
        %v3207 = vunpack.c.l.b16 %v1821
        %v3208 = vunpack.c.h.b16 %v1821
        %v3209 = vunpack.c.l.b16 %v1822
        %v3210 = vunpack.c.h.b16 %v1822
        %v3211 = vunpack.c.l.b16 %v1823
        %v3212 = vunpack.c.h.b16 %v1823
        %v3213 = vunpack.c.l.b16 %v1824
        %v3214 = vunpack.c.h.b16 %v1824
        %v3215 = vunpack.c.l.b16 %v1825
        %v3216 = vunpack.c.h.b16 %v1825
        %v3217 = vunpack.c.l.b16 %v1826
        %v3218 = vunpack.c.h.b16 %v1826
        %v3219 = vunpack.c.l.b16 %v1827
        %v3220 = vunpack.c.h.b16 %v1827
        %v3221 = vunpack.c.l.b16 %v1828
        %v3222 = vunpack.c.h.b16 %v1828
        %v3223 = vunpack.c.l.b16 %v1829
        %v3224 = vunpack.c.h.b16 %v1829
        %v3225 = vunpack.c.l.b16 %v1830
        %v3226 = vunpack.c.h.b16 %v1830
        %v3227 = vunpack.c.l.b16 %v1831
        %v3228 = vunpack.c.h.b16 %v1831
        %v3229 = vunpack.c.l.b16 %v1832
        %v3230 = vunpack.c.h.b16 %v1832
        %v3231 = vunpack.c.l.b16 %v1833
        %v3232 = vunpack.c.h.b16 %v1833
        %v3233 = vunpack.c.l.b16 %v1834
        %v3234 = vunpack.c.h.b16 %v1834
        %v3235 = vunpack.c.l.b16 %v1835
        %v3236 = vunpack.c.h.b16 %v1835
        %v3237 = vunpack.c.l.b16 %v1836
        %v3238 = vunpack.c.h.b16 %v1836
        %v3239 = vunpack.c.l.b16 %v1837
        %v3240 = vunpack.c.h.b16 %v1837
        %v3241 = vunpack.c.l.b16 %v1838
        %v3242 = vunpack.c.h.b16 %v1838
        %v3243 = vunpack.c.l.b16 %v1839
        %v3244 = vunpack.c.h.b16 %v1839
        %v3245 = vunpack.c.l.b16 %v1840
        %v3246 = vunpack.c.h.b16 %v1840
        %v3247 = vunpack.c.l.b16 %v1841
        %v3248 = vunpack.c.h.b16 %v1841
        %v3249 = vunpack.c.l.b16 %v1842
        %v3250 = vunpack.c.h.b16 %v1842
        %v3251 = vunpack.c.l.b16 %v1843
        %v3252 = vunpack.c.h.b16 %v1843
        %v3253 = vunpack.c.l.b16 %v1844
        %v3254 = vunpack.c.h.b16 %v1844
        %v3255 = vunpack.c.l.b16 %v1845
        %v3256 = vunpack.c.h.b16 %v1845
        %v3257 = vunpack.c.l.b16 %v1846
        %v3258 = vunpack.c.h.b16 %v1846
        %v3259 = vunpack.c.l.b16 %v1847
        %v3260 = vunpack.c.h.b16 %v1847
        %v3261 = vunpack.c.l.b16 %v1848
        %v3262 = vunpack.c.h.b16 %v1848
        %v3263 = vunpack.c.l.b16 %v1849
        %v3264 = vunpack.c.h.b16 %v1849
        %v3265 = vunpack.c.l.b16 %v1850
        %v3266 = vunpack.c.h.b16 %v1850
        %v3267 = vunpack.c.l.b16 %v1851
        %v3268 = vunpack.c.h.b16 %v1851
        %v3269 = vunpack.c.l.b16 %v1852
        %v3270 = vunpack.c.h.b16 %v1852
        %v3271 = vunpack.c.l.b16 %v1853
        %v3272 = vunpack.c.h.b16 %v1853
        %v3273 = vunpack.c.l.b16 %v1854
        %v3274 = vunpack.c.h.b16 %v1854
        %v3275 = vunpack.c.l.b16 %v1855
        %v3276 = vunpack.c.h.b16 %v1855
        %v3277 = vunpack.c.l.b16 %v1856
        %v3278 = vunpack.c.h.b16 %v1856
        %v3279 = vunpack.c.l.b16 %v1857
        %v3280 = vunpack.c.h.b16 %v1857
        %v3281 = vunpack.c.l.b16 %v1858
        %v3282 = vunpack.c.h.b16 %v1858
        %v3283 = vunpack.c.l.b16 %v1859
        %v3284 = vunpack.c.h.b16 %v1859
        %v3285 = vunpack.c.l.b16 %v1860
        %v3286 = vunpack.c.h.b16 %v1860
        %v3287 = vunpack.c.l.b16 %v1861
        %v3288 = vunpack.c.h.b16 %v1861
        %v3289 = vunpack.c.l.b16 %v1862
        %v3290 = vunpack.c.h.b16 %v1862
        %v3291 = vunpack.c.l.b16 %v1863
        %v3292 = vunpack.c.h.b16 %v1863
        %v3293 = vunpack.c.l.b16 %v1864
        %v3294 = vunpack.c.h.b16 %v1864
        %v3295 = vunpack.c.l.b16 %v1865
        %v3296 = vunpack.c.h.b16 %v1865
        %v3297 = vunpack.c.l.b16 %v1866
        %v3298 = vunpack.c.h.b16 %v1866
        %v3299 = vunpack.c.l.b16 %v1867
        %v3300 = vunpack.c.h.b16 %v1867
        %v3301 = vunpack.c.l.b16 %v1868
        %v3302 = vunpack.c.h.b16 %v1868
        %v3303 = vunpack.c.l.b16 %v1869
        %v3304 = vunpack.c.h.b16 %v1869
        %v3305 = vunpack.c.l.b16 %v1870
        %v3306 = vunpack.c.h.b16 %v1870
        %v3307 = vunpack.c.l.b16 %v1871
        %v3308 = vunpack.c.h.b16 %v1871
        %v3309 = vunpack.c.l.b16 %v1872
        %v3310 = vunpack.c.h.b16 %v1872
        %v3311 = vunpack.c.l.b16 %v1873
        %v3312 = vunpack.c.h.b16 %v1873
        %v3313 = vunpack.c.l.b16 %v1874
        %v3314 = vunpack.c.h.b16 %v1874
        %v3315 = vunpack.c.l.b16 %v1875
        %v3316 = vunpack.c.h.b16 %v1875
        %v3317 = vunpack.c.l.b16 %v1876
        %v3318 = vunpack.c.h.b16 %v1876
        %v3319 = vunpack.c.l.b16 %v1877
        %v3320 = vunpack.c.h.b16 %v1877
        %v3321 = vunpack.c.l.b16 %v1878
        %v3322 = vunpack.c.h.b16 %v1878
        %v3323 = vunpack.c.l.b16 %v1879
        %v3324 = vunpack.c.h.b16 %v1879
        %v3325 = vunpack.c.l.b16 %v1880
        %v3326 = vunpack.c.h.b16 %v1880
        %v3327 = vunpack.c.l.b16 %v1881
        %v3328 = vunpack.c.h.b16 %v1881
        %v3329 = vunpack.c.l.b16 %v1882
        %v3330 = vunpack.c.h.b16 %v1882
        %v3331 = vunpack.c.l.b16 %v1883
        %v3332 = vunpack.c.h.b16 %v1883
        %v3333 = vunpack.c.l.b16 %v1884
        %v3334 = vunpack.c.h.b16 %v1884
        %v3335 = vunpack.c.l.b16 %v1885
        %v3336 = vunpack.c.h.b16 %v1885
        %v3337 = vunpack.c.l.b16 %v1886
        %v3338 = vunpack.c.h.b16 %v1886
        %v3339 = vunpack.c.l.b16 %v1887
        %v3340 = vunpack.c.h.b16 %v1887
        %v3341 = vunpack.c.l.b16 %v1888
        %v3342 = vunpack.c.h.b16 %v1888
        %v3343 = vunpack.c.l.b16 %v1889
        %v3344 = vunpack.c.h.b16 %v1889
        %v3345 = vunpack.c.l.b16 %v1890
        %v3346 = vunpack.c.h.b16 %v1890
        %v3347 = vunpack.c.l.b16 %v1891
        %v3348 = vunpack.c.h.b16 %v1891
        %v3349 = vunpack.c.l.b16 %v1892
        %v3350 = vunpack.c.h.b16 %v1892
        %v3351 = vunpack.c.l.b16 %v1893
        %v3352 = vunpack.c.h.b16 %v1893
        %v3353 = vunpack.c.l.b16 %v1894
        %v3354 = vunpack.c.h.b16 %v1894
        %v3355 = vunpack.c.l.b16 %v1895
        %v3356 = vunpack.c.h.b16 %v1895
        %v3357 = vunpack.c.l.b16 %v1896
        %v3358 = vunpack.c.h.b16 %v1896
        %v3359 = vunpack.c.l.b16 %v1897
        %v3360 = vunpack.c.h.b16 %v1897
        %v3361 = vunpack.c.l.b16 %v1898
        %v3362 = vunpack.c.h.b16 %v1898
        %v3363 = vunpack.c.l.b16 %v1899
        %v3364 = vunpack.c.h.b16 %v1899
        %v3365 = vunpack.c.l.b16 %v1900
        %v3366 = vunpack.c.h.b16 %v1900
        %v3367 = vunpack.c.l.b16 %v1901
        %v3368 = vunpack.c.h.b16 %v1901
        %v3369 = vunpack.c.l.b16 %v1902
        %v3370 = vunpack.c.h.b16 %v1902
        %v3371 = vunpack.c.l.b16 %v1903
        %v3372 = vunpack.c.h.b16 %v1903
        %v3373 = vunpack.c.l.b16 %v1904
        %v3374 = vunpack.c.h.b16 %v1904
        %v3375 = vunpack.c.l.b16 %v1905
        %v3376 = vunpack.c.h.b16 %v1905
        %v3377 = vunpack.c.l.b16 %v1906
        %v3378 = vunpack.c.h.b16 %v1906
        %v3379 = vunpack.c.l.b16 %v1907
        %v3380 = vunpack.c.h.b16 %v1907
        %v3381 = vunpack.c.l.b16 %v1908
        %v3382 = vunpack.c.h.b16 %v1908
        %v3383 = vunpack.c.l.b16 %v1909
        %v3384 = vunpack.c.h.b16 %v1909
        %v3385 = vunpack.c.l.b16 %v1910
        %v3386 = vunpack.c.h.b16 %v1910
        %v3387 = vunpack.c.l.b16 %v1911
        %v3388 = vunpack.c.h.b16 %v1911
        %v3389 = vunpack.c.l.b16 %v1912
        %v3390 = vunpack.c.h.b16 %v1912
        %v3391 = vunpack.c.l.b16 %v1913
        %v3392 = vunpack.c.h.b16 %v1913
        %v3393 = vunpack.c.l.b16 %v1914
        %v3394 = vunpack.c.h.b16 %v1914
        %v3395 = vunpack.c.l.b16 %v1915
        %v3396 = vunpack.c.h.b16 %v1915
        %v3397 = vunpack.c.l.b16 %v1916
        %v3398 = vunpack.c.h.b16 %v1916
        %v3399 = vunpack.c.l.b16 %v1917
        %v3400 = vunpack.c.h.b16 %v1917
        %v3401 = vunpack.c.l.b16 %v1918
        %v3402 = vunpack.c.h.b16 %v1918
        %v3403 = vunpack.c.l.b16 %v1919
        %v3404 = vunpack.c.h.b16 %v1919
        %v3405 = vunpack.c.l.b16 %v1920
        %v3406 = vunpack.c.h.b16 %v1920
        %v3407 = vunpack.c.l.b16 %v1921
        %v3408 = vunpack.c.h.b16 %v1921
        %v3409 = vunpack.c.l.b16 %v1922
        %v3410 = vunpack.c.h.b16 %v1922
        %v3411 = vunpack.c.l.b16 %v1923
        %v3412 = vunpack.c.h.b16 %v1923
        %v3413 = vunpack.c.l.b16 %v1924
        %v3414 = vunpack.c.h.b16 %v1924
        %v3415 = vunpack.c.l.b16 %v1925
        %v3416 = vunpack.c.h.b16 %v1925
        %v3417 = vunpack.c.l.b16 %v1926
        %v3418 = vunpack.c.h.b16 %v1926
        %v3419 = vunpack.c.l.b16 %v1927
        %v3420 = vunpack.c.h.b16 %v1927
        %v3421 = vunpack.c.l.b16 %v1928
        %v3422 = vunpack.c.h.b16 %v1928
        %v3423 = vunpack.c.l.b16 %v1929
        %v3424 = vunpack.c.h.b16 %v1929
        %v3425 = vunpack.c.l.b16 %v1930
        %v3426 = vunpack.c.h.b16 %v1930
        %v3427 = vunpack.c.l.b16 %v1931
        %v3428 = vunpack.c.h.b16 %v1931
        %v3429 = vunpack.c.l.b16 %v1932
        %v3430 = vunpack.c.h.b16 %v1932
        %v3431 = vunpack.c.l.b16 %v1933
        %v3432 = vunpack.c.h.b16 %v1933
        %v3433 = vunpack.c.l.b16 %v1934
        %v3434 = vunpack.c.h.b16 %v1934
        %v3435 = vunpack.c.l.b16 %v1935
        %v3436 = vunpack.c.h.b16 %v1935
        %v3437 = vunpack.c.l.b16 %v1936
        %v3438 = vunpack.c.h.b16 %v1936
        %v3439 = vunpack.c.l.b16 %v1937
        %v3440 = vunpack.c.h.b16 %v1937
        %v3441 = vunpack.c.l.b16 %v1938
        %v3442 = vunpack.c.h.b16 %v1938
        %v3443 = vunpack.c.l.b16 %v1939
        %v3444 = vunpack.c.h.b16 %v1939
        %v3445 = vunpack.c.l.b16 %v1940
        %v3446 = vunpack.c.h.b16 %v1940
        %v3447 = vunpack.c.l.b16 %v1941
        %v3448 = vunpack.c.h.b16 %v1941
        %v3449 = vunpack.c.l.b16 %v1942
        %v3450 = vunpack.c.h.b16 %v1942
        %v3451 = vunpack.c.l.b16 %v1943
        %v3452 = vunpack.c.h.b16 %v1943
        %v3453 = vunpack.c.l.b16 %v1944
        %v3454 = vunpack.c.h.b16 %v1944
        %v3455 = vunpack.c.l.b16 %v1945
        %v3456 = vunpack.c.h.b16 %v1945
        %v3457 = vunpack.c.l.b16 %v1946
        %v3458 = vunpack.c.h.b16 %v1946
        %v3459 = vunpack.c.l.b16 %v1947
        %v3460 = vunpack.c.h.b16 %v1947
        %v3461 = vunpack.c.l.b16 %v1948
        %v3462 = vunpack.c.h.b16 %v1948
        %v3463 = vunpack.c.l.b16 %v1949
        %v3464 = vunpack.c.h.b16 %v1949
        %v3465 = vunpack.c.l.b16 %v1950
        %v3466 = vunpack.c.h.b16 %v1950
        %v3467 = vunpack.c.l.b16 %v1951
        %v3468 = vunpack.c.h.b16 %v1951
        %v3469 = vunpack.c.l.b16 %v1952
        %v3470 = vunpack.c.h.b16 %v1952
        %v3471 = vunpack.c.l.b16 %v1953
        %v3472 = vunpack.c.h.b16 %v1953
        %v3473 = vunpack.c.l.b16 %v1954
        %v3474 = vunpack.c.h.b16 %v1954
        %v3475 = vunpack.c.l.b16 %v1955
        %v3476 = vunpack.c.h.b16 %v1955
        %v3477 = vunpack.c.l.b16 %v1956
        %v3478 = vunpack.c.h.b16 %v1956
        %v3479 = vunpack.c.l.b16 %v1957
        %v3480 = vunpack.c.h.b16 %v1957
        %v3481 = vunpack.c.l.b16 %v1958
        %v3482 = vunpack.c.h.b16 %v1958
        %v3483 = vunpack.c.l.b16 %v1959
        %v3484 = vunpack.c.h.b16 %v1959
        %v3485 = vunpack.c.l.b16 %v1960
        %v3486 = vunpack.c.h.b16 %v1960
        %v3487 = vunpack.c.l.b16 %v1961
        %v3488 = vunpack.c.h.b16 %v1961
        %v3489 = vunpack.c.l.b16 %v1962
        %v3490 = vunpack.c.h.b16 %v1962
        %v3491 = vunpack.c.l.b16 %v1963
        %v3492 = vunpack.c.h.b16 %v1963
        %v3493 = vunpack.c.l.b16 %v1964
        %v3494 = vunpack.c.h.b16 %v1964
        %v3495 = vunpack.c.l.b16 %v1965
        %v3496 = vunpack.c.h.b16 %v1965
        %v3497 = vunpack.c.l.b16 %v1966
        %v3498 = vunpack.c.h.b16 %v1966
        %v3499 = vunpack.c.l.b16 %v1967
        %v3500 = vunpack.c.h.b16 %v1967
        %v3501 = vunpack.c.l.b16 %v1968
        %v3502 = vunpack.c.h.b16 %v1968
        %v3503 = vunpack.c.l.b16 %v1969
        %v3504 = vunpack.c.h.b16 %v1969
        %v3505 = vunpack.c.l.b16 %v1970
        %v3506 = vunpack.c.h.b16 %v1970
        %v3507 = vunpack.c.l.b16 %v1971
        %v3508 = vunpack.c.h.b16 %v1971
        %v3509 = vunpack.c.l.b16 %v1972
        %v3510 = vunpack.c.h.b16 %v1972
        %v3511 = vunpack.c.l.b16 %v1973
        %v3512 = vunpack.c.h.b16 %v1973
        %v3513 = vunpack.c.l.b16 %v1974
        %v3514 = vunpack.c.h.b16 %v1974
        %v3515 = vunpack.c.l.b16 %v1975
        %v3516 = vunpack.c.h.b16 %v1975
        %v3517 = vunpack.c.l.b16 %v1976
        %v3518 = vunpack.c.h.b16 %v1976
        %v3519 = vunpack.c.l.b16 %v1977
        %v3520 = vunpack.c.h.b16 %v1977
        %v3521 = vunpack.c.l.b16 %v1978
        %v3522 = vunpack.c.h.b16 %v1978
        %v3523 = vunpack.c.l.b16 %v1979
        %v3524 = vunpack.c.h.b16 %v1979
        %v3525 = vunpack.c.l.b16 %v1980
        %v3526 = vunpack.c.h.b16 %v1980
        %v3527 = vunpack.c.l.b16 %v1981
        %v3528 = vunpack.c.h.b16 %v1981
        %v3529 = vunpack.c.l.b16 %v1982
        %v3530 = vunpack.c.h.b16 %v1982
        %v3531 = vunpack.c.l.b16 %v1983
        %v3532 = vunpack.c.h.b16 %v1983
        %v3533 = vunpack.c.l.b16 %v1984
        %v3534 = vunpack.c.h.b16 %v1984
        %v3535 = vunpack.c.l.b16 %v1985
        %v3536 = vunpack.c.h.b16 %v1985
        %v3537 = vunpack.c.l.b16 %v1986
        %v3538 = vunpack.c.h.b16 %v1986
        %v3539 = vunpack.c.l.b16 %v1987
        %v3540 = vunpack.c.h.b16 %v1987
        %v3541 = vunpack.c.l.b16 %v1988
        %v3542 = vunpack.c.h.b16 %v1988
        %v3543 = vunpack.c.l.b16 %v1989
        %v3544 = vunpack.c.h.b16 %v1989
        %v3545 = vunpack.c.l.b16 %v1990
        %v3546 = vunpack.c.h.b16 %v1990
        %v3547 = vunpack.c.l.b16 %v1991
        %v3548 = vunpack.c.h.b16 %v1991
        %v3549 = vunpack.c.l.b16 %v1992
        %v3550 = vunpack.c.h.b16 %v1992
        %v3551 = vunpack.c.l.b16 %v1993
        %v3552 = vunpack.c.h.b16 %v1993
        %v3553 = vunpack.c.l.b16 %v1994
        %v3554 = vunpack.c.h.b16 %v1994
        %v3555 = vunpack.c.l.b16 %v1995
        %v3556 = vunpack.c.h.b16 %v1995
        %v3557 = vunpack.c.l.b16 %v1996
        %v3558 = vunpack.c.h.b16 %v1996
        %v3559 = vunpack.c.l.b16 %v1997
        %v3560 = vunpack.c.h.b16 %v1997
        %v3561 = vunpack.c.l.b16 %v1998
        %v3562 = vunpack.c.h.b16 %v1998
        %v3563 = vunpack.c.l.b16 %v1999
        %v3564 = vunpack.c.h.b16 %v1999
        %v3565 = vunpack.c.l.b16 %v2000
        %v3566 = vunpack.c.h.b16 %v2000
        %v3567 = vunpack.c.l.b16 %v2001
        %v3568 = vunpack.c.h.b16 %v2001
        %v3569 = vunpack.c.l.b16 %v2002
        %v3570 = vunpack.c.h.b16 %v2002
        %v3571 = vunpack.c.l.b16 %v2003
        %v3572 = vunpack.c.h.b16 %v2003
        %v3573 = vunpack.c.l.b16 %v2004
        %v3574 = vunpack.c.h.b16 %v2004
        %v3575 = vunpack.c.l.b16 %v2005
        %v3576 = vunpack.c.h.b16 %v2005
        %v3577 = vunpack.c.l.b16 %v2006
        %v3578 = vunpack.c.h.b16 %v2006
        %v3579 = vunpack.c.l.b16 %v2007
        %v3580 = vunpack.c.h.b16 %v2007
        %v3581 = vunpack.c.l.b16 %v2008
        %v3582 = vunpack.c.h.b16 %v2008
        %v3583 = vunpack.c.l.b16 %v2009
        %v3584 = vunpack.c.h.b16 %v2009
        %v3585 = vunpack.c.l.b16 %v2010
        %v3586 = vunpack.c.h.b16 %v2010
        %v3587 = vpack.c.b16 %v2571, %v2563
        %v3588 = vpack.c.b16 %v2572, %v2564
        %v3589 = vpack.c.b16 %v2573, %v2565
        %v3590 = vpack.c.b16 %v2574, %v2566
        %v3591 = vpack.c.b16 %v2575, %v2567
        %v3592 = vpack.c.b16 %v2576, %v2568
        %v3593 = vpack.c.b16 %v2577, %v2569
        %v3594 = vpack.c.b16 %v2578, %v2570
        %v3595 = vpack.c.b16 %v2587, %v2579
        %v3596 = vpack.c.b16 %v2588, %v2580
        %v3597 = vpack.c.b16 %v2589, %v2581
        %v3598 = vpack.c.b16 %v2590, %v2582
        %v3599 = vpack.c.b16 %v2591, %v2583
        %v3600 = vpack.c.b16 %v2592, %v2584
        %v3601 = vpack.c.b16 %v2593, %v2585
        %v3602 = vpack.c.b16 %v2594, %v2586
        %v3603 = vpack.c.b16 %v2603, %v2595
        %v3604 = vpack.c.b16 %v2604, %v2596
        %v3605 = vpack.c.b16 %v2605, %v2597
        %v3606 = vpack.c.b16 %v2606, %v2598
        %v3607 = vpack.c.b16 %v2607, %v2599
        %v3608 = vpack.c.b16 %v2608, %v2600
        %v3609 = vpack.c.b16 %v2609, %v2601
        %v3610 = vpack.c.b16 %v2610, %v2602
        %v3611 = vpack.c.b16 %v2619, %v2611
        %v3612 = vpack.c.b16 %v2620, %v2612
        %v3613 = vpack.c.b16 %v2621, %v2613
        %v3614 = vpack.c.b16 %v2622, %v2614
        %v3615 = vpack.c.b16 %v2623, %v2615
        %v3616 = vpack.c.b16 %v2624, %v2616
        %v3617 = vpack.c.b16 %v2625, %v2617
        %v3618 = vpack.c.b16 %v2626, %v2618
        %v3619 = vpack.c.b16 %v2635, %v2627
        %v3620 = vpack.c.b16 %v2636, %v2628
        %v3621 = vpack.c.b16 %v2637, %v2629
        %v3622 = vpack.c.b16 %v2638, %v2630
        %v3623 = vpack.c.b16 %v2639, %v2631
        %v3624 = vpack.c.b16 %v2640, %v2632
        %v3625 = vpack.c.b16 %v2641, %v2633
        %v3626 = vpack.c.b16 %v2642, %v2634
        %v3627 = vpack.c.b16 %v2651, %v2643
        %v3628 = vpack.c.b16 %v2652, %v2644
        %v3629 = vpack.c.b16 %v2653, %v2645
        %v3630 = vpack.c.b16 %v2654, %v2646
        %v3631 = vpack.c.b16 %v2655, %v2647
        %v3632 = vpack.c.b16 %v2656, %v2648
        %v3633 = vpack.c.b16 %v2657, %v2649
        %v3634 = vpack.c.b16 %v2658, %v2650
        %v3635 = vpack.c.b16 %v2667, %v2659
        %v3636 = vpack.c.b16 %v2668, %v2660
        %v3637 = vpack.c.b16 %v2669, %v2661
        %v3638 = vpack.c.b16 %v2670, %v2662
        %v3639 = vpack.c.b16 %v2671, %v2663
        %v3640 = vpack.c.b16 %v2672, %v2664
        %v3641 = vpack.c.b16 %v2673, %v2665
        %v3642 = vpack.c.b16 %v2674, %v2666
        %v3643 = vpack.c.b16 %v2683, %v2675
        %v3644 = vpack.c.b16 %v2684, %v2676
        %v3645 = vpack.c.b16 %v2685, %v2677
        %v3646 = vpack.c.b16 %v2686, %v2678
        %v3647 = vpack.c.b16 %v2687, %v2679
        %v3648 = vpack.c.b16 %v2688, %v2680
        %v3649 = vpack.c.b16 %v2689, %v2681
        %v3650 = vpack.c.b16 %v2690, %v2682
        %v3651 = vpack.c.b16 %v2699, %v2691
        %v3652 = vpack.c.b16 %v2700, %v2692
        %v3653 = vpack.c.b16 %v2701, %v2693
        %v3654 = vpack.c.b16 %v2702, %v2694
        %v3655 = vpack.c.b16 %v2703, %v2695
        %v3656 = vpack.c.b16 %v2704, %v2696
        %v3657 = vpack.c.b16 %v2705, %v2697
        %v3658 = vpack.c.b16 %v2706, %v2698
        %v3659 = vpack.c.b16 %v2715, %v2707
        %v3660 = vpack.c.b16 %v2716, %v2708
        %v3661 = vpack.c.b16 %v2717, %v2709
        %v3662 = vpack.c.b16 %v2718, %v2710
        %v3663 = vpack.c.b16 %v2719, %v2711
        %v3664 = vpack.c.b16 %v2720, %v2712
        %v3665 = vpack.c.b16 %v2721, %v2713
        %v3666 = vpack.c.b16 %v2722, %v2714
        %v3667 = vpack.c.b16 %v2731, %v2723
        %v3668 = vpack.c.b16 %v2732, %v2724
        %v3669 = vpack.c.b16 %v2733, %v2725
        %v3670 = vpack.c.b16 %v2734, %v2726
        %v3671 = vpack.c.b16 %v2735, %v2727
        %v3672 = vpack.c.b16 %v2736, %v2728
        %v3673 = vpack.c.b16 %v2737, %v2729
        %v3674 = vpack.c.b16 %v2738, %v2730
        %v3675 = vpack.c.b16 %v2747, %v2739
        %v3676 = vpack.c.b16 %v2748, %v2740
        %v3677 = vpack.c.b16 %v2749, %v2741
        %v3678 = vpack.c.b16 %v2750, %v2742
        %v3679 = vpack.c.b16 %v2751, %v2743
        %v3680 = vpack.c.b16 %v2752, %v2744
        %v3681 = vpack.c.b16 %v2753, %v2745
        %v3682 = vpack.c.b16 %v2754, %v2746
        %v3683 = vpack.c.b16 %v2763, %v2755
        %v3684 = vpack.c.b16 %v2764, %v2756
        %v3685 = vpack.c.b16 %v2765, %v2757
        %v3686 = vpack.c.b16 %v2766, %v2758
        %v3687 = vpack.c.b16 %v2767, %v2759
        %v3688 = vpack.c.b16 %v2768, %v2760
        %v3689 = vpack.c.b16 %v2769, %v2761
        %v3690 = vpack.c.b16 %v2770, %v2762
        %v3691 = vpack.c.b16 %v2779, %v2771
        %v3692 = vpack.c.b16 %v2780, %v2772
        %v3693 = vpack.c.b16 %v2781, %v2773
        %v3694 = vpack.c.b16 %v2782, %v2774
        %v3695 = vpack.c.b16 %v2783, %v2775
        %v3696 = vpack.c.b16 %v2784, %v2776
        %v3697 = vpack.c.b16 %v2785, %v2777
        %v3698 = vpack.c.b16 %v2786, %v2778
        %v3699 = vpack.c.b16 %v2795, %v2787
        %v3700 = vpack.c.b16 %v2796, %v2788
        %v3701 = vpack.c.b16 %v2797, %v2789
        %v3702 = vpack.c.b16 %v2798, %v2790
        %v3703 = vpack.c.b16 %v2799, %v2791
        %v3704 = vpack.c.b16 %v2800, %v2792
        %v3705 = vpack.c.b16 %v2801, %v2793
        %v3706 = vpack.c.b16 %v2802, %v2794
        %v3707 = vpack.c.b16 %v2811, %v2803
        %v3708 = vpack.c.b16 %v2812, %v2804
        %v3709 = vpack.c.b16 %v2813, %v2805
        %v3710 = vpack.c.b16 %v2814, %v2806
        %v3711 = vpack.c.b16 %v2815, %v2807
        %v3712 = vpack.c.b16 %v2816, %v2808
        %v3713 = vpack.c.b16 %v2817, %v2809
        %v3714 = vpack.c.b16 %v2818, %v2810
        %v3715 = vpack.c.b16 %v2827, %v2819
        %v3716 = vpack.c.b16 %v2828, %v2820
        %v3717 = vpack.c.b16 %v2829, %v2821
        %v3718 = vpack.c.b16 %v2830, %v2822
        %v3719 = vpack.c.b16 %v2831, %v2823
        %v3720 = vpack.c.b16 %v2832, %v2824
        %v3721 = vpack.c.b16 %v2833, %v2825
        %v3722 = vpack.c.b16 %v2834, %v2826
        %v3723 = vpack.c.b16 %v2843, %v2835
        %v3724 = vpack.c.b16 %v2844, %v2836
        %v3725 = vpack.c.b16 %v2845, %v2837
        %v3726 = vpack.c.b16 %v2846, %v2838
        %v3727 = vpack.c.b16 %v2847, %v2839
        %v3728 = vpack.c.b16 %v2848, %v2840
        %v3729 = vpack.c.b16 %v2849, %v2841
        %v3730 = vpack.c.b16 %v2850, %v2842
        %v3731 = vpack.c.b16 %v2859, %v2851
        %v3732 = vpack.c.b16 %v2860, %v2852
        %v3733 = vpack.c.b16 %v2861, %v2853
        %v3734 = vpack.c.b16 %v2862, %v2854
        %v3735 = vpack.c.b16 %v2863, %v2855
        %v3736 = vpack.c.b16 %v2864, %v2856
        %v3737 = vpack.c.b16 %v2865, %v2857
        %v3738 = vpack.c.b16 %v2866, %v2858
        %v3739 = vpack.c.b16 %v2875, %v2867
        %v3740 = vpack.c.b16 %v2876, %v2868
        %v3741 = vpack.c.b16 %v2877, %v2869
        %v3742 = vpack.c.b16 %v2878, %v2870
        %v3743 = vpack.c.b16 %v2879, %v2871
        %v3744 = vpack.c.b16 %v2880, %v2872
        %v3745 = vpack.c.b16 %v2881, %v2873
        %v3746 = vpack.c.b16 %v2882, %v2874
        %v3747 = vpack.c.b16 %v2891, %v2883
        %v3748 = vpack.c.b16 %v2892, %v2884
        %v3749 = vpack.c.b16 %v2893, %v2885
        %v3750 = vpack.c.b16 %v2894, %v2886
        %v3751 = vpack.c.b16 %v2895, %v2887
        %v3752 = vpack.c.b16 %v2896, %v2888
        %v3753 = vpack.c.b16 %v2897, %v2889
        %v3754 = vpack.c.b16 %v2898, %v2890
        %v3755 = vpack.c.b16 %v2907, %v2899
        %v3756 = vpack.c.b16 %v2908, %v2900
        %v3757 = vpack.c.b16 %v2909, %v2901
        %v3758 = vpack.c.b16 %v2910, %v2902
        %v3759 = vpack.c.b16 %v2911, %v2903
        %v3760 = vpack.c.b16 %v2912, %v2904
        %v3761 = vpack.c.b16 %v2913, %v2905
        %v3762 = vpack.c.b16 %v2914, %v2906
        %v3763 = vpack.c.b16 %v2923, %v2915
        %v3764 = vpack.c.b16 %v2924, %v2916
        %v3765 = vpack.c.b16 %v2925, %v2917
        %v3766 = vpack.c.b16 %v2926, %v2918
        %v3767 = vpack.c.b16 %v2927, %v2919
        %v3768 = vpack.c.b16 %v2928, %v2920
        %v3769 = vpack.c.b16 %v2929, %v2921
        %v3770 = vpack.c.b16 %v2930, %v2922
        %v3771 = vpack.c.b16 %v2939, %v2931
        %v3772 = vpack.c.b16 %v2940, %v2932
        %v3773 = vpack.c.b16 %v2941, %v2933
        %v3774 = vpack.c.b16 %v2942, %v2934
        %v3775 = vpack.c.b16 %v2943, %v2935
        %v3776 = vpack.c.b16 %v2944, %v2936
        %v3777 = vpack.c.b16 %v2945, %v2937
        %v3778 = vpack.c.b16 %v2946, %v2938
        %v3779 = vpack.c.b16 %v2955, %v2947
        %v3780 = vpack.c.b16 %v2956, %v2948
        %v3781 = vpack.c.b16 %v2957, %v2949
        %v3782 = vpack.c.b16 %v2958, %v2950
        %v3783 = vpack.c.b16 %v2959, %v2951
        %v3784 = vpack.c.b16 %v2960, %v2952
        %v3785 = vpack.c.b16 %v2961, %v2953
        %v3786 = vpack.c.b16 %v2962, %v2954
        %v3787 = vpack.c.b16 %v2971, %v2963
        %v3788 = vpack.c.b16 %v2972, %v2964
        %v3789 = vpack.c.b16 %v2973, %v2965
        %v3790 = vpack.c.b16 %v2974, %v2966
        %v3791 = vpack.c.b16 %v2975, %v2967
        %v3792 = vpack.c.b16 %v2976, %v2968
        %v3793 = vpack.c.b16 %v2977, %v2969
        %v3794 = vpack.c.b16 %v2978, %v2970
        %v3795 = vpack.c.b16 %v2987, %v2979
        %v3796 = vpack.c.b16 %v2988, %v2980
        %v3797 = vpack.c.b16 %v2989, %v2981
        %v3798 = vpack.c.b16 %v2990, %v2982
        %v3799 = vpack.c.b16 %v2991, %v2983
        %v3800 = vpack.c.b16 %v2992, %v2984
        %v3801 = vpack.c.b16 %v2993, %v2985
        %v3802 = vpack.c.b16 %v2994, %v2986
        %v3803 = vpack.c.b16 %v3003, %v2995
        %v3804 = vpack.c.b16 %v3004, %v2996
        %v3805 = vpack.c.b16 %v3005, %v2997
        %v3806 = vpack.c.b16 %v3006, %v2998
        %v3807 = vpack.c.b16 %v3007, %v2999
        %v3808 = vpack.c.b16 %v3008, %v3000
        %v3809 = vpack.c.b16 %v3009, %v3001
        %v3810 = vpack.c.b16 %v3010, %v3002
        %v3811 = vpack.c.b16 %v3019, %v3011
        %v3812 = vpack.c.b16 %v3020, %v3012
        %v3813 = vpack.c.b16 %v3021, %v3013
        %v3814 = vpack.c.b16 %v3022, %v3014
        %v3815 = vpack.c.b16 %v3023, %v3015
        %v3816 = vpack.c.b16 %v3024, %v3016
        %v3817 = vpack.c.b16 %v3025, %v3017
        %v3818 = vpack.c.b16 %v3026, %v3018
        %v3819 = vpack.c.b16 %v3035, %v3027
        %v3820 = vpack.c.b16 %v3036, %v3028
        %v3821 = vpack.c.b16 %v3037, %v3029
        %v3822 = vpack.c.b16 %v3038, %v3030
        %v3823 = vpack.c.b16 %v3039, %v3031
        %v3824 = vpack.c.b16 %v3040, %v3032
        %v3825 = vpack.c.b16 %v3041, %v3033
        %v3826 = vpack.c.b16 %v3042, %v3034
        %v3827 = vpack.c.b16 %v3051, %v3043
        %v3828 = vpack.c.b16 %v3052, %v3044
        %v3829 = vpack.c.b16 %v3053, %v3045
        %v3830 = vpack.c.b16 %v3054, %v3046
        %v3831 = vpack.c.b16 %v3055, %v3047
        %v3832 = vpack.c.b16 %v3056, %v3048
        %v3833 = vpack.c.b16 %v3057, %v3049
        %v3834 = vpack.c.b16 %v3058, %v3050
        %v3835 = vpack.c.b16 %v3067, %v3059
        %v3836 = vpack.c.b16 %v3068, %v3060
        %v3837 = vpack.c.b16 %v3069, %v3061
        %v3838 = vpack.c.b16 %v3070, %v3062
        %v3839 = vpack.c.b16 %v3071, %v3063
        %v3840 = vpack.c.b16 %v3072, %v3064
        %v3841 = vpack.c.b16 %v3073, %v3065
        %v3842 = vpack.c.b16 %v3074, %v3066
        %v3843 = vpack.c.b16 %v3083, %v3075
        %v3844 = vpack.c.b16 %v3084, %v3076
        %v3845 = vpack.c.b16 %v3085, %v3077
        %v3846 = vpack.c.b16 %v3086, %v3078
        %v3847 = vpack.c.b16 %v3087, %v3079
        %v3848 = vpack.c.b16 %v3088, %v3080
        %v3849 = vpack.c.b16 %v3089, %v3081
        %v3850 = vpack.c.b16 %v3090, %v3082
        %v3851 = vpack.c.b16 %v3099, %v3091
        %v3852 = vpack.c.b16 %v3100, %v3092
        %v3853 = vpack.c.b16 %v3101, %v3093
        %v3854 = vpack.c.b16 %v3102, %v3094
        %v3855 = vpack.c.b16 %v3103, %v3095
        %v3856 = vpack.c.b16 %v3104, %v3096
        %v3857 = vpack.c.b16 %v3105, %v3097
        %v3858 = vpack.c.b16 %v3106, %v3098
        %v3859 = vpack.c.b16 %v3115, %v3107
        %v3860 = vpack.c.b16 %v3116, %v3108
        %v3861 = vpack.c.b16 %v3117, %v3109
        %v3862 = vpack.c.b16 %v3118, %v3110
        %v3863 = vpack.c.b16 %v3119, %v3111
        %v3864 = vpack.c.b16 %v3120, %v3112
        %v3865 = vpack.c.b16 %v3121, %v3113
        %v3866 = vpack.c.b16 %v3122, %v3114
        %v3867 = vpack.c.b16 %v3131, %v3123
        %v3868 = vpack.c.b16 %v3132, %v3124
        %v3869 = vpack.c.b16 %v3133, %v3125
        %v3870 = vpack.c.b16 %v3134, %v3126
        %v3871 = vpack.c.b16 %v3135, %v3127
        %v3872 = vpack.c.b16 %v3136, %v3128
        %v3873 = vpack.c.b16 %v3137, %v3129
        %v3874 = vpack.c.b16 %v3138, %v3130
        %v3875 = vpack.c.b16 %v3147, %v3139
        %v3876 = vpack.c.b16 %v3148, %v3140
        %v3877 = vpack.c.b16 %v3149, %v3141
        %v3878 = vpack.c.b16 %v3150, %v3142
        %v3879 = vpack.c.b16 %v3151, %v3143
        %v3880 = vpack.c.b16 %v3152, %v3144
        %v3881 = vpack.c.b16 %v3153, %v3145
        %v3882 = vpack.c.b16 %v3154, %v3146
        %v3883 = vpack.c.b16 %v3163, %v3155
        %v3884 = vpack.c.b16 %v3164, %v3156
        %v3885 = vpack.c.b16 %v3165, %v3157
        %v3886 = vpack.c.b16 %v3166, %v3158
        %v3887 = vpack.c.b16 %v3167, %v3159
        %v3888 = vpack.c.b16 %v3168, %v3160
        %v3889 = vpack.c.b16 %v3169, %v3161
        %v3890 = vpack.c.b16 %v3170, %v3162
        %v3891 = vpack.c.b16 %v3179, %v3171
        %v3892 = vpack.c.b16 %v3180, %v3172
        %v3893 = vpack.c.b16 %v3181, %v3173
        %v3894 = vpack.c.b16 %v3182, %v3174
        %v3895 = vpack.c.b16 %v3183, %v3175
        %v3896 = vpack.c.b16 %v3184, %v3176
        %v3897 = vpack.c.b16 %v3185, %v3177
        %v3898 = vpack.c.b16 %v3186, %v3178
        %v3899 = vpack.c.b16 %v3195, %v3187
        %v3900 = vpack.c.b16 %v3196, %v3188
        %v3901 = vpack.c.b16 %v3197, %v3189
        %v3902 = vpack.c.b16 %v3198, %v3190
        %v3903 = vpack.c.b16 %v3199, %v3191
        %v3904 = vpack.c.b16 %v3200, %v3192
        %v3905 = vpack.c.b16 %v3201, %v3193
        %v3906 = vpack.c.b16 %v3202, %v3194
        %v3907 = vpack.c.b16 %v3211, %v3203
        %v3908 = vpack.c.b16 %v3212, %v3204
        %v3909 = vpack.c.b16 %v3213, %v3205
        %v3910 = vpack.c.b16 %v3214, %v3206
        %v3911 = vpack.c.b16 %v3215, %v3207
        %v3912 = vpack.c.b16 %v3216, %v3208
        %v3913 = vpack.c.b16 %v3217, %v3209
        %v3914 = vpack.c.b16 %v3218, %v3210
        %v3915 = vpack.c.b16 %v3227, %v3219
        %v3916 = vpack.c.b16 %v3228, %v3220
        %v3917 = vpack.c.b16 %v3229, %v3221
        %v3918 = vpack.c.b16 %v3230, %v3222
        %v3919 = vpack.c.b16 %v3231, %v3223
        %v3920 = vpack.c.b16 %v3232, %v3224
        %v3921 = vpack.c.b16 %v3233, %v3225
        %v3922 = vpack.c.b16 %v3234, %v3226
        %v3923 = vpack.c.b16 %v3243, %v3235
        %v3924 = vpack.c.b16 %v3244, %v3236
        %v3925 = vpack.c.b16 %v3245, %v3237
        %v3926 = vpack.c.b16 %v3246, %v3238
        %v3927 = vpack.c.b16 %v3247, %v3239
        %v3928 = vpack.c.b16 %v3248, %v3240
        %v3929 = vpack.c.b16 %v3249, %v3241
        %v3930 = vpack.c.b16 %v3250, %v3242
        %v3931 = vpack.c.b16 %v3259, %v3251
        %v3932 = vpack.c.b16 %v3260, %v3252
        %v3933 = vpack.c.b16 %v3261, %v3253
        %v3934 = vpack.c.b16 %v3262, %v3254
        %v3935 = vpack.c.b16 %v3263, %v3255
        %v3936 = vpack.c.b16 %v3264, %v3256
        %v3937 = vpack.c.b16 %v3265, %v3257
        %v3938 = vpack.c.b16 %v3266, %v3258
        %v3939 = vpack.c.b16 %v3275, %v3267
        %v3940 = vpack.c.b16 %v3276, %v3268
        %v3941 = vpack.c.b16 %v3277, %v3269
        %v3942 = vpack.c.b16 %v3278, %v3270
        %v3943 = vpack.c.b16 %v3279, %v3271
        %v3944 = vpack.c.b16 %v3280, %v3272
        %v3945 = vpack.c.b16 %v3281, %v3273
        %v3946 = vpack.c.b16 %v3282, %v3274
        %v3947 = vpack.c.b16 %v3291, %v3283
        %v3948 = vpack.c.b16 %v3292, %v3284
        %v3949 = vpack.c.b16 %v3293, %v3285
        %v3950 = vpack.c.b16 %v3294, %v3286
        %v3951 = vpack.c.b16 %v3295, %v3287
        %v3952 = vpack.c.b16 %v3296, %v3288
        %v3953 = vpack.c.b16 %v3297, %v3289
        %v3954 = vpack.c.b16 %v3298, %v3290
        %v3955 = vpack.c.b16 %v3307, %v3299
        %v3956 = vpack.c.b16 %v3308, %v3300
        %v3957 = vpack.c.b16 %v3309, %v3301
        %v3958 = vpack.c.b16 %v3310, %v3302
        %v3959 = vpack.c.b16 %v3311, %v3303
        %v3960 = vpack.c.b16 %v3312, %v3304
        %v3961 = vpack.c.b16 %v3313, %v3305
        %v3962 = vpack.c.b16 %v3314, %v3306
        %v3963 = vpack.c.b16 %v3323, %v3315
        %v3964 = vpack.c.b16 %v3324, %v3316
        %v3965 = vpack.c.b16 %v3325, %v3317
        %v3966 = vpack.c.b16 %v3326, %v3318
        %v3967 = vpack.c.b16 %v3327, %v3319
        %v3968 = vpack.c.b16 %v3328, %v3320
        %v3969 = vpack.c.b16 %v3329, %v3321
        %v3970 = vpack.c.b16 %v3330, %v3322
        %v3971 = vpack.c.b16 %v3339, %v3331
        %v3972 = vpack.c.b16 %v3340, %v3332
        %v3973 = vpack.c.b16 %v3341, %v3333
        %v3974 = vpack.c.b16 %v3342, %v3334
        %v3975 = vpack.c.b16 %v3343, %v3335
        %v3976 = vpack.c.b16 %v3344, %v3336
        %v3977 = vpack.c.b16 %v3345, %v3337
        %v3978 = vpack.c.b16 %v3346, %v3338
        %v3979 = vpack.c.b16 %v3355, %v3347
        %v3980 = vpack.c.b16 %v3356, %v3348
        %v3981 = vpack.c.b16 %v3357, %v3349
        %v3982 = vpack.c.b16 %v3358, %v3350
        %v3983 = vpack.c.b16 %v3359, %v3351
        %v3984 = vpack.c.b16 %v3360, %v3352
        %v3985 = vpack.c.b16 %v3361, %v3353
        %v3986 = vpack.c.b16 %v3362, %v3354
        %v3987 = vpack.c.b16 %v3371, %v3363
        %v3988 = vpack.c.b16 %v3372, %v3364
        %v3989 = vpack.c.b16 %v3373, %v3365
        %v3990 = vpack.c.b16 %v3374, %v3366
        %v3991 = vpack.c.b16 %v3375, %v3367
        %v3992 = vpack.c.b16 %v3376, %v3368
        %v3993 = vpack.c.b16 %v3377, %v3369
        %v3994 = vpack.c.b16 %v3378, %v3370
        %v3995 = vpack.c.b16 %v3387, %v3379
        %v3996 = vpack.c.b16 %v3388, %v3380
        %v3997 = vpack.c.b16 %v3389, %v3381
        %v3998 = vpack.c.b16 %v3390, %v3382
        %v3999 = vpack.c.b16 %v3391, %v3383
        %v4000 = vpack.c.b16 %v3392, %v3384
        %v4001 = vpack.c.b16 %v3393, %v3385
        %v4002 = vpack.c.b16 %v3394, %v3386
        %v4003 = vpack.c.b16 %v3403, %v3395
        %v4004 = vpack.c.b16 %v3404, %v3396
        %v4005 = vpack.c.b16 %v3405, %v3397
        %v4006 = vpack.c.b16 %v3406, %v3398
        %v4007 = vpack.c.b16 %v3407, %v3399
        %v4008 = vpack.c.b16 %v3408, %v3400
        %v4009 = vpack.c.b16 %v3409, %v3401
        %v4010 = vpack.c.b16 %v3410, %v3402
        %v4011 = vpack.c.b16 %v3419, %v3411
        %v4012 = vpack.c.b16 %v3420, %v3412
        %v4013 = vpack.c.b16 %v3421, %v3413
        %v4014 = vpack.c.b16 %v3422, %v3414
        %v4015 = vpack.c.b16 %v3423, %v3415
        %v4016 = vpack.c.b16 %v3424, %v3416
        %v4017 = vpack.c.b16 %v3425, %v3417
        %v4018 = vpack.c.b16 %v3426, %v3418
        %v4019 = vpack.c.b16 %v3435, %v3427
        %v4020 = vpack.c.b16 %v3436, %v3428
        %v4021 = vpack.c.b16 %v3437, %v3429
        %v4022 = vpack.c.b16 %v3438, %v3430
        %v4023 = vpack.c.b16 %v3439, %v3431
        %v4024 = vpack.c.b16 %v3440, %v3432
        %v4025 = vpack.c.b16 %v3441, %v3433
        %v4026 = vpack.c.b16 %v3442, %v3434
        %v4027 = vpack.c.b16 %v3451, %v3443
        %v4028 = vpack.c.b16 %v3452, %v3444
        %v4029 = vpack.c.b16 %v3453, %v3445
        %v4030 = vpack.c.b16 %v3454, %v3446
        %v4031 = vpack.c.b16 %v3455, %v3447
        %v4032 = vpack.c.b16 %v3456, %v3448
        %v4033 = vpack.c.b16 %v3457, %v3449
        %v4034 = vpack.c.b16 %v3458, %v3450
        %v4035 = vpack.c.b16 %v3467, %v3459
        %v4036 = vpack.c.b16 %v3468, %v3460
        %v4037 = vpack.c.b16 %v3469, %v3461
        %v4038 = vpack.c.b16 %v3470, %v3462
        %v4039 = vpack.c.b16 %v3471, %v3463
        %v4040 = vpack.c.b16 %v3472, %v3464
        %v4041 = vpack.c.b16 %v3473, %v3465
        %v4042 = vpack.c.b16 %v3474, %v3466
        %v4043 = vpack.c.b16 %v3483, %v3475
        %v4044 = vpack.c.b16 %v3484, %v3476
        %v4045 = vpack.c.b16 %v3485, %v3477
        %v4046 = vpack.c.b16 %v3486, %v3478
        %v4047 = vpack.c.b16 %v3487, %v3479
        %v4048 = vpack.c.b16 %v3488, %v3480
        %v4049 = vpack.c.b16 %v3489, %v3481
        %v4050 = vpack.c.b16 %v3490, %v3482
        %v4051 = vpack.c.b16 %v3499, %v3491
        %v4052 = vpack.c.b16 %v3500, %v3492
        %v4053 = vpack.c.b16 %v3501, %v3493
        %v4054 = vpack.c.b16 %v3502, %v3494
        %v4055 = vpack.c.b16 %v3503, %v3495
        %v4056 = vpack.c.b16 %v3504, %v3496
        %v4057 = vpack.c.b16 %v3505, %v3497
        %v4058 = vpack.c.b16 %v3506, %v3498
        %v4059 = vpack.c.b16 %v3515, %v3507
        %v4060 = vpack.c.b16 %v3516, %v3508
        %v4061 = vpack.c.b16 %v3517, %v3509
        %v4062 = vpack.c.b16 %v3518, %v3510
        %v4063 = vpack.c.b16 %v3519, %v3511
        %v4064 = vpack.c.b16 %v3520, %v3512
        %v4065 = vpack.c.b16 %v3521, %v3513
        %v4066 = vpack.c.b16 %v3522, %v3514
        %v4067 = vpack.c.b16 %v3531, %v3523
        %v4068 = vpack.c.b16 %v3532, %v3524
        %v4069 = vpack.c.b16 %v3533, %v3525
        %v4070 = vpack.c.b16 %v3534, %v3526
        %v4071 = vpack.c.b16 %v3535, %v3527
        %v4072 = vpack.c.b16 %v3536, %v3528
        %v4073 = vpack.c.b16 %v3537, %v3529
        %v4074 = vpack.c.b16 %v3538, %v3530
        %v4075 = vpack.c.b16 %v3547, %v3539
        %v4076 = vpack.c.b16 %v3548, %v3540
        %v4077 = vpack.c.b16 %v3549, %v3541
        %v4078 = vpack.c.b16 %v3550, %v3542
        %v4079 = vpack.c.b16 %v3551, %v3543
        %v4080 = vpack.c.b16 %v3552, %v3544
        %v4081 = vpack.c.b16 %v3553, %v3545
        %v4082 = vpack.c.b16 %v3554, %v3546
        %v4083 = vpack.c.b16 %v3563, %v3555
        %v4084 = vpack.c.b16 %v3564, %v3556
        %v4085 = vpack.c.b16 %v3565, %v3557
        %v4086 = vpack.c.b16 %v3566, %v3558
        %v4087 = vpack.c.b16 %v3567, %v3559
        %v4088 = vpack.c.b16 %v3568, %v3560
        %v4089 = vpack.c.b16 %v3569, %v3561
        %v4090 = vpack.c.b16 %v3570, %v3562
        %v4091 = vpack.c.b16 %v3579, %v3571
        %v4092 = vpack.c.b16 %v3580, %v3572
        %v4093 = vpack.c.b16 %v3581, %v3573
        %v4094 = vpack.c.b16 %v3582, %v3574
        %v4095 = vpack.c.b16 %v3583, %v3575
        %v4096 = vpack.c.b16 %v3584, %v3576
        %v4097 = vpack.c.b16 %v3585, %v3577
        %v4098 = vpack.c.b16 %v3586, %v3578
        %4611 = vmatprep.subr.bf16.mxu0 %v3588
        %4612 = vmatpush1.bf16.msra.mxu0 %v3587
        %4613 = vmatprep.subr.bf16.mxu0 %v3596
        %4614 = vmatpush1.bf16.msra.mxu0 %v3595
        %4615 = vmatprep.subr.bf16.mxu0 %v3604
        %4616 = vmatpush1.bf16.msra.mxu0 %v3603
        %4617 = vmatprep.subr.bf16.mxu0 %v3612
        %4618 = vmatpush1.bf16.msra.mxu0 %v3611
        %4619 = vmatprep.subr.bf16.mxu0 %v3620
        %4620 = vmatpush1.bf16.msra.mxu0 %v3619
        %4621 = vmatprep.subr.bf16.mxu0 %v3628
        %4622 = vmatpush1.bf16.msra.mxu0 %v3627
        %4623 = vmatprep.subr.bf16.mxu0 %v3636
        %4624 = vmatpush1.bf16.msra.mxu0 %v3635
        %4625 = vmatprep.subr.bf16.mxu0 %v3644
        %4626 = vmatpush1.bf16.msra.mxu0 %v3643
        %4627 = vmatprep.subr.bf16.mxu0 %v3652
        %4628 = vmatpush1.bf16.msra.mxu0 %v3651
        %4629 = vmatprep.subr.bf16.mxu0 %v3660
        %4630 = vmatpush1.bf16.msra.mxu0 %v3659
        %4631 = vmatprep.subr.bf16.mxu0 %v3668
        %4632 = vmatpush1.bf16.msra.mxu0 %v3667
        %4633 = vmatprep.subr.bf16.mxu0 %v3676
        %4634 = vmatpush1.bf16.msra.mxu0 %v3675
        %4635 = vmatprep.subr.bf16.mxu0 %v3684
        %4636 = vmatpush1.bf16.msra.mxu0 %v3683
        %4637 = vmatprep.subr.bf16.mxu0 %v3692
        %4638 = vmatpush1.bf16.msra.mxu0 %v3691
        %4639 = vmatprep.subr.bf16.mxu0 %v3700
        %4640 = vmatpush1.bf16.msra.mxu0 %v3699
        %4641 = vmatprep.subr.bf16.mxu0 %v3708
        %4642 = vmatpush1.bf16.msra.mxu0 %v3707
        %4643 = vmatprep.mubr.bf16.mxu0 %v2036
        %4644 = vmatmul.mubr.bf16.gmra.mrb[0].mxu0 %v2035
        %v4645 = vpop.f32.mrb[0].mxu0
        %v4646 = vadd.f32 0.0, %v4645
        %v4647 = vpop.f32.mrb[0].mxu0
        %v4648 = vadd.f32 0.0, %v4647
        %v4649 = vpop.f32.mrb[0].mxu0
        %v4650 = vadd.f32 0.0, %v4649
        %v4651 = vpop.f32.mrb[0].mxu0
        %v4652 = vadd.f32 0.0, %v4651
        %4653 = vdwg.mxu0
        %4654 = vmatprep.subr.bf16.mxu0 %v3716
        %4655 = vmatpush1.bf16.msra.mxu0 %v3715
        %4656 = vmatprep.subr.bf16.mxu0 %v3724
        %4657 = vmatpush1.bf16.msra.mxu0 %v3723
        %4658 = vmatprep.subr.bf16.mxu0 %v3732
        %4659 = vmatpush1.bf16.msra.mxu0 %v3731
        %4660 = vmatprep.subr.bf16.mxu0 %v3740
        %4661 = vmatpush1.bf16.msra.mxu0 %v3739
        %4662 = vmatprep.subr.bf16.mxu0 %v3748
        %4663 = vmatpush1.bf16.msra.mxu0 %v3747
        %4664 = vmatprep.subr.bf16.mxu0 %v3756
        %4665 = vmatpush1.bf16.msra.mxu0 %v3755
        %4666 = vmatprep.subr.bf16.mxu0 %v3764
        %4667 = vmatpush1.bf16.msra.mxu0 %v3763
        %4668 = vmatprep.subr.bf16.mxu0 %v3772
        %4669 = vmatpush1.bf16.msra.mxu0 %v3771
        %4670 = vmatprep.subr.bf16.mxu0 %v3780
        %4671 = vmatpush1.bf16.msra.mxu0 %v3779
        %4672 = vmatprep.subr.bf16.mxu0 %v3788
        %4673 = vmatpush1.bf16.msra.mxu0 %v3787
        %4674 = vmatprep.subr.bf16.mxu0 %v3796
        %4675 = vmatpush1.bf16.msra.mxu0 %v3795
        %4676 = vmatprep.subr.bf16.mxu0 %v3804
        %4677 = vmatpush1.bf16.msra.mxu0 %v3803
        %4678 = vmatprep.subr.bf16.mxu0 %v3812
        %4679 = vmatpush1.bf16.msra.mxu0 %v3811
        %4680 = vmatprep.subr.bf16.mxu0 %v3820
        %4681 = vmatpush1.bf16.msra.mxu0 %v3819
        %4682 = vmatprep.subr.bf16.mxu0 %v3828
        %4683 = vmatpush1.bf16.msra.mxu0 %v3827
        %4684 = vmatprep.subr.bf16.mxu0 %v3836
        %4685 = vmatpush1.bf16.msra.mxu0 %v3835
        %4686 = vmatprep.mubr.bf16.mxu0 %v2038
        %4687 = vmatmul.mubr.bf16.gmra.mrb[0].mxu0 %v2037
        %v4688 = vpop.f32.mrb[0].mxu0
        %v4689 = vadd.f32 %v4646, %v4688
        %v4690 = vpop.f32.mrb[0].mxu0
        %v4691 = vadd.f32 %v4648, %v4690
        %v4692 = vpop.f32.mrb[0].mxu0
        %v4693 = vadd.f32 %v4650, %v4692
        %v4694 = vpop.f32.mrb[0].mxu0
        %v4695 = vadd.f32 %v4652, %v4694
        %4696 = vdwg.mxu0
        %4697 = vmatprep.subr.bf16.mxu0 %v3844
        %4698 = vmatpush1.bf16.msra.mxu0 %v3843
        %4699 = vmatprep.subr.bf16.mxu0 %v3852
        %4700 = vmatpush1.bf16.msra.mxu0 %v3851
        %4701 = vmatprep.subr.bf16.mxu0 %v3860
        %4702 = vmatpush1.bf16.msra.mxu0 %v3859
        %4703 = vmatprep.subr.bf16.mxu0 %v3868
        %4704 = vmatpush1.bf16.msra.mxu0 %v3867
        %4705 = vmatprep.subr.bf16.mxu0 %v3876
        %4706 = vmatpush1.bf16.msra.mxu0 %v3875
        %4707 = vmatprep.subr.bf16.mxu0 %v3884
        %4708 = vmatpush1.bf16.msra.mxu0 %v3883
        %4709 = vmatprep.subr.bf16.mxu0 %v3892
        %4710 = vmatpush1.bf16.msra.mxu0 %v3891
        %4711 = vmatprep.subr.bf16.mxu0 %v3900
        %4712 = vmatpush1.bf16.msra.mxu0 %v3899
        %4713 = vmatprep.subr.bf16.mxu0 %v3908
        %4714 = vmatpush1.bf16.msra.mxu0 %v3907
        %4715 = vmatprep.subr.bf16.mxu0 %v3916
        %4716 = vmatpush1.bf16.msra.mxu0 %v3915
        %4717 = vmatprep.subr.bf16.mxu0 %v3924
        %4718 = vmatpush1.bf16.msra.mxu0 %v3923
        %4719 = vmatprep.subr.bf16.mxu0 %v3932
        %4720 = vmatpush1.bf16.msra.mxu0 %v3931
        %4721 = vmatprep.subr.bf16.mxu0 %v3940
        %4722 = vmatpush1.bf16.msra.mxu0 %v3939
        %4723 = vmatprep.subr.bf16.mxu0 %v3948
        %4724 = vmatpush1.bf16.msra.mxu0 %v3947
        %4725 = vmatprep.subr.bf16.mxu0 %v3956
        %4726 = vmatpush1.bf16.msra.mxu0 %v3955
        %4727 = vmatprep.subr.bf16.mxu0 %v3964
        %4728 = vmatpush1.bf16.msra.mxu0 %v3963
        %4729 = vmatprep.mubr.bf16.mxu0 %v2040
        %4730 = vmatmul.mubr.bf16.gmra.mrb[0].mxu0 %v2039
        %v4731 = vpop.f32.mrb[0].mxu0
        %v4732 = vadd.f32 %v4689, %v4731
        %v4733 = vpop.f32.mrb[0].mxu0
        %v4734 = vadd.f32 %v4691, %v4733
        %v4735 = vpop.f32.mrb[0].mxu0
        %v4736 = vadd.f32 %v4693, %v4735
        %v4737 = vpop.f32.mrb[0].mxu0
        %v4738 = vadd.f32 %v4695, %v4737
        %4739 = vdwg.mxu0
        %4740 = vmatprep.subr.bf16.mxu0 %v3972
        %4741 = vmatpush1.bf16.msra.mxu0 %v3971
        %4742 = vmatprep.subr.bf16.mxu0 %v3980
        %4743 = vmatpush1.bf16.msra.mxu0 %v3979
        %4744 = vmatprep.subr.bf16.mxu0 %v3988
        %4745 = vmatpush1.bf16.msra.mxu0 %v3987
        %4746 = vmatprep.subr.bf16.mxu0 %v3996
        %4747 = vmatpush1.bf16.msra.mxu0 %v3995
        %4748 = vmatprep.subr.bf16.mxu0 %v4004
        %4749 = vmatpush1.bf16.msra.mxu0 %v4003
        %4750 = vmatprep.subr.bf16.mxu0 %v4012
        %4751 = vmatpush1.bf16.msra.mxu0 %v4011
        %4752 = vmatprep.subr.bf16.mxu0 %v4020
        %4753 = vmatpush1.bf16.msra.mxu0 %v4019
        %4754 = vmatprep.subr.bf16.mxu0 %v4028
        %4755 = vmatpush1.bf16.msra.mxu0 %v4027
        %4756 = vmatprep.subr.bf16.mxu0 %v4036
        %4757 = vmatpush1.bf16.msra.mxu0 %v4035
        %4758 = vmatprep.subr.bf16.mxu0 %v4044
        %4759 = vmatpush1.bf16.msra.mxu0 %v4043
        %4760 = vmatprep.subr.bf16.mxu0 %v4052
        %4761 = vmatpush1.bf16.msra.mxu0 %v4051
        %4762 = vmatprep.subr.bf16.mxu0 %v4060
        %4763 = vmatpush1.bf16.msra.mxu0 %v4059
        %4764 = vmatprep.subr.bf16.mxu0 %v4068
        %4765 = vmatpush1.bf16.msra.mxu0 %v4067
        %4766 = vmatprep.subr.bf16.mxu0 %v4076
        %4767 = vmatpush1.bf16.msra.mxu0 %v4075
        %4768 = vmatprep.subr.bf16.mxu0 %v4084
        %4769 = vmatpush1.bf16.msra.mxu0 %v4083
        %4770 = vmatprep.subr.bf16.mxu0 %v4092
        %4771 = vmatpush1.bf16.msra.mxu0 %v4091
        %4772 = vmatprep.mubr.bf16.mxu0 %v2042
        %4773 = vmatmul.mubr.bf16.gmra.mrb[0].mxu0 %v2041
        %v4774 = vpop.f32.mrb[0].mxu0
        %v4775 = vadd.f32 %v4732, %v4774
        %v4776 = vpop.f32.mrb[0].mxu0
        %v4777 = vadd.f32 %v4734, %v4776
        %v4778 = vpop.f32.mrb[0].mxu0
        %v4779 = vadd.f32 %v4736, %v4778
        %v4780 = vpop.f32.mrb[0].mxu0
        %v4781 = vadd.f32 %v4738, %v4780
        %4782 = vdwg.mxu0
        %4783 = vmatprep.subr.bf16.mxu0 %v3590
        %4784 = vmatpush1.bf16.msra.mxu0 %v3589
        %4785 = vmatprep.subr.bf16.mxu0 %v3598
        %4786 = vmatpush1.bf16.msra.mxu0 %v3597
        %4787 = vmatprep.subr.bf16.mxu0 %v3606
        %4788 = vmatpush1.bf16.msra.mxu0 %v3605
        %4789 = vmatprep.subr.bf16.mxu0 %v3614
        %4790 = vmatpush1.bf16.msra.mxu0 %v3613
        %4791 = vmatprep.subr.bf16.mxu0 %v3622
        %4792 = vmatpush1.bf16.msra.mxu0 %v3621
        %4793 = vmatprep.subr.bf16.mxu0 %v3630
        %4794 = vmatpush1.bf16.msra.mxu0 %v3629
        %4795 = vmatprep.subr.bf16.mxu0 %v3638
        %4796 = vmatpush1.bf16.msra.mxu0 %v3637
        %4797 = vmatprep.subr.bf16.mxu0 %v3646
        %4798 = vmatpush1.bf16.msra.mxu0 %v3645
        %4799 = vmatprep.subr.bf16.mxu0 %v3654
        %4800 = vmatpush1.bf16.msra.mxu0 %v3653
        %4801 = vmatprep.subr.bf16.mxu0 %v3662
        %4802 = vmatpush1.bf16.msra.mxu0 %v3661
        %4803 = vmatprep.subr.bf16.mxu0 %v3670
        %4804 = vmatpush1.bf16.msra.mxu0 %v3669
        %4805 = vmatprep.subr.bf16.mxu0 %v3678
        %4806 = vmatpush1.bf16.msra.mxu0 %v3677
        %4807 = vmatprep.subr.bf16.mxu0 %v3686
        %4808 = vmatpush1.bf16.msra.mxu0 %v3685
        %4809 = vmatprep.subr.bf16.mxu0 %v3694
        %4810 = vmatpush1.bf16.msra.mxu0 %v3693
        %4811 = vmatprep.subr.bf16.mxu0 %v3702
        %4812 = vmatpush1.bf16.msra.mxu0 %v3701
        %4813 = vmatprep.subr.bf16.mxu0 %v3710
        %4814 = vmatpush1.bf16.msra.mxu0 %v3709
        %4815 = vmatprep.mubr.bf16.mxu0 %v2036
        %4816 = vmatmul.mubr.bf16.gmra.mrb[0].mxu0 %v2035
        %v4817 = vpop.f32.mrb[0].mxu0
        %v4818 = vadd.f32 0.0, %v4817
        %v4819 = vpop.f32.mrb[0].mxu0
        %v4820 = vadd.f32 0.0, %v4819
        %v4821 = vpop.f32.mrb[0].mxu0
        %v4822 = vadd.f32 0.0, %v4821
        %v4823 = vpop.f32.mrb[0].mxu0
        %v4824 = vadd.f32 0.0, %v4823
        %4825 = vdwg.mxu0
        %4826 = vmatprep.subr.bf16.mxu0 %v3718
        %4827 = vmatpush1.bf16.msra.mxu0 %v3717
        %4828 = vmatprep.subr.bf16.mxu0 %v3726
        %4829 = vmatpush1.bf16.msra.mxu0 %v3725
        %4830 = vmatprep.subr.bf16.mxu0 %v3734
        %4831 = vmatpush1.bf16.msra.mxu0 %v3733
        %4832 = vmatprep.subr.bf16.mxu0 %v3742
        %4833 = vmatpush1.bf16.msra.mxu0 %v3741
        %4834 = vmatprep.subr.bf16.mxu0 %v3750
        %4835 = vmatpush1.bf16.msra.mxu0 %v3749
        %4836 = vmatprep.subr.bf16.mxu0 %v3758
        %4837 = vmatpush1.bf16.msra.mxu0 %v3757
        %4838 = vmatprep.subr.bf16.mxu0 %v3766
        %4839 = vmatpush1.bf16.msra.mxu0 %v3765
        %4840 = vmatprep.subr.bf16.mxu0 %v3774
        %4841 = vmatpush1.bf16.msra.mxu0 %v3773
        %4842 = vmatprep.subr.bf16.mxu0 %v3782
        %4843 = vmatpush1.bf16.msra.mxu0 %v3781
        %4844 = vmatprep.subr.bf16.mxu0 %v3790
        %4845 = vmatpush1.bf16.msra.mxu0 %v3789
        %4846 = vmatprep.subr.bf16.mxu0 %v3798
        %4847 = vmatpush1.bf16.msra.mxu0 %v3797
        %4848 = vmatprep.subr.bf16.mxu0 %v3806
        %4849 = vmatpush1.bf16.msra.mxu0 %v3805
        %4850 = vmatprep.subr.bf16.mxu0 %v3814
        %4851 = vmatpush1.bf16.msra.mxu0 %v3813
        %4852 = vmatprep.subr.bf16.mxu0 %v3822
        %4853 = vmatpush1.bf16.msra.mxu0 %v3821
        %4854 = vmatprep.subr.bf16.mxu0 %v3830
        %4855 = vmatpush1.bf16.msra.mxu0 %v3829
        %4856 = vmatprep.subr.bf16.mxu0 %v3838
        %4857 = vmatpush1.bf16.msra.mxu0 %v3837
        %4858 = vmatprep.mubr.bf16.mxu0 %v2038
        %4859 = vmatmul.mubr.bf16.gmra.mrb[0].mxu0 %v2037
        %v4860 = vpop.f32.mrb[0].mxu0
        %v4861 = vadd.f32 %v4818, %v4860
        %v4862 = vpop.f32.mrb[0].mxu0
        %v4863 = vadd.f32 %v4820, %v4862
        %v4864 = vpop.f32.mrb[0].mxu0
        %v4865 = vadd.f32 %v4822, %v4864
        %v4866 = vpop.f32.mrb[0].mxu0
        %v4867 = vadd.f32 %v4824, %v4866
        %4868 = vdwg.mxu0
        %4869 = vmatprep.subr.bf16.mxu0 %v3846
        %4870 = vmatpush1.bf16.msra.mxu0 %v3845
        %4871 = vmatprep.subr.bf16.mxu0 %v3854
        %4872 = vmatpush1.bf16.msra.mxu0 %v3853
        %4873 = vmatprep.subr.bf16.mxu0 %v3862
        %4874 = vmatpush1.bf16.msra.mxu0 %v3861
        %4875 = vmatprep.subr.bf16.mxu0 %v3870
        %4876 = vmatpush1.bf16.msra.mxu0 %v3869
        %4877 = vmatprep.subr.bf16.mxu0 %v3878
        %4878 = vmatpush1.bf16.msra.mxu0 %v3877
        %4879 = vmatprep.subr.bf16.mxu0 %v3886
        %4880 = vmatpush1.bf16.msra.mxu0 %v3885
        %4881 = vmatprep.subr.bf16.mxu0 %v3894
        %4882 = vmatpush1.bf16.msra.mxu0 %v3893
        %4883 = vmatprep.subr.bf16.mxu0 %v3902
        %4884 = vmatpush1.bf16.msra.mxu0 %v3901
        %4885 = vmatprep.subr.bf16.mxu0 %v3910
        %4886 = vmatpush1.bf16.msra.mxu0 %v3909
        %4887 = vmatprep.subr.bf16.mxu0 %v3918
        %4888 = vmatpush1.bf16.msra.mxu0 %v3917
        %4889 = vmatprep.subr.bf16.mxu0 %v3926
        %4890 = vmatpush1.bf16.msra.mxu0 %v3925
        %4891 = vmatprep.subr.bf16.mxu0 %v3934
        %4892 = vmatpush1.bf16.msra.mxu0 %v3933
        %4893 = vmatprep.subr.bf16.mxu0 %v3942
        %4894 = vmatpush1.bf16.msra.mxu0 %v3941
        %4895 = vmatprep.subr.bf16.mxu0 %v3950
        %4896 = vmatpush1.bf16.msra.mxu0 %v3949
        %4897 = vmatprep.subr.bf16.mxu0 %v3958
        %4898 = vmatpush1.bf16.msra.mxu0 %v3957
        %4899 = vmatprep.subr.bf16.mxu0 %v3966
        %4900 = vmatpush1.bf16.msra.mxu0 %v3965
        %4901 = vmatprep.mubr.bf16.mxu0 %v2040
        %4902 = vmatmul.mubr.bf16.gmra.mrb[0].mxu0 %v2039
        %v4903 = vpop.f32.mrb[0].mxu0
        %v4904 = vadd.f32 %v4861, %v4903
        %v4905 = vpop.f32.mrb[0].mxu0
        %v4906 = vadd.f32 %v4863, %v4905
        %v4907 = vpop.f32.mrb[0].mxu0
        %v4908 = vadd.f32 %v4865, %v4907
        %v4909 = vpop.f32.mrb[0].mxu0
        %v4910 = vadd.f32 %v4867, %v4909
        %4911 = vdwg.mxu0
        %4912 = vmatprep.subr.bf16.mxu0 %v3974
        %4913 = vmatpush1.bf16.msra.mxu0 %v3973
        %4914 = vmatprep.subr.bf16.mxu0 %v3982
        %4915 = vmatpush1.bf16.msra.mxu0 %v3981
        %4916 = vmatprep.subr.bf16.mxu0 %v3990
        %4917 = vmatpush1.bf16.msra.mxu0 %v3989
        %4918 = vmatprep.subr.bf16.mxu0 %v3998
        %4919 = vmatpush1.bf16.msra.mxu0 %v3997
        %4920 = vmatprep.subr.bf16.mxu0 %v4006
        %4921 = vmatpush1.bf16.msra.mxu0 %v4005
        %4922 = vmatprep.subr.bf16.mxu0 %v4014
        %4923 = vmatpush1.bf16.msra.mxu0 %v4013
        %4924 = vmatprep.subr.bf16.mxu0 %v4022
        %4925 = vmatpush1.bf16.msra.mxu0 %v4021
        %4926 = vmatprep.subr.bf16.mxu0 %v4030
        %4927 = vmatpush1.bf16.msra.mxu0 %v4029
        %4928 = vmatprep.subr.bf16.mxu0 %v4038
        %4929 = vmatpush1.bf16.msra.mxu0 %v4037
        %4930 = vmatprep.subr.bf16.mxu0 %v4046
        %4931 = vmatpush1.bf16.msra.mxu0 %v4045
        %4932 = vmatprep.subr.bf16.mxu0 %v4054
        %4933 = vmatpush1.bf16.msra.mxu0 %v4053
        %4934 = vmatprep.subr.bf16.mxu0 %v4062
        %4935 = vmatpush1.bf16.msra.mxu0 %v4061
        %4936 = vmatprep.subr.bf16.mxu0 %v4070
        %4937 = vmatpush1.bf16.msra.mxu0 %v4069
        %4938 = vmatprep.subr.bf16.mxu0 %v4078
        %4939 = vmatpush1.bf16.msra.mxu0 %v4077
        %4940 = vmatprep.subr.bf16.mxu0 %v4086
        %4941 = vmatpush1.bf16.msra.mxu0 %v4085
        %4942 = vmatprep.subr.bf16.mxu0 %v4094
        %4943 = vmatpush1.bf16.msra.mxu0 %v4093
        %4944 = vmatprep.mubr.bf16.mxu0 %v2042
        %4945 = vmatmul.mubr.bf16.gmra.mrb[0].mxu0 %v2041
        %v4946 = vpop.f32.mrb[0].mxu0
        %v4947 = vadd.f32 %v4904, %v4946
        %v4948 = vpop.f32.mrb[0].mxu0
        %v4949 = vadd.f32 %v4906, %v4948
        %v4950 = vpop.f32.mrb[0].mxu0
        %v4951 = vadd.f32 %v4908, %v4950
        %v4952 = vpop.f32.mrb[0].mxu0
        %v4953 = vadd.f32 %v4910, %v4952
        %4954 = vdwg.mxu0
        %4955 = vmatprep.subr.bf16.mxu0 %v3592
        %4956 = vmatpush1.bf16.msra.mxu0 %v3591
        %4957 = vmatprep.subr.bf16.mxu0 %v3600
        %4958 = vmatpush1.bf16.msra.mxu0 %v3599
        %4959 = vmatprep.subr.bf16.mxu0 %v3608
        %4960 = vmatpush1.bf16.msra.mxu0 %v3607
        %4961 = vmatprep.subr.bf16.mxu0 %v3616
        %4962 = vmatpush1.bf16.msra.mxu0 %v3615
        %4963 = vmatprep.subr.bf16.mxu0 %v3624
        %4964 = vmatpush1.bf16.msra.mxu0 %v3623
        %4965 = vmatprep.subr.bf16.mxu0 %v3632
        %4966 = vmatpush1.bf16.msra.mxu0 %v3631
        %4967 = vmatprep.subr.bf16.mxu0 %v3640
        %4968 = vmatpush1.bf16.msra.mxu0 %v3639
        %4969 = vmatprep.subr.bf16.mxu0 %v3648
        %4970 = vmatpush1.bf16.msra.mxu0 %v3647
        %4971 = vmatprep.subr.bf16.mxu0 %v3656
        %4972 = vmatpush1.bf16.msra.mxu0 %v3655
        %4973 = vmatprep.subr.bf16.mxu0 %v3664
        %4974 = vmatpush1.bf16.msra.mxu0 %v3663
        %4975 = vmatprep.subr.bf16.mxu0 %v3672
        %4976 = vmatpush1.bf16.msra.mxu0 %v3671
        %4977 = vmatprep.subr.bf16.mxu0 %v3680
        %4978 = vmatpush1.bf16.msra.mxu0 %v3679
        %4979 = vmatprep.subr.bf16.mxu0 %v3688
        %4980 = vmatpush1.bf16.msra.mxu0 %v3687
        %4981 = vmatprep.subr.bf16.mxu0 %v3696
        %4982 = vmatpush1.bf16.msra.mxu0 %v3695
        %4983 = vmatprep.subr.bf16.mxu0 %v3704
        %4984 = vmatpush1.bf16.msra.mxu0 %v3703
        %4985 = vmatprep.subr.bf16.mxu0 %v3712
        %4986 = vmatpush1.bf16.msra.mxu0 %v3711
        %4987 = vmatprep.mubr.bf16.mxu0 %v2036
        %4988 = vmatmul.mubr.bf16.gmra.mrb[0].mxu0 %v2035
        %v4989 = vpop.f32.mrb[0].mxu0
        %v4990 = vadd.f32 0.0, %v4989
        %v4991 = vpop.f32.mrb[0].mxu0
        %v4992 = vadd.f32 0.0, %v4991
        %v4993 = vpop.f32.mrb[0].mxu0
        %v4994 = vadd.f32 0.0, %v4993
        %v4995 = vpop.f32.mrb[0].mxu0
        %v4996 = vadd.f32 0.0, %v4995
        %4997 = vdwg.mxu0
        %4998 = vmatprep.subr.bf16.mxu0 %v3720
        %4999 = vmatpush1.bf16.msra.mxu0 %v3719
        %5000 = vmatprep.subr.bf16.mxu0 %v3728
        %5001 = vmatpush1.bf16.msra.mxu0 %v3727
        %5002 = vmatprep.subr.bf16.mxu0 %v3736
        %5003 = vmatpush1.bf16.msra.mxu0 %v3735
        %5004 = vmatprep.subr.bf16.mxu0 %v3744
        %5005 = vmatpush1.bf16.msra.mxu0 %v3743
        %5006 = vmatprep.subr.bf16.mxu0 %v3752
        %5007 = vmatpush1.bf16.msra.mxu0 %v3751
        %5008 = vmatprep.subr.bf16.mxu0 %v3760
        %5009 = vmatpush1.bf16.msra.mxu0 %v3759
        %5010 = vmatprep.subr.bf16.mxu0 %v3768
        %5011 = vmatpush1.bf16.msra.mxu0 %v3767
        %5012 = vmatprep.subr.bf16.mxu0 %v3776
        %5013 = vmatpush1.bf16.msra.mxu0 %v3775
        %5014 = vmatprep.subr.bf16.mxu0 %v3784
        %5015 = vmatpush1.bf16.msra.mxu0 %v3783
        %5016 = vmatprep.subr.bf16.mxu0 %v3792
        %5017 = vmatpush1.bf16.msra.mxu0 %v3791
        %5018 = vmatprep.subr.bf16.mxu0 %v3800
        %5019 = vmatpush1.bf16.msra.mxu0 %v3799
        %5020 = vmatprep.subr.bf16.mxu0 %v3808
        %5021 = vmatpush1.bf16.msra.mxu0 %v3807
        %5022 = vmatprep.subr.bf16.mxu0 %v3816
        %5023 = vmatpush1.bf16.msra.mxu0 %v3815
        %5024 = vmatprep.subr.bf16.mxu0 %v3824
        %5025 = vmatpush1.bf16.msra.mxu0 %v3823
        %5026 = vmatprep.subr.bf16.mxu0 %v3832
        %5027 = vmatpush1.bf16.msra.mxu0 %v3831
        %5028 = vmatprep.subr.bf16.mxu0 %v3840
        %5029 = vmatpush1.bf16.msra.mxu0 %v3839
        %5030 = vmatprep.mubr.bf16.mxu0 %v2038
        %5031 = vmatmul.mubr.bf16.gmra.mrb[0].mxu0 %v2037
        %v5032 = vpop.f32.mrb[0].mxu0
        %v5033 = vadd.f32 %v4990, %v5032
        %v5034 = vpop.f32.mrb[0].mxu0
        %v5035 = vadd.f32 %v4992, %v5034
        %v5036 = vpop.f32.mrb[0].mxu0
        %v5037 = vadd.f32 %v4994, %v5036
        %v5038 = vpop.f32.mrb[0].mxu0
        %v5039 = vadd.f32 %v4996, %v5038
        %5040 = vdwg.mxu0
        %5041 = vmatprep.subr.bf16.mxu0 %v3848
        %5042 = vmatpush1.bf16.msra.mxu0 %v3847
        %5043 = vmatprep.subr.bf16.mxu0 %v3856
        %5044 = vmatpush1.bf16.msra.mxu0 %v3855
        %5045 = vmatprep.subr.bf16.mxu0 %v3864
        %5046 = vmatpush1.bf16.msra.mxu0 %v3863
        %5047 = vmatprep.subr.bf16.mxu0 %v3872
        %5048 = vmatpush1.bf16.msra.mxu0 %v3871
        %5049 = vmatprep.subr.bf16.mxu0 %v3880
        %5050 = vmatpush1.bf16.msra.mxu0 %v3879
        %5051 = vmatprep.subr.bf16.mxu0 %v3888
        %5052 = vmatpush1.bf16.msra.mxu0 %v3887
        %5053 = vmatprep.subr.bf16.mxu0 %v3896
        %5054 = vmatpush1.bf16.msra.mxu0 %v3895
        %5055 = vmatprep.subr.bf16.mxu0 %v3904
        %5056 = vmatpush1.bf16.msra.mxu0 %v3903
        %5057 = vmatprep.subr.bf16.mxu0 %v3912
        %5058 = vmatpush1.bf16.msra.mxu0 %v3911
        %5059 = vmatprep.subr.bf16.mxu0 %v3920
        %5060 = vmatpush1.bf16.msra.mxu0 %v3919
        %5061 = vmatprep.subr.bf16.mxu0 %v3928
        %5062 = vmatpush1.bf16.msra.mxu0 %v3927
        %5063 = vmatprep.subr.bf16.mxu0 %v3936
        %5064 = vmatpush1.bf16.msra.mxu0 %v3935
        %5065 = vmatprep.subr.bf16.mxu0 %v3944
        %5066 = vmatpush1.bf16.msra.mxu0 %v3943
        %5067 = vmatprep.subr.bf16.mxu0 %v3952
        %5068 = vmatpush1.bf16.msra.mxu0 %v3951
        %5069 = vmatprep.subr.bf16.mxu0 %v3960
        %5070 = vmatpush1.bf16.msra.mxu0 %v3959
        %5071 = vmatprep.subr.bf16.mxu0 %v3968
        %5072 = vmatpush1.bf16.msra.mxu0 %v3967
        %5073 = vmatprep.mubr.bf16.mxu0 %v2040
        %5074 = vmatmul.mubr.bf16.gmra.mrb[0].mxu0 %v2039
        %v5075 = vpop.f32.mrb[0].mxu0
        %v5076 = vadd.f32 %v5033, %v5075
        %v5077 = vpop.f32.mrb[0].mxu0
        %v5078 = vadd.f32 %v5035, %v5077
        %v5079 = vpop.f32.mrb[0].mxu0
        %v5080 = vadd.f32 %v5037, %v5079
        %v5081 = vpop.f32.mrb[0].mxu0
        %v5082 = vadd.f32 %v5039, %v5081
        %5083 = vdwg.mxu0
        %5084 = vmatprep.subr.bf16.mxu0 %v3976
        %5085 = vmatpush1.bf16.msra.mxu0 %v3975
        %5086 = vmatprep.subr.bf16.mxu0 %v3984
        %5087 = vmatpush1.bf16.msra.mxu0 %v3983
        %5088 = vmatprep.subr.bf16.mxu0 %v3992
        %5089 = vmatpush1.bf16.msra.mxu0 %v3991
        %5090 = vmatprep.subr.bf16.mxu0 %v4000
        %5091 = vmatpush1.bf16.msra.mxu0 %v3999
        %5092 = vmatprep.subr.bf16.mxu0 %v4008
        %5093 = vmatpush1.bf16.msra.mxu0 %v4007
        %5094 = vmatprep.subr.bf16.mxu0 %v4016
        %5095 = vmatpush1.bf16.msra.mxu0 %v4015
        %5096 = vmatprep.subr.bf16.mxu0 %v4024
        %5097 = vmatpush1.bf16.msra.mxu0 %v4023
        %5098 = vmatprep.subr.bf16.mxu0 %v4032
        %5099 = vmatpush1.bf16.msra.mxu0 %v4031
        %5100 = vmatprep.subr.bf16.mxu0 %v4040
        %5101 = vmatpush1.bf16.msra.mxu0 %v4039
        %5102 = vmatprep.subr.bf16.mxu0 %v4048
        %5103 = vmatpush1.bf16.msra.mxu0 %v4047
        %5104 = vmatprep.subr.bf16.mxu0 %v4056
        %5105 = vmatpush1.bf16.msra.mxu0 %v4055
        %5106 = vmatprep.subr.bf16.mxu0 %v4064
        %5107 = vmatpush1.bf16.msra.mxu0 %v4063
        %5108 = vmatprep.subr.bf16.mxu0 %v4072
        %5109 = vmatpush1.bf16.msra.mxu0 %v4071
        %5110 = vmatprep.subr.bf16.mxu0 %v4080
        %5111 = vmatpush1.bf16.msra.mxu0 %v4079
        %5112 = vmatprep.subr.bf16.mxu0 %v4088
        %5113 = vmatpush1.bf16.msra.mxu0 %v4087
        %5114 = vmatprep.subr.bf16.mxu0 %v4096
        %5115 = vmatpush1.bf16.msra.mxu0 %v4095
        %5116 = vmatprep.mubr.bf16.mxu0 %v2042
        %5117 = vmatmul.mubr.bf16.gmra.mrb[0].mxu0 %v2041
        %v5118 = vpop.f32.mrb[0].mxu0
        %v5119 = vadd.f32 %v5076, %v5118
        %v5120 = vpop.f32.mrb[0].mxu0
        %v5121 = vadd.f32 %v5078, %v5120
        %v5122 = vpop.f32.mrb[0].mxu0
        %v5123 = vadd.f32 %v5080, %v5122
        %v5124 = vpop.f32.mrb[0].mxu0
        %v5125 = vadd.f32 %v5082, %v5124
        %5126 = vdwg.mxu0
        %5127 = vmatprep.subr.bf16.mxu0 %v3594
        %5128 = vmatpush1.bf16.msra.mxu0 %v3593
        %5129 = vmatprep.subr.bf16.mxu0 %v3602
        %5130 = vmatpush1.bf16.msra.mxu0 %v3601
        %5131 = vmatprep.subr.bf16.mxu0 %v3610
        %5132 = vmatpush1.bf16.msra.mxu0 %v3609
        %5133 = vmatprep.subr.bf16.mxu0 %v3618
        %5134 = vmatpush1.bf16.msra.mxu0 %v3617
        %5135 = vmatprep.subr.bf16.mxu0 %v3626
        %5136 = vmatpush1.bf16.msra.mxu0 %v3625
        %5137 = vmatprep.subr.bf16.mxu0 %v3634
        %5138 = vmatpush1.bf16.msra.mxu0 %v3633
        %5139 = vmatprep.subr.bf16.mxu0 %v3642
        %5140 = vmatpush1.bf16.msra.mxu0 %v3641
        %5141 = vmatprep.subr.bf16.mxu0 %v3650
        %5142 = vmatpush1.bf16.msra.mxu0 %v3649
        %5143 = vmatprep.subr.bf16.mxu0 %v3658
        %5144 = vmatpush1.bf16.msra.mxu0 %v3657
        %5145 = vmatprep.subr.bf16.mxu0 %v3666
        %5146 = vmatpush1.bf16.msra.mxu0 %v3665
        %5147 = vmatprep.subr.bf16.mxu0 %v3674
        %5148 = vmatpush1.bf16.msra.mxu0 %v3673
        %5149 = vmatprep.subr.bf16.mxu0 %v3682
        %5150 = vmatpush1.bf16.msra.mxu0 %v3681
        %5151 = vmatprep.subr.bf16.mxu0 %v3690
        %5152 = vmatpush1.bf16.msra.mxu0 %v3689
        %5153 = vmatprep.subr.bf16.mxu0 %v3698
        %5154 = vmatpush1.bf16.msra.mxu0 %v3697
        %5155 = vmatprep.subr.bf16.mxu0 %v3706
        %5156 = vmatpush1.bf16.msra.mxu0 %v3705
        %5157 = vmatprep.subr.bf16.mxu0 %v3714
        %5158 = vmatpush1.bf16.msra.mxu0 %v3713
        %5159 = vmatprep.mubr.bf16.mxu0 %v2036
        %5160 = vmatmul.mubr.bf16.gmra.mrb[0].mxu0 %v2035
        %v5161 = vpop.f32.mrb[0].mxu0
        %v5162 = vadd.f32 0.0, %v5161
        %v5163 = vpop.f32.mrb[0].mxu0
        %v5164 = vadd.f32 0.0, %v5163
        %v5165 = vpop.f32.mrb[0].mxu0
        %v5166 = vadd.f32 0.0, %v5165
        %v5167 = vpop.f32.mrb[0].mxu0
        %v5168 = vadd.f32 0.0, %v5167
        %5169 = vdwg.mxu0
        %5170 = vmatprep.subr.bf16.mxu0 %v3722
        %5171 = vmatpush1.bf16.msra.mxu0 %v3721
        %5172 = vmatprep.subr.bf16.mxu0 %v3730
        %5173 = vmatpush1.bf16.msra.mxu0 %v3729
        %5174 = vmatprep.subr.bf16.mxu0 %v3738
        %5175 = vmatpush1.bf16.msra.mxu0 %v3737
        %5176 = vmatprep.subr.bf16.mxu0 %v3746
        %5177 = vmatpush1.bf16.msra.mxu0 %v3745
        %5178 = vmatprep.subr.bf16.mxu0 %v3754
        %5179 = vmatpush1.bf16.msra.mxu0 %v3753
        %5180 = vmatprep.subr.bf16.mxu0 %v3762
        %5181 = vmatpush1.bf16.msra.mxu0 %v3761
        %5182 = vmatprep.subr.bf16.mxu0 %v3770
        %5183 = vmatpush1.bf16.msra.mxu0 %v3769
        %5184 = vmatprep.subr.bf16.mxu0 %v3778
        %5185 = vmatpush1.bf16.msra.mxu0 %v3777
        %5186 = vmatprep.subr.bf16.mxu0 %v3786
        %5187 = vmatpush1.bf16.msra.mxu0 %v3785
        %5188 = vmatprep.subr.bf16.mxu0 %v3794
        %5189 = vmatpush1.bf16.msra.mxu0 %v3793
        %5190 = vmatprep.subr.bf16.mxu0 %v3802
        %5191 = vmatpush1.bf16.msra.mxu0 %v3801
        %5192 = vmatprep.subr.bf16.mxu0 %v3810
        %5193 = vmatpush1.bf16.msra.mxu0 %v3809
        %5194 = vmatprep.subr.bf16.mxu0 %v3818
        %5195 = vmatpush1.bf16.msra.mxu0 %v3817
        %5196 = vmatprep.subr.bf16.mxu0 %v3826
        %5197 = vmatpush1.bf16.msra.mxu0 %v3825
        %5198 = vmatprep.subr.bf16.mxu0 %v3834
        %5199 = vmatpush1.bf16.msra.mxu0 %v3833
        %5200 = vmatprep.subr.bf16.mxu0 %v3842
        %5201 = vmatpush1.bf16.msra.mxu0 %v3841
        %5202 = vmatprep.mubr.bf16.mxu0 %v2038
        %5203 = vmatmul.mubr.bf16.gmra.mrb[0].mxu0 %v2037
        %v5204 = vpop.f32.mrb[0].mxu0
        %v5205 = vadd.f32 %v5162, %v5204
        %v5206 = vpop.f32.mrb[0].mxu0
        %v5207 = vadd.f32 %v5164, %v5206
        %v5208 = vpop.f32.mrb[0].mxu0
        %v5209 = vadd.f32 %v5166, %v5208
        %v5210 = vpop.f32.mrb[0].mxu0
        %v5211 = vadd.f32 %v5168, %v5210
        %5212 = vdwg.mxu0
        %5213 = vmatprep.subr.bf16.mxu0 %v3850
        %5214 = vmatpush1.bf16.msra.mxu0 %v3849
        %5215 = vmatprep.subr.bf16.mxu0 %v3858
        %5216 = vmatpush1.bf16.msra.mxu0 %v3857
        %5217 = vmatprep.subr.bf16.mxu0 %v3866
        %5218 = vmatpush1.bf16.msra.mxu0 %v3865
        %5219 = vmatprep.subr.bf16.mxu0 %v3874
        %5220 = vmatpush1.bf16.msra.mxu0 %v3873
        %5221 = vmatprep.subr.bf16.mxu0 %v3882
        %5222 = vmatpush1.bf16.msra.mxu0 %v3881
        %5223 = vmatprep.subr.bf16.mxu0 %v3890
        %5224 = vmatpush1.bf16.msra.mxu0 %v3889
        %5225 = vmatprep.subr.bf16.mxu0 %v3898
        %5226 = vmatpush1.bf16.msra.mxu0 %v3897
        %5227 = vmatprep.subr.bf16.mxu0 %v3906
        %5228 = vmatpush1.bf16.msra.mxu0 %v3905
        %5229 = vmatprep.subr.bf16.mxu0 %v3914
        %5230 = vmatpush1.bf16.msra.mxu0 %v3913
        %5231 = vmatprep.subr.bf16.mxu0 %v3922
        %5232 = vmatpush1.bf16.msra.mxu0 %v3921
        %5233 = vmatprep.subr.bf16.mxu0 %v3930
        %5234 = vmatpush1.bf16.msra.mxu0 %v3929
        %5235 = vmatprep.subr.bf16.mxu0 %v3938
        %5236 = vmatpush1.bf16.msra.mxu0 %v3937
        %5237 = vmatprep.subr.bf16.mxu0 %v3946
        %5238 = vmatpush1.bf16.msra.mxu0 %v3945
        %5239 = vmatprep.subr.bf16.mxu0 %v3954
        %5240 = vmatpush1.bf16.msra.mxu0 %v3953
        %5241 = vmatprep.subr.bf16.mxu0 %v3962
        %5242 = vmatpush1.bf16.msra.mxu0 %v3961
        %5243 = vmatprep.subr.bf16.mxu0 %v3970
        %5244 = vmatpush1.bf16.msra.mxu0 %v3969
        %5245 = vmatprep.mubr.bf16.mxu0 %v2040
        %5246 = vmatmul.mubr.bf16.gmra.mrb[0].mxu0 %v2039
        %v5247 = vpop.f32.mrb[0].mxu0
        %v5248 = vadd.f32 %v5205, %v5247
        %v5249 = vpop.f32.mrb[0].mxu0
        %v5250 = vadd.f32 %v5207, %v5249
        %v5251 = vpop.f32.mrb[0].mxu0
        %v5252 = vadd.f32 %v5209, %v5251
        %v5253 = vpop.f32.mrb[0].mxu0
        %v5254 = vadd.f32 %v5211, %v5253
        %5255 = vdwg.mxu0
        %5256 = vmatprep.subr.bf16.mxu0 %v3978
        %5257 = vmatpush1.bf16.msra.mxu0 %v3977
        %5258 = vmatprep.subr.bf16.mxu0 %v3986
        %5259 = vmatpush1.bf16.msra.mxu0 %v3985
        %5260 = vmatprep.subr.bf16.mxu0 %v3994
        %5261 = vmatpush1.bf16.msra.mxu0 %v3993
        %5262 = vmatprep.subr.bf16.mxu0 %v4002
        %5263 = vmatpush1.bf16.msra.mxu0 %v4001
        %5264 = vmatprep.subr.bf16.mxu0 %v4010
        %5265 = vmatpush1.bf16.msra.mxu0 %v4009
        %5266 = vmatprep.subr.bf16.mxu0 %v4018
        %5267 = vmatpush1.bf16.msra.mxu0 %v4017
        %5268 = vmatprep.subr.bf16.mxu0 %v4026
        %5269 = vmatpush1.bf16.msra.mxu0 %v4025
        %5270 = vmatprep.subr.bf16.mxu0 %v4034
        %5271 = vmatpush1.bf16.msra.mxu0 %v4033
        %5272 = vmatprep.subr.bf16.mxu0 %v4042
        %5273 = vmatpush1.bf16.msra.mxu0 %v4041
        %5274 = vmatprep.subr.bf16.mxu0 %v4050
        %5275 = vmatpush1.bf16.msra.mxu0 %v4049
        %5276 = vmatprep.subr.bf16.mxu0 %v4058
        %5277 = vmatpush1.bf16.msra.mxu0 %v4057
        %5278 = vmatprep.subr.bf16.mxu0 %v4066
        %5279 = vmatpush1.bf16.msra.mxu0 %v4065
        %5280 = vmatprep.subr.bf16.mxu0 %v4074
        %5281 = vmatpush1.bf16.msra.mxu0 %v4073
        %5282 = vmatprep.subr.bf16.mxu0 %v4082
        %5283 = vmatpush1.bf16.msra.mxu0 %v4081
        %5284 = vmatprep.subr.bf16.mxu0 %v4090
        %5285 = vmatpush1.bf16.msra.mxu0 %v4089
        %5286 = vmatprep.subr.bf16.mxu0 %v4098
        %5287 = vmatpush1.bf16.msra.mxu0 %v4097
        %5288 = vmatprep.mubr.bf16.mxu0 %v2042
        %5289 = vmatmul.mubr.bf16.gmra.mrb[0].mxu0 %v2041
        %v5290 = vpop.f32.mrb[0].mxu0
        %v5291 = vadd.f32 %v5248, %v5290
        %v5292 = vpop.f32.mrb[0].mxu0
        %v5293 = vadd.f32 %v5250, %v5292
        %v5294 = vpop.f32.mrb[0].mxu0
        %v5295 = vadd.f32 %v5252, %v5294
        %v5296 = vpop.f32.mrb[0].mxu0
        %v5297 = vadd.f32 %v5254, %v5296
        %5298 = vdwg.mxu0
        %v5299 = vadd.f32 %v1483, %v4775
        %v5300 = vadd.f32 %v1484, %v4777
        %v5301 = vadd.f32 %v1485, %v4947
        %v5302 = vadd.f32 %v1486, %v4949
        %v5303 = vadd.f32 %v1487, %v5119
        %v5304 = vadd.f32 %v1488, %v5121
        %v5305 = vadd.f32 %v1489, %v5291
        %v5306 = vadd.f32 %v1490, %v5293
        %v5307 = vadd.f32 %v1491, %v4779
        %v5308 = vadd.f32 %v1492, %v4781
        %v5309 = vadd.f32 %v1493, %v4951
        %v5310 = vadd.f32 %v1494, %v4953
        %v5311 = vadd.f32 %v1495, %v5123
        %v5312 = vadd.f32 %v1496, %v5125
        %v5313 = vadd.f32 %v1497, %v5295
        %v5314 = vadd.f32 %v1498, %v5297
        %5315 = vst [vmem:[#allocation2] sm:$0xff] %v5299
        %5316 = vst [vmem:[#allocation2 + $0x8] sm:$0xff] %v5300
        %5317 = vst [vmem:[#allocation2 + $0x10] sm:$0xff] %v5301
        %5318 = vst [vmem:[#allocation2 + $0x18] sm:$0xff] %v5302
        %5319 = vst [vmem:[#allocation2 + $0x20] sm:$0xff] %v5303
        %5320 = vst [vmem:[#allocation2 + $0x28] sm:$0xff] %v5304
        %5321 = vst [vmem:[#allocation2 + $0x30] sm:$0xff] %v5305
        %5322 = vst [vmem:[#allocation2 + $0x38] sm:$0xff] %v5306
        %5323 = vst [vmem:[#allocation2 + $0x40] sm:$0xff] %v5307
        %5324 = vst [vmem:[#allocation2 + $0x48] sm:$0xff] %v5308
        %5325 = vst [vmem:[#allocation2 + $0x50] sm:$0xff] %v5309
        %5326 = vst [vmem:[#allocation2 + $0x58] sm:$0xff] %v5310
        %5327 = vst [vmem:[#allocation2 + $0x60] sm:$0xff] %v5311
        %5328 = vst [vmem:[#allocation2 + $0x68] sm:$0xff] %v5312
        %5329 = vst [vmem:[#allocation2 + $0x70] sm:$0xff] %v5313
        %5330 = vst [vmem:[#allocation2 + $0x78] sm:$0xff] %v5314
        %p5331 = scmp.eq.s32.totalorder %s33, 3
        // Predicated region
        $region84: #{linear_add_add.1} parent=58 // pred_check
          %p5332 = pneg %p5331
        $region85: #{linear_add_add.1} parent=58 // pred_check_branch
          %5334 = sbr.rel (%p5332) target = $region87
        $region86: #{linear_add_add.1} parent=58 // pred_region
          %v5335 = vld [vmem:[#allocation2] sm:$0xff]
          %v5336 = vld [vmem:[#allocation2 + $0x8] sm:$0xff]
          %v5337 = vld [vmem:[#allocation2 + $0x10] sm:$0xff]
          %v5338 = vld [vmem:[#allocation2 + $0x18] sm:$0xff]
          %v5339 = vld [vmem:[#allocation2 + $0x20] sm:$0xff]
          %v5340 = vld [vmem:[#allocation2 + $0x28] sm:$0xff]
          %v5341 = vld [vmem:[#allocation2 + $0x30] sm:$0xff]
          %v5342 = vld [vmem:[#allocation2 + $0x38] sm:$0xff]
          %v5343 = vld [vmem:[#allocation2 + $0x40] sm:$0xff]
          %v5344 = vld [vmem:[#allocation2 + $0x48] sm:$0xff]
          %v5345 = vld [vmem:[#allocation2 + $0x50] sm:$0xff]
          %v5346 = vld [vmem:[#allocation2 + $0x58] sm:$0xff]
          %v5347 = vld [vmem:[#allocation2 + $0x60] sm:$0xff]
          %v5348 = vld [vmem:[#allocation2 + $0x68] sm:$0xff]
          %v5349 = vld [vmem:[#allocation2 + $0x70] sm:$0xff]
          %v5350 = vld [vmem:[#allocation2 + $0x78] sm:$0xff]
          %v5351 = vld [vmem:[%s1381] sm:$0xff]
          %v5353 = vlaneseq
          %v5354 = vshrl.u32 %v5353, 7
          %v5355 = vsub.s32 0, %v5354
          %v5356 = vrot.slane %v5351, %v5355
          %v5357 = vlaneseq
          %v5358 = vshrl.u32 %v5357, 7
          %v5359 = vsub.s32 1, %v5358
          %v5360 = vrot.slane %v5351, %v5359
          %v5361 = vlaneseq
          %v5362 = vshrl.u32 %v5361, 7
          %v5363 = vsub.s32 2, %v5362
          %v5364 = vrot.slane %v5351, %v5363
          %v5365 = vlaneseq
          %v5366 = vshrl.u32 %v5365, 7
          %v5367 = vsub.s32 3, %v5366
          %v5368 = vrot.slane %v5351, %v5367
          %v5369 = vlaneseq
          %v5370 = vshrl.u32 %v5369, 7
          %v5371 = vsub.s32 4, %v5370
          %v5372 = vrot.slane %v5351, %v5371
          %v5373 = vlaneseq
          %v5374 = vshrl.u32 %v5373, 7
          %v5375 = vsub.s32 5, %v5374
          %v5376 = vrot.slane %v5351, %v5375
          %v5377 = vlaneseq
          %v5378 = vshrl.u32 %v5377, 7
          %v5379 = vsub.s32 6, %v5378
          %v5380 = vrot.slane %v5351, %v5379
          %v5381 = vlaneseq
          %v5382 = vshrl.u32 %v5381, 7
          %v5383 = vsub.s32 7, %v5382
          %v5384 = vrot.slane %v5351, %v5383
          %v5393 = vadd.f32 %v5335, %v5356
          %v5394 = vadd.f32 %v5336, %v5360
          %v5395 = vadd.f32 %v5337, %v5364
          %v5396 = vadd.f32 %v5338, %v5368
          %v5397 = vadd.f32 %v5339, %v5372
          %v5398 = vadd.f32 %v5340, %v5376
          %v5399 = vadd.f32 %v5341, %v5380
          %v5400 = vadd.f32 %v5342, %v5384
          %v5401 = vadd.f32 %v5343, %v5356
          %v5402 = vadd.f32 %v5344, %v5360
          %v5403 = vadd.f32 %v5345, %v5364
          %v5404 = vadd.f32 %v5346, %v5368
          %v5405 = vadd.f32 %v5347, %v5372
          %v5406 = vadd.f32 %v5348, %v5376
          %v5407 = vadd.f32 %v5349, %v5380
          %v5408 = vadd.f32 %v5350, %v5384
          %v5409 = vld [vmem:[%s1390] sm:$0xff]
          %v5410 = vld [vmem:[%s1390 + $0x8] sm:$0xff]
          %v5411 = vld [vmem:[%s1390 + $0x10] sm:$0xff]
          %v5412 = vld [vmem:[%s1390 + $0x18] sm:$0xff]
          %v5413 = vld [vmem:[%s1390 + $0x20] sm:$0xff]
          %v5414 = vld [vmem:[%s1390 + $0x28] sm:$0xff]
          %v5415 = vld [vmem:[%s1390 + $0x30] sm:$0xff]
          %v5416 = vld [vmem:[%s1390 + $0x38] sm:$0xff]
          %v5417 = vld [vmem:[%s1390 + $0x40] sm:$0xff]
          %v5418 = vld [vmem:[%s1390 + $0x48] sm:$0xff]
          %v5419 = vld [vmem:[%s1390 + $0x50] sm:$0xff]
          %v5420 = vld [vmem:[%s1390 + $0x58] sm:$0xff]
          %v5421 = vld [vmem:[%s1390 + $0x60] sm:$0xff]
          %v5422 = vld [vmem:[%s1390 + $0x68] sm:$0xff]
          %v5423 = vld [vmem:[%s1390 + $0x70] sm:$0xff]
          %v5424 = vld [vmem:[%s1390 + $0x78] sm:$0xff]
          %v5425 = vadd.f32 %v5393, %v5409
          %v5426 = vadd.f32 %v5394, %v5410
          %v5427 = vadd.f32 %v5395, %v5411
          %v5428 = vadd.f32 %v5396, %v5412
          %v5429 = vadd.f32 %v5397, %v5413
          %v5430 = vadd.f32 %v5398, %v5414
          %v5431 = vadd.f32 %v5399, %v5415
          %v5432 = vadd.f32 %v5400, %v5416
          %v5433 = vadd.f32 %v5401, %v5417
          %v5434 = vadd.f32 %v5402, %v5418
          %v5435 = vadd.f32 %v5403, %v5419
          %v5436 = vadd.f32 %v5404, %v5420
          %v5437 = vadd.f32 %v5405, %v5421
          %v5438 = vadd.f32 %v5406, %v5422
          %v5439 = vadd.f32 %v5407, %v5423
          %v5440 = vadd.f32 %v5408, %v5424
          %v5441 = vld [vmem:[%s1399] sm:$0xff]
          %v5442 = vld [vmem:[%s1399 + $0x8] sm:$0xff]
          %v5443 = vld [vmem:[%s1399 + $0x10] sm:$0xff]
          %v5444 = vld [vmem:[%s1399 + $0x18] sm:$0xff]
          %v5445 = vld [vmem:[%s1399 + $0x20] sm:$0xff]
          %v5446 = vld [vmem:[%s1399 + $0x28] sm:$0xff]
          %v5447 = vld [vmem:[%s1399 + $0x30] sm:$0xff]
          %v5448 = vld [vmem:[%s1399 + $0x38] sm:$0xff]
          %v5449 = vld [vmem:[%s1399 + $0x40] sm:$0xff]
          %v5450 = vld [vmem:[%s1399 + $0x48] sm:$0xff]
          %v5451 = vld [vmem:[%s1399 + $0x50] sm:$0xff]
          %v5452 = vld [vmem:[%s1399 + $0x58] sm:$0xff]
          %v5453 = vld [vmem:[%s1399 + $0x60] sm:$0xff]
          %v5454 = vld [vmem:[%s1399 + $0x68] sm:$0xff]
          %v5455 = vld [vmem:[%s1399 + $0x70] sm:$0xff]
          %v5456 = vld [vmem:[%s1399 + $0x78] sm:$0xff]
          %v5457 = vadd.f32 %v5425, %v5441
          %v5458 = vadd.f32 %v5426, %v5442
          %v5459 = vadd.f32 %v5427, %v5443
          %v5460 = vadd.f32 %v5428, %v5444
          %v5461 = vadd.f32 %v5429, %v5445
          %v5462 = vadd.f32 %v5430, %v5446
          %v5463 = vadd.f32 %v5431, %v5447
          %v5464 = vadd.f32 %v5432, %v5448
          %v5465 = vadd.f32 %v5433, %v5449
          %v5466 = vadd.f32 %v5434, %v5450
          %v5467 = vadd.f32 %v5435, %v5451
          %v5468 = vadd.f32 %v5436, %v5452
          %v5469 = vadd.f32 %v5437, %v5453
          %v5470 = vadd.f32 %v5438, %v5454
          %v5471 = vadd.f32 %v5439, %v5455
          %v5472 = vadd.f32 %v5440, %v5456
          %5473 = vst [vmem:[%s1439] sm:$0xff] %v5457
          %5474 = vst [vmem:[%s1439 + $0x8] sm:$0xff] %v5458
          %5475 = vst [vmem:[%s1439 + $0x10] sm:$0xff] %v5459
          %5476 = vst [vmem:[%s1439 + $0x18] sm:$0xff] %v5460
          %5477 = vst [vmem:[%s1439 + $0x20] sm:$0xff] %v5461
          %5478 = vst [vmem:[%s1439 + $0x28] sm:$0xff] %v5462
          %5479 = vst [vmem:[%s1439 + $0x30] sm:$0xff] %v5463
          %5480 = vst [vmem:[%s1439 + $0x38] sm:$0xff] %v5464
          %5481 = vst [vmem:[%s1439 + $0x40] sm:$0xff] %v5465
          %5482 = vst [vmem:[%s1439 + $0x48] sm:$0xff] %v5466
          %5483 = vst [vmem:[%s1439 + $0x50] sm:$0xff] %v5467
          %5484 = vst [vmem:[%s1439 + $0x58] sm:$0xff] %v5468
          %5485 = vst [vmem:[%s1439 + $0x60] sm:$0xff] %v5469
          %5486 = vst [vmem:[%s1439 + $0x68] sm:$0xff] %v5470
          %5487 = vst [vmem:[%s1439 + $0x70] sm:$0xff] %v5471
          %5488 = vst [vmem:[%s1439 + $0x78] sm:$0xff] %v5472
        $region87: #{linear_add_add.1} parent=58 // pred_fallthru
          _
        %s5489 = sand.u32 %s191, 1
        %s5490 = scalar_lea.sflag [#allocation5], %s5489
        %s5491 = sand.u32 %s191, 1
        %s5492 = smul.addr %s5491, 128
        %s5493 = scalar_lea.vmem [#allocation12], %s5492
        // Predicated region
        $region88: #{linear_add_add.1} parent=58 // pred_check
          %p5494 = pneg %p201
        $region89: #{linear_add_add.1} parent=58 // pred_check_branch
          %5496 = sbr.rel (%p5494) target = $region91
        $region90: #{linear_add_add.1} parent=58 // pred_region
          %s5497 = smul.u32 2, %s31
          %s5498 = smul.u32 8, %s32
          %s5500 = ssub.s32 2048, 2048
          %5501 = vsyncadd %s5490, %s5500
          %s5502 = smul.addr %s5497, 32
          %s5503 = sadd.s32 %s5498, %s5502
          %s5504 = smul.addr %s5503, 128
          %s5505 = scalar_lea.hbm %s5, %s5504
          %s5506 = sshll.u32 %s5493, 4
          %s5507 = int_to_ptr.vmem [resolvable:$true] %s5506
          %5512 = dma.vmem_to_hbm [thread:$0]  %s5507, 2048, %s5505, %s5490, 1024, 4096, 64
        $region91: #{linear_add_add.1} parent=58 // pred_fallthru
          _
      $region59: #{linear_add_add.1} parent=5 // pred_fallthru
        _
      %p5513 = scmp.le.s32.totalorder 2, %s21
      // Predicated region
      $region92: #{linear_add_add.1} parent=5 // pred_check
        %p5514 = pneg %p5513
      $region93: #{linear_add_add.1} parent=5 // pred_check_branch
        %5516 = sbr.rel (%p5514) target = $region95
      $region94: #{linear_add_add.1} parent=5 // pred_region
        %s5517 = ssub.s32 %s21, 2
        // Predicated region
        $region96: #{linear_add_add.1} parent=94 // pred_check
          %p5518 = pneg %p207
        $region97: #{linear_add_add.1} parent=94 // pred_check_branch
          %5520 = sbr.rel (%p5518) target = $region99
        $region98: #{linear_add_add.1} parent=94 // pred_region
          %s5521 = sand.u32 %s192, 1
          %s5522 = scalar_lea.sflag [#allocation5], %s5521
          %s5523 = sand.u32 %s192, 1
          %s5524 = smul.addr %s5523, 128
          %s5525 = scalar_lea.vmem [#allocation12], %s5524
          %5526 = dma.done %s5522, 2048
        $region99: #{linear_add_add.1} parent=94 // pred_fallthru
          _
      $region95: #{linear_add_add.1} parent=5 // pred_fallthru
        _
    $region6: #{linear_add_add.1} parent=1 // loop_footer
      %s25 = sadd.s32 1, %s21
    $region7: #{linear_add_add.1} parent=1 // loop_footer_branch
      %20 = sbr.rel target = $region3
    $region8: #{linear_add_add.1} parent=1 // loop_exit
      _
    %5527 = vsyncpa [#allocation4], 1
    %s5528 = scalar_lea.sflag [#allocation4], 1
    %5529 = vsyncpa %s5528, 1
    %5530 = vsyncpa [#allocation8], 1
    %s5531 = scalar_lea.sflag [#allocation8], 1
    %5532 = vsyncpa %s5531, 1
    %5533 = vsyncpa [#allocation11], 1
    %s5534 = scalar_lea.sflag [#allocation11], 1
    %5535 = vsyncpa %s5534, 1
    %5536 = vsyncpa [#allocation5], 1
    %s5537 = scalar_lea.sflag [#allocation5], 1
    %5538 = vsyncpa %s5537, 1

</llo_original>
